<compile_context>
chip_gen: v6e
topology: v6e:2x2x1
jax: 0.10.0
libtpu: 0.0.40
codegen_flags: <defaults>
</compile_context>

<pallas_src>
import functools

import jax
import jax.numpy as jnp
import numpy as np
from jax.experimental import pallas as pl
from jax.experimental.pallas import tpu as pltpu

# ----------------------------- hyper-parameters ------------------------------
TRG_VOCAB = 16
EMBED = 32
NUM_LAYERS = 2
HEADS = 4
HEAD_DIM = EMBED // HEADS
FWD_EXP = 4
HIDDEN = FWD_EXP * EMBED
MAX_LEN = 16
BATCH = 2
SEQ = 8          # target sequence length
SRC_LEN = 8      # encoder output length
LN_EPS = 1e-5
VPAD = 128       # lane-dense padded vocab dimension


# --------------------------------- kernel ------------------------------------
def decoder_kernel(x_ref, enc_kv_ref, self_bias_ref, cross_bias_ref,
                   qkv_ref, woT_ref, w1T_ref, w2T_ref, fcoT_ref,
                   vecs_e_ref, vecs_h_ref, o_ref,
                   *, heads, head_dim, embed, num_layers, rows):
    """Full decoder stack, all heads + all batch elements folded into one block.

    rows = N * L (the residual stream is (rows, E)); attention operands are
    head-stacked along sublanes: (H * rows, D).
    """
    H, D, E = heads, head_dim, embed
    x = x_ref[...]                       # (rows, E) residual stream (batch-folded)
    self_bias = self_bias_ref[...]       # (H*rows, H*rows) additive bias
    cross_bias = cross_bias_ref[...]     # (H*rows, H*N*S)

    def stack_heads(z):                  # (rows, E) -> (H*rows, D), head-major rows
        return jnp.concatenate(
            [z[:, h * D:(h + 1) * D] for h in range(H)], axis=0)

    def layer_norm(z, g_row, b_row):
        mean = jnp.mean(z, axis=-1, keepdims=True)
        var = jnp.mean((z - mean) ** 2, axis=-1, keepdims=True)
        inv = jax.lax.rsqrt(var + LN_EPS)
        return ((z - mean) * inv * vecs_e_ref[g_row:g_row + 1, :]
                + vecs_e_ref[b_row:b_row + 1, :])

    def softmax_ctx(q_p, k_p, v_p, bias):
        # one blocked energy matmul for all heads & batch; cross-head / cross-batch
        # blocks are killed by the additive bias (-1e20 -> exp == 0 exactly).
        energy = jax.lax.dot_general(
            q_p, k_p, (((1,), (1,)), ((), ())),
            preferred_element_type=jnp.float32)              # (H*rows, H*Lk)
        e = energy + bias                                    # scale folded into Wq
        e = e - jnp.max(e, axis=-1, keepdims=True)
        p = jnp.exp(e)
        denom = jnp.sum(p, axis=-1, keepdims=True)
        att = p * pl.reciprocal(denom, approx=False)
        return jnp.dot(att, v_p, preferred_element_type=jnp.float32)   # (H*rows, D)

    def wo_project(ctx2, a_idx, bo_row):
        # Wo as H accumulated sublane-slice matmuls -> no lane-concat relayout.
        wo = woT_ref[a_idx]                                  # (E, E), [in, out]
        out = jnp.dot(ctx2[0:rows, :], wo[0:D, :],
                      preferred_element_type=jnp.float32)
        for h in range(1, H):
            out = out + jnp.dot(ctx2[h * rows:(h + 1) * rows, :],
                                wo[h * D:(h + 1) * D, :],
                                preferred_element_type=jnp.float32)
        return out + vecs_e_ref[bo_row:bo_row + 1, :]

    for l in range(num_layers):
        base = 9 * l
        qkvw = qkv_ref[l]                                    # (D, 4D): [q|k|v|q_cross]

        # ---- DecoderBlock: masked self-attention, residual + LayerNorm ----
        x2 = stack_heads(x)                                  # (H*rows, D)
        qkv = jnp.dot(x2, qkvw, preferred_element_type=jnp.float32)   # (H*rows, 4D)
        ctx2 = softmax_ctx(qkv[:, 0:D], qkv[:, D:2 * D], qkv[:, 2 * D:3 * D],
                           self_bias)
        self_att = wo_project(ctx2, 2 * l + 0, base + 0)
        query = layer_norm(self_att + x, base + 2, base + 3)

        # ---- TransformerBlock: cross-attention with pre-projected encoder K/V ----
        q2 = stack_heads(query)
        q_p = jnp.dot(q2, qkvw, preferred_element_type=jnp.float32)[:, 3 * D:4 * D]
        enc_kv = enc_kv_ref[l]                               # (H*N*S, 2D): [k|v]
        ctx2 = softmax_ctx(q_p, enc_kv[:, 0:D], enc_kv[:, D:2 * D], cross_bias)
        cross_att = wo_project(ctx2, 2 * l + 1, base + 1)
        h_res = layer_norm(cross_att + query, base + 4, base + 5)

        # ---- feed-forward (HIDDEN = 128 -> lane-dense intermediate) ----
        ff = (jnp.dot(h_res, w1T_ref[l], preferred_element_type=jnp.float32)
              + vecs_h_ref[l:l + 1, :])
        ff = jnp.maximum(ff, 0.0)
        ff = (jnp.dot(ff, w2T_ref[l], preferred_element_type=jnp.float32)
              + vecs_e_ref[base + 8:base + 9, :])
        x = layer_norm(ff + h_res, base + 6, base + 7)

    # final vocab projection, padded to 128 lanes -> one unmasked lane-dense store
    o_ref[...] = (jnp.dot(x, fcoT_ref[...], preferred_element_type=jnp.float32)
                  + vecs_h_ref[num_layers:num_layers + 1, :])


# ------------------------------ wrapper glue ----------------------------------
def _block_mask_bias(mask):
    """(N, H, Lq, Lk) int mask -> (H*N*Lq, H*N*Lk) additive f32 bias.

    Rows/cols are head-major then batch-major stacked; cross-head blocks,
    cross-batch blocks, and masked positions all get -1e20."""
    N, H, Lq, Lk = mask.shape
    neg = jnp.float32(-1e20)
    inblock = jnp.where(mask == 0, neg, jnp.float32(0.0))               # (N,H,Lq,Lk)
    inblock = jnp.transpose(inblock, (1, 0, 2, 3))                      # (H,N,Lq,Lk)
    same_h = jnp.eye(H, dtype=bool)[:, None, None, :, None, None]       # (H,1,1,H,1,1)
    same_n = jnp.eye(N, dtype=bool)[None, :, None, None, :, None]       # (1,N,1,1,N,1)
    full = jnp.where(same_h & same_n,
                     inblock[:, :, :, None, None, :], neg)              # (H,N,Lq,H,N,Lk)
    return full.reshape(H * N * Lq, H * N * Lk)


def _stack_heads_batch(x):
    """(N, Lr, E) -> (H*N*Lr, D) head-major then batch-major stacking."""
    N, Lr, E = x.shape
    flat = x.reshape(N * Lr, E)
    return jnp.concatenate(
        [flat[:, h * HEAD_DIM:(h + 1) * HEAD_DIM] for h in range(HEADS)], axis=0)


def decoder_forward(tokens, enc_out, src_mask, trg_mask, params):
    """Mirrors Decoder.forward.  Dropout is identity (eval mode)."""
    N, L = tokens.shape
    S = enc_out.shape[1]
    E, H, D = EMBED, HEADS, HEAD_DIM
    scale = 1.0 / (E ** 0.5)

    positions = jnp.arange(L)
    x_emb = (params["word_emb"][tokens]
             + params["pos_emb"][positions][None, :, :]).reshape(N * L, E)
    # TODO(synk): nn.Dropout has no deterministic Pallas equivalent; treated as eval-mode identity.

    enc2 = _stack_heads_batch(enc_out)            # (H*N*S, D)
    self_bias = _block_mask_bias(trg_mask)        # (H*N*L, H*N*L)
    cross_bias = _block_mask_bias(src_mask)       # (H*N*L, H*N*S)

    # ---- pre-transpose / fuse / pack all parameters (free wrapper-side plumbing) ----
    qkvT, woT, w1T, w2T, enc_kv, vecs_e, vecs_h = ([] for _ in range(7))
    for lp in params["layers"]:
        sa, ca = lp["self_attn"], lp["tb_attn"]
        # fused projection weight (D, 4D): [Wq_self*s | Wk_self | Wv_self | Wq_cross*s]
        qkvT.append(jnp.concatenate(
            [sa["wq"].T * scale, sa["wk"].T, sa["wv"].T, ca["wq"].T * scale], axis=-1))
        woT.append(sa["wo"].T)
        woT.append(ca["wo"].T)
        w1T.append(lp["ffn"]["w1"].T)             # (E, HIDDEN)
        w2T.append(lp["ffn"]["w2"].T)             # (HIDDEN, E)
        # hoisted cross-attention K/V projections of the encoder output
        enc_kv.append(jnp.concatenate([enc2 @ ca["wk"].T, enc2 @ ca["wv"].T], axis=-1))
        # packed E-wide vectors: bo_self, bo_cross, (g,b) x 3 norms, b2  -> 9 rows/layer
        vecs_e += [sa["bo"], ca["bo"],
                   lp["norm"]["gamma"], lp["norm"]["beta"],
                   lp["norm1"]["gamma"], lp["norm1"]["beta"],
                   lp["norm2"]["gamma"], lp["norm2"]["beta"],
                   lp["ffn"]["b2"]]
        vecs_h.append(lp["ffn"]["b1"])            # (1, HIDDEN)

    V = params["fc_out_w"].shape[0]
    fcoT = jnp.zeros((E, VPAD), jnp.float32).at[:, :V].set(params["fc_out_w"].T)
    fcob = jnp.zeros((1, VPAD), jnp.float32).at[:, :V].set(params["fc_out_b"])
    vecs_h.append(fcob)

    qkvT = jnp.stack(qkvT)                        # (NL, D, 4D)
    woT = jnp.stack(woT)                          # (2*NL, E, E)
    w1T = jnp.stack(w1T)                          # (NL, E, HIDDEN)
    w2T = jnp.stack(w2T)                          # (NL, HIDDEN, E)
    enc_kv = jnp.stack(enc_kv)                    # (NL, H*N*S, 2D)
    vecs_e = jnp.concatenate(vecs_e, axis=0)      # (9*NL, E)
    vecs_h = jnp.concatenate(vecs_h, axis=0)      # (NL+1, 128)

    kern = functools.partial(decoder_kernel, heads=H, head_dim=D, embed=E,
                             num_layers=NUM_LAYERS, rows=N * L)

    def full_spec(shape):
        nd = len(shape)
        return pl.BlockSpec(tuple(shape), lambda i, _nd=nd: (0,) * _nd)

    inputs = (x_emb, enc_kv, self_bias, cross_bias,
              qkvT, woT, w1T, w2T, fcoT, vecs_e, vecs_h)

    out = pl.pallas_call(
        kern,
        out_shape=jax.ShapeDtypeStruct((N * L, VPAD), jnp.float32),
        grid=(1,),
        in_specs=[full_spec(a.shape) for a in inputs],
        out_specs=full_spec((N * L, VPAD)),
    )(*inputs)

    return out[:, :V].reshape(N, L, V)


# --------------------------- pure-JAX reference --------------------------------
def _ref_attention(v, k, q, mask, p):
    N, Lk, E = v.shape
    Lq = q.shape[1]
    H, D = HEADS, HEAD_DIM
    vh = v.reshape(N, Lk, H, D) @ p["wv"].T
    kh = k.reshape(N, Lk, H, D) @ p["wk"].T
    qh = q.reshape(N, Lq, H, D) @ p["wq"].T
    energy = jnp.einsum("nqhd,nkhd->nhqk", qh, kh)
    energy = jnp.where(mask == 0, jnp.float32(-1e20), energy)
    att = jax.nn.softmax(energy / (E ** 0.5), axis=-1)
    out = jnp.einsum("nhql,nlhd->nqhd", att, vh).reshape(N, Lq, E)
    return out @ p["wo"].T + p["bo"]


def _ref_ln(z, p):
    m = jnp.mean(z, axis=-1, keepdims=True)
    v = jnp.mean((z - m) ** 2, axis=-1, keepdims=True)
    return (z - m) * jax.lax.rsqrt(v + LN_EPS) * p["gamma"] + p["beta"]


def _ref_forward(tokens, enc_out, src_mask, trg_mask, params):
    N, L = tokens.shape
    x = params["word_emb"][tokens] + params["pos_emb"][jnp.arange(L)][None]
    for lp in params["layers"]:
        q = _ref_ln(_ref_attention(x, x, x, trg_mask, lp["self_attn"]) + x, lp["norm"])
        h = _ref_ln(_ref_attention(enc_out, enc_out, q, src_mask, lp["tb_attn"]) + q, lp["norm1"])
        ff = jnp.maximum(h @ lp["ffn"]["w1"].T + lp["ffn"]["b1"], 0.0) @ lp["ffn"]["w2"].T + lp["ffn"]["b2"]
        x = _ref_ln(ff + h, lp["norm2"])
    return x @ params["fc_out_w"].T + params["fc_out_b"]


# ------------------------------ parameter init ---------------------------------
def init_params(key):
    def nrm(key, shape, scale=0.05):
        return (scale * jax.random.normal(key, shape)).astype(jnp.float32)

    keys = iter(jax.random.split(key, 64))
    params = {
        "word_emb": nrm(next(keys), (TRG_VOCAB, EMBED), 1.0),
        "pos_emb": nrm(next(keys), (MAX_LEN, EMBED), 1.0),
        "fc_out_w": nrm(next(keys), (TRG_VOCAB, EMBED)),
        "fc_out_b": nrm(next(keys), (1, TRG_VOCAB)),
        "layers": [],
    }

    def attn_params():
        return {
            "wv": nrm(next(keys), (HEAD_DIM, HEAD_DIM)),
            "wk": nrm(next(keys), (HEAD_DIM, HEAD_DIM)),
            "wq": nrm(next(keys), (HEAD_DIM, HEAD_DIM)),
            "wo": nrm(next(keys), (EMBED, EMBED)),
            "bo": nrm(next(keys), (1, EMBED)),
        }

    def ln_params():
        return {"gamma": jnp.ones((1, EMBED), jnp.float32),
                "beta": jnp.zeros((1, EMBED), jnp.float32)}

    for _ in range(NUM_LAYERS):
        params["layers"].append({
            "self_attn": attn_params(),
            "norm": ln_params(),
            "tb_attn": attn_params(),
            "norm1": ln_params(),
            "norm2": ln_params(),
            "ffn": {
                "w1": nrm(next(keys), (HIDDEN, EMBED)),
                "b1": nrm(next(keys), (1, HIDDEN)),
                "w2": nrm(next(keys), (EMBED, HIDDEN)),
                "b2": nrm(next(keys), (1, EMBED)),
            },
        })
    return params


# ----------------------------------- main ---------------------------------------
if __name__ == "__main__":
    root = jax.random.PRNGKey(0)
    k_par, k_tok, k_enc = jax.random.split(root, 3)

    params = init_params(k_par)

    tokens = jax.random.randint(k_tok, (BATCH, SEQ), 0, TRG_VOCAB, dtype=jnp.int32)
    enc_out = jax.random.normal(k_enc, (BATCH, SRC_LEN, EMBED), dtype=jnp.float32)

    # causal target mask, all-ones source mask, broadcast to [N, H, Lq, Lk]
    trg_mask = jnp.broadcast_to(
        jnp.tril(jnp.ones((SEQ, SEQ), jnp.int32))[None, None],
        (BATCH, HEADS, SEQ, SEQ)).astype(jnp.int32)
    src_mask = jnp.ones((BATCH, HEADS, SEQ, SRC_LEN), jnp.int32)

    fwd = jax.jit(decoder_forward)
    out = fwd(tokens, enc_out, src_mask, trg_mask, params)
    out = jax.block_until_ready(out)

    ref = _ref_forward(tokens, enc_out, src_mask, trg_mask, params)
    np.testing.assert_allclose(np.asarray(out), np.asarray(ref), rtol=2e-3, atol=2e-3)
    assert out.shape == (BATCH, SEQ, TRG_VOCAB)

    print("KERNEL_OK")
</pallas_src>

<mosaic_0001>
module attributes {stable_mosaic.version = 11 : i64} {
  func.func @decoder_kernel(%arg0: i32, %arg1: memref<16x32xf32, #tpu.memory_space<vmem>>, %arg2: memref<2x64x16xf32, #tpu.memory_space<vmem>>, %arg3: memref<64x64xf32, #tpu.memory_space<vmem>>, %arg4: memref<64x64xf32, #tpu.memory_space<vmem>>, %arg5: memref<2x8x32xf32, #tpu.memory_space<vmem>>, %arg6: memref<4x32x32xf32, #tpu.memory_space<vmem>>, %arg7: memref<2x32x128xf32, #tpu.memory_space<vmem>>, %arg8: memref<2x128x32xf32, #tpu.memory_space<vmem>>, %arg9: memref<32x128xf32, #tpu.memory_space<vmem>>, %arg10: memref<18x32xf32, #tpu.memory_space<vmem>>, %arg11: memref<3x128xf32, #tpu.memory_space<vmem>>, %arg12: memref<16x128xf32, #tpu.memory_space<vmem>>) attributes {dimension_semantics = [#tpu.dimension_semantics<arbitrary>], iteration_bounds = array<i64: 1>, scalar_prefetch = 0 : i64, scratch_operands = 0 : i64, tpu.core_type = #tpu.core_type<tc>, window_params = [{pipeline_mode = #tpu.pipeline_mode<synchronous>, transform_indices = @transform_0, window_bounds = array<i64: 16, 32>}, {pipeline_mode = #tpu.pipeline_mode<synchronous>, transform_indices = @transform_1, window_bounds = array<i64: 2, 64, 16>}, {pipeline_mode = #tpu.pipeline_mode<synchronous>, transform_indices = @transform_2, window_bounds = array<i64: 64, 64>}, {pipeline_mode = #tpu.pipeline_mode<synchronous>, transform_indices = @transform_3, window_bounds = array<i64: 64, 64>}, {pipeline_mode = #tpu.pipeline_mode<synchronous>, transform_indices = @transform_4, window_bounds = array<i64: 2, 8, 32>}, {pipeline_mode = #tpu.pipeline_mode<synchronous>, transform_indices = @transform_5, window_bounds = array<i64: 4, 32, 32>}, {pipeline_mode = #tpu.pipeline_mode<synchronous>, transform_indices = @transform_6, window_bounds = array<i64: 2, 32, 128>}, {pipeline_mode = #tpu.pipeline_mode<synchronous>, transform_indices = @transform_7, window_bounds = array<i64: 2, 128, 32>}, {pipeline_mode = #tpu.pipeline_mode<synchronous>, transform_indices = @transform_8, window_bounds = array<i64: 32, 128>}, {pipeline_mode = #tpu.pipeline_mode<synchronous>, transform_indices = @transform_9, window_bounds = array<i64: 18, 32>}, {pipeline_mode = #tpu.pipeline_mode<synchronous>, transform_indices = @transform_10, window_bounds = array<i64: 3, 128>}, {pipeline_mode = #tpu.pipeline_mode<synchronous>, transform_indices = @transform_11, window_bounds = array<i64: 16, 128>}]} {
    %c0 = arith.constant 0 : index
    %c0_0 = arith.constant 0 : index
    %0 = vector.load %arg1[%c0, %c0_0] : memref<16x32xf32, #tpu.memory_space<vmem>>, vector<16x32xf32>
    %c0_1 = arith.constant 0 : index
    %c0_2 = arith.constant 0 : index
    %1 = vector.load %arg3[%c0_1, %c0_2] : memref<64x64xf32, #tpu.memory_space<vmem>>, vector<64x64xf32>
    %c0_3 = arith.constant 0 : index
    %c0_4 = arith.constant 0 : index
    %2 = vector.load %arg4[%c0_3, %c0_4] : memref<64x64xf32, #tpu.memory_space<vmem>>, vector<64x64xf32>
    %c0_5 = arith.constant 0 : index
    %c0_6 = arith.constant 0 : index
    %c0_7 = arith.constant 0 : index
    %3 = vector.load %arg5[%c0_5, %c0_6, %c0_7] : memref<2x8x32xf32, #tpu.memory_space<vmem>>, vector<1x8x32xf32>
    %4 = vector.shape_cast %3 : vector<1x8x32xf32> to vector<8x32xf32>
    %5 = vector.extract_strided_slice %0 {offsets = [0, 0], sizes = [16, 8], strides = [1, 1]} : vector<16x32xf32> to vector<16x8xf32>
    %6 = vector.extract_strided_slice %0 {offsets = [0, 8], sizes = [16, 8], strides = [1, 1]} : vector<16x32xf32> to vector<16x8xf32>
    %7 = vector.extract_strided_slice %0 {offsets = [0, 16], sizes = [16, 8], strides = [1, 1]} : vector<16x32xf32> to vector<16x8xf32>
    %8 = vector.extract_strided_slice %0 {offsets = [0, 24], sizes = [16, 8], strides = [1, 1]} : vector<16x32xf32> to vector<16x8xf32>
    %9 = tpu.concatenate %5, %6, %7, %8 in 0 : vector<16x8xf32>, vector<16x8xf32>, vector<16x8xf32>, vector<16x8xf32> -> vector<64x8xf32>
    %cst = arith.constant dense<0.000000e+00> : vector<64x32xf32>
    %10 = tpu.matmul %9, %4, %cst {dimension_numbers = #tpu.dot_dimension_numbers<[1], [0], [0], [1], [0, 0, 1, 1], [], []>} : vector<64x8xf32>, vector<8x32xf32>, vector<64x32xf32> -> vector<64x32xf32>
    %11 = vector.extract_strided_slice %10 {offsets = [0, 0], sizes = [64, 8], strides = [1, 1]} : vector<64x32xf32> to vector<64x8xf32>
    %12 = vector.extract_strided_slice %10 {offsets = [0, 8], sizes = [64, 8], strides = [1, 1]} : vector<64x32xf32> to vector<64x8xf32>
    %13 = vector.extract_strided_slice %10 {offsets = [0, 16], sizes = [64, 8], strides = [1, 1]} : vector<64x32xf32> to vector<64x8xf32>
    %cst_8 = arith.constant dense<0.000000e+00> : vector<64x64xf32>
    %14 = tpu.matmul %11, %12, %cst_8 {dimension_numbers = #tpu.dot_dimension_numbers<[1], [1], [0], [0], [0, 0, 1, 0], [], []>} : vector<64x8xf32>, vector<64x8xf32>, vector<64x64xf32> -> vector<64x64xf32>
    %15 = arith.addf %14, %1 : vector<64x64xf32>
    %cst_9 = arith.constant dense<0xFF800000> : vector<64xf32>
    %16 = vector.multi_reduction <maximumf>, %15, %cst_9 [1] : vector<64x64xf32> to vector<64xf32>
    %17 = vector.shape_cast %16 : vector<64xf32> to vector<64x1xf32>
    %18 = vector.broadcast %17 : vector<64x1xf32> to vector<64x64xf32>
    %19 = arith.subf %15, %18 : vector<64x64xf32>
    %20 = math.exp %19 : vector<64x64xf32>
    %cst_10 = arith.constant dense<0.000000e+00> : vector<64xf32>
    %21 = vector.multi_reduction <add>, %20, %cst_10 [1] : vector<64x64xf32> to vector<64xf32>
    %22 = vector.shape_cast %21 : vector<64xf32> to vector<64x1xf32>
    %23 = tpu.reciprocal %22 : vector<64x1xf32> -> vector<64x1xf32>
    %24 = vector.broadcast %23 : vector<64x1xf32> to vector<64x64xf32>
    %25 = arith.mulf %20, %24 : vector<64x64xf32>
    %cst_11 = arith.constant dense<0.000000e+00> : vector<64x8xf32>
    %26 = tpu.matmul %25, %13, %cst_11 {dimension_numbers = #tpu.dot_dimension_numbers<[1], [0], [0], [1], [0, 0, 1, 1], [], []>} : vector<64x64xf32>, vector<64x8xf32>, vector<64x8xf32> -> vector<64x8xf32>
    %c0_12 = arith.constant 0 : index
    %c0_13 = arith.constant 0 : index
    %c0_14 = arith.constant 0 : index
    %27 = vector.load %arg6[%c0_12, %c0_13, %c0_14] : memref<4x32x32xf32, #tpu.memory_space<vmem>>, vector<1x32x32xf32>
    %28 = vector.shape_cast %27 : vector<1x32x32xf32> to vector<32x32xf32>
    %29 = vector.extract_strided_slice %26 {offsets = [0, 0], sizes = [16, 8], strides = [1, 1]} : vector<64x8xf32> to vector<16x8xf32>
    %30 = vector.extract_strided_slice %28 {offsets = [0, 0], sizes = [8, 32], strides = [1, 1]} : vector<32x32xf32> to vector<8x32xf32>
    %cst_15 = arith.constant dense<0.000000e+00> : vector<16x32xf32>
    %31 = tpu.matmul %29, %30, %cst_15 {dimension_numbers = #tpu.dot_dimension_numbers<[1], [0], [0], [1], [0, 0, 1, 1], [], []>} : vector<16x8xf32>, vector<8x32xf32>, vector<16x32xf32> -> vector<16x32xf32>
    %32 = vector.extract_strided_slice %26 {offsets = [16, 0], sizes = [16, 8], strides = [1, 1]} : vector<64x8xf32> to vector<16x8xf32>
    %33 = vector.extract_strided_slice %28 {offsets = [8, 0], sizes = [8, 32], strides = [1, 1]} : vector<32x32xf32> to vector<8x32xf32>
    %cst_16 = arith.constant dense<0.000000e+00> : vector<16x32xf32>
    %34 = tpu.matmul %32, %33, %cst_16 {dimension_numbers = #tpu.dot_dimension_numbers<[1], [0], [0], [1], [0, 0, 1, 1], [], []>} : vector<16x8xf32>, vector<8x32xf32>, vector<16x32xf32> -> vector<16x32xf32>
    %35 = arith.addf %31, %34 : vector<16x32xf32>
    %36 = vector.extract_strided_slice %26 {offsets = [32, 0], sizes = [16, 8], strides = [1, 1]} : vector<64x8xf32> to vector<16x8xf32>
    %37 = vector.extract_strided_slice %28 {offsets = [16, 0], sizes = [8, 32], strides = [1, 1]} : vector<32x32xf32> to vector<8x32xf32>
    %cst_17 = arith.constant dense<0.000000e+00> : vector<16x32xf32>
    %38 = tpu.matmul %36, %37, %cst_17 {dimension_numbers = #tpu.dot_dimension_numbers<[1], [0], [0], [1], [0, 0, 1, 1], [], []>} : vector<16x8xf32>, vector<8x32xf32>, vector<16x32xf32> -> vector<16x32xf32>
    %39 = arith.addf %35, %38 : vector<16x32xf32>
    %40 = vector.extract_strided_slice %26 {offsets = [48, 0], sizes = [16, 8], strides = [1, 1]} : vector<64x8xf32> to vector<16x8xf32>
    %41 = vector.extract_strided_slice %28 {offsets = [24, 0], sizes = [8, 32], strides = [1, 1]} : vector<32x32xf32> to vector<8x32xf32>
    %cst_18 = arith.constant dense<0.000000e+00> : vector<16x32xf32>
    %42 = tpu.matmul %40, %41, %cst_18 {dimension_numbers = #tpu.dot_dimension_numbers<[1], [0], [0], [1], [0, 0, 1, 1], [], []>} : vector<16x8xf32>, vector<8x32xf32>, vector<16x32xf32> -> vector<16x32xf32>
    %43 = arith.addf %39, %42 : vector<16x32xf32>
    %c0_19 = arith.constant 0 : index
    %c0_20 = arith.constant 0 : index
    %44 = vector.load %arg10[%c0_19, %c0_20] : memref<18x32xf32, #tpu.memory_space<vmem>>, vector<1x32xf32>
    %45 = vector.broadcast %44 : vector<1x32xf32> to vector<16x32xf32>
    %46 = arith.addf %43, %45 : vector<16x32xf32>
    %47 = arith.addf %46, %0 : vector<16x32xf32>
    %cst_21 = arith.constant dense<0.000000e+00> : vector<16xf32>
    %48 = vector.multi_reduction <add>, %47, %cst_21 [1] : vector<16x32xf32> to vector<16xf32>
    %49 = vector.shape_cast %48 : vector<16xf32> to vector<16x1xf32>
    %cst_22 = arith.constant 3.200000e+01 : f32
    %50 = vector.broadcast %cst_22 : f32 to vector<16x1xf32>
    %51 = arith.divf %49, %50 : vector<16x1xf32>
    %52 = vector.broadcast %51 : vector<16x1xf32> to vector<16x32xf32>
    %53 = arith.subf %47, %52 : vector<16x32xf32>
    %54 = arith.mulf %53, %53 : vector<16x32xf32>
    %cst_23 = arith.constant dense<0.000000e+00> : vector<16xf32>
    %55 = vector.multi_reduction <add>, %54, %cst_23 [1] : vector<16x32xf32> to vector<16xf32>
    %56 = vector.shape_cast %55 : vector<16xf32> to vector<16x1xf32>
    %cst_24 = arith.constant 3.200000e+01 : f32
    %57 = vector.broadcast %cst_24 : f32 to vector<16x1xf32>
    %58 = arith.divf %56, %57 : vector<16x1xf32>
    %cst_25 = arith.constant 9.99999974E-6 : f32
    %59 = vector.broadcast %cst_25 : f32 to vector<16x1xf32>
    %60 = arith.addf %58, %59 : vector<16x1xf32>
    %61 = math.rsqrt %60 : vector<16x1xf32>
    %62 = vector.broadcast %51 : vector<16x1xf32> to vector<16x32xf32>
    %63 = arith.subf %47, %62 : vector<16x32xf32>
    %64 = vector.broadcast %61 : vector<16x1xf32> to vector<16x32xf32>
    %65 = arith.mulf %63, %64 : vector<16x32xf32>
    %c2 = arith.constant 2 : index
    %c0_26 = arith.constant 0 : index
    %66 = vector.load %arg10[%c2, %c0_26] : memref<18x32xf32, #tpu.memory_space<vmem>>, vector<1x32xf32>
    %67 = vector.broadcast %66 : vector<1x32xf32> to vector<16x32xf32>
    %68 = arith.mulf %65, %67 : vector<16x32xf32>
    %c3 = arith.constant 3 : index
    %c0_27 = arith.constant 0 : index
    %69 = vector.load %arg10[%c3, %c0_27] : memref<18x32xf32, #tpu.memory_space<vmem>>, vector<1x32xf32>
    %70 = vector.broadcast %69 : vector<1x32xf32> to vector<16x32xf32>
    %71 = arith.addf %68, %70 : vector<16x32xf32>
    %72 = vector.extract_strided_slice %71 {offsets = [0, 0], sizes = [16, 8], strides = [1, 1]} : vector<16x32xf32> to vector<16x8xf32>
    %73 = vector.extract_strided_slice %71 {offsets = [0, 8], sizes = [16, 8], strides = [1, 1]} : vector<16x32xf32> to vector<16x8xf32>
    %74 = vector.extract_strided_slice %71 {offsets = [0, 16], sizes = [16, 8], strides = [1, 1]} : vector<16x32xf32> to vector<16x8xf32>
    %75 = vector.extract_strided_slice %71 {offsets = [0, 24], sizes = [16, 8], strides = [1, 1]} : vector<16x32xf32> to vector<16x8xf32>
    %76 = tpu.concatenate %72, %73, %74, %75 in 0 : vector<16x8xf32>, vector<16x8xf32>, vector<16x8xf32>, vector<16x8xf32> -> vector<64x8xf32>
    %cst_28 = arith.constant dense<0.000000e+00> : vector<64x32xf32>
    %77 = tpu.matmul %76, %4, %cst_28 {dimension_numbers = #tpu.dot_dimension_numbers<[1], [0], [0], [1], [0, 0, 1, 1], [], []>} : vector<64x8xf32>, vector<8x32xf32>, vector<64x32xf32> -> vector<64x32xf32>
    %78 = vector.extract_strided_slice %77 {offsets = [0, 24], sizes = [64, 8], strides = [1, 1]} : vector<64x32xf32> to vector<64x8xf32>
    %c0_29 = arith.constant 0 : index
    %c0_30 = arith.constant 0 : index
    %c0_31 = arith.constant 0 : index
    %79 = vector.load %arg2[%c0_29, %c0_30, %c0_31] : memref<2x64x16xf32, #tpu.memory_space<vmem>>, vector<1x64x16xf32>
    %80 = vector.shape_cast %79 : vector<1x64x16xf32> to vector<64x16xf32>
    %81 = vector.extract_strided_slice %80 {offsets = [0, 0], sizes = [64, 8], strides = [1, 1]} : vector<64x16xf32> to vector<64x8xf32>
    %82 = vector.extract_strided_slice %80 {offsets = [0, 8], sizes = [64, 8], strides = [1, 1]} : vector<64x16xf32> to vector<64x8xf32>
    %cst_32 = arith.constant dense<0.000000e+00> : vector<64x64xf32>
    %83 = tpu.matmul %78, %81, %cst_32 {dimension_numbers = #tpu.dot_dimension_numbers<[1], [1], [0], [0], [0, 0, 1, 0], [], []>} : vector<64x8xf32>, vector<64x8xf32>, vector<64x64xf32> -> vector<64x64xf32>
    %84 = arith.addf %83, %2 : vector<64x64xf32>
    %cst_33 = arith.constant dense<0xFF800000> : vector<64xf32>
    %85 = vector.multi_reduction <maximumf>, %84, %cst_33 [1] : vector<64x64xf32> to vector<64xf32>
    %86 = vector.shape_cast %85 : vector<64xf32> to vector<64x1xf32>
    %87 = vector.broadcast %86 : vector<64x1xf32> to vector<64x64xf32>
    %88 = arith.subf %84, %87 : vector<64x64xf32>
    %89 = math.exp %88 : vector<64x64xf32>
    %cst_34 = arith.constant dense<0.000000e+00> : vector<64xf32>
    %90 = vector.multi_reduction <add>, %89, %cst_34 [1] : vector<64x64xf32> to vector<64xf32>
    %91 = vector.shape_cast %90 : vector<64xf32> to vector<64x1xf32>
    %92 = tpu.reciprocal %91 : vector<64x1xf32> -> vector<64x1xf32>
    %93 = vector.broadcast %92 : vector<64x1xf32> to vector<64x64xf32>
    %94 = arith.mulf %89, %93 : vector<64x64xf32>
    %cst_35 = arith.constant dense<0.000000e+00> : vector<64x8xf32>
    %95 = tpu.matmul %94, %82, %cst_35 {dimension_numbers = #tpu.dot_dimension_numbers<[1], [0], [0], [1], [0, 0, 1, 1], [], []>} : vector<64x64xf32>, vector<64x8xf32>, vector<64x8xf32> -> vector<64x8xf32>
    %c1 = arith.constant 1 : index
    %c0_36 = arith.constant 0 : index
    %c0_37 = arith.constant 0 : index
    %96 = vector.load %arg6[%c1, %c0_36, %c0_37] : memref<4x32x32xf32, #tpu.memory_space<vmem>>, vector<1x32x32xf32>
    %97 = vector.shape_cast %96 : vector<1x32x32xf32> to vector<32x32xf32>
    %98 = vector.extract_strided_slice %95 {offsets = [0, 0], sizes = [16, 8], strides = [1, 1]} : vector<64x8xf32> to vector<16x8xf32>
    %99 = vector.extract_strided_slice %97 {offsets = [0, 0], sizes = [8, 32], strides = [1, 1]} : vector<32x32xf32> to vector<8x32xf32>
    %cst_38 = arith.constant dense<0.000000e+00> : vector<16x32xf32>
    %100 = tpu.matmul %98, %99, %cst_38 {dimension_numbers = #tpu.dot_dimension_numbers<[1], [0], [0], [1], [0, 0, 1, 1], [], []>} : vector<16x8xf32>, vector<8x32xf32>, vector<16x32xf32> -> vector<16x32xf32>
    %101 = vector.extract_strided_slice %95 {offsets = [16, 0], sizes = [16, 8], strides = [1, 1]} : vector<64x8xf32> to vector<16x8xf32>
    %102 = vector.extract_strided_slice %97 {offsets = [8, 0], sizes = [8, 32], strides = [1, 1]} : vector<32x32xf32> to vector<8x32xf32>
    %cst_39 = arith.constant dense<0.000000e+00> : vector<16x32xf32>
    %103 = tpu.matmul %101, %102, %cst_39 {dimension_numbers = #tpu.dot_dimension_numbers<[1], [0], [0], [1], [0, 0, 1, 1], [], []>} : vector<16x8xf32>, vector<8x32xf32>, vector<16x32xf32> -> vector<16x32xf32>
    %104 = arith.addf %100, %103 : vector<16x32xf32>
    %105 = vector.extract_strided_slice %95 {offsets = [32, 0], sizes = [16, 8], strides = [1, 1]} : vector<64x8xf32> to vector<16x8xf32>
    %106 = vector.extract_strided_slice %97 {offsets = [16, 0], sizes = [8, 32], strides = [1, 1]} : vector<32x32xf32> to vector<8x32xf32>
    %cst_40 = arith.constant dense<0.000000e+00> : vector<16x32xf32>
    %107 = tpu.matmul %105, %106, %cst_40 {dimension_numbers = #tpu.dot_dimension_numbers<[1], [0], [0], [1], [0, 0, 1, 1], [], []>} : vector<16x8xf32>, vector<8x32xf32>, vector<16x32xf32> -> vector<16x32xf32>
    %108 = arith.addf %104, %107 : vector<16x32xf32>
    %109 = vector.extract_strided_slice %95 {offsets = [48, 0], sizes = [16, 8], strides = [1, 1]} : vector<64x8xf32> to vector<16x8xf32>
    %110 = vector.extract_strided_slice %97 {offsets = [24, 0], sizes = [8, 32], strides = [1, 1]} : vector<32x32xf32> to vector<8x32xf32>
    %cst_41 = arith.constant dense<0.000000e+00> : vector<16x32xf32>
    %111 = tpu.matmul %109, %110, %cst_41 {dimension_numbers = #tpu.dot_dimension_numbers<[1], [0], [0], [1], [0, 0, 1, 1], [], []>} : vector<16x8xf32>, vector<8x32xf32>, vector<16x32xf32> -> vector<16x32xf32>
    %112 = arith.addf %108, %111 : vector<16x32xf32>
    %c1_42 = arith.constant 1 : index
    %c0_43 = arith.constant 0 : index
    %113 = vector.load %arg10[%c1_42, %c0_43] : memref<18x32xf32, #tpu.memory_space<vmem>>, vector<1x32xf32>
    %114 = vector.broadcast %113 : vector<1x32xf32> to vector<16x32xf32>
    %115 = arith.addf %112, %114 : vector<16x32xf32>
    %116 = arith.addf %115, %71 : vector<16x32xf32>
    %cst_44 = arith.constant dense<0.000000e+00> : vector<16xf32>
    %117 = vector.multi_reduction <add>, %116, %cst_44 [1] : vector<16x32xf32> to vector<16xf32>
    %118 = vector.shape_cast %117 : vector<16xf32> to vector<16x1xf32>
    %cst_45 = arith.constant 3.200000e+01 : f32
    %119 = vector.broadcast %cst_45 : f32 to vector<16x1xf32>
    %120 = arith.divf %118, %119 : vector<16x1xf32>
    %121 = vector.broadcast %120 : vector<16x1xf32> to vector<16x32xf32>
    %122 = arith.subf %116, %121 : vector<16x32xf32>
    %123 = arith.mulf %122, %122 : vector<16x32xf32>
    %cst_46 = arith.constant dense<0.000000e+00> : vector<16xf32>
    %124 = vector.multi_reduction <add>, %123, %cst_46 [1] : vector<16x32xf32> to vector<16xf32>
    %125 = vector.shape_cast %124 : vector<16xf32> to vector<16x1xf32>
    %cst_47 = arith.constant 3.200000e+01 : f32
    %126 = vector.broadcast %cst_47 : f32 to vector<16x1xf32>
    %127 = arith.divf %125, %126 : vector<16x1xf32>
    %cst_48 = arith.constant 9.99999974E-6 : f32
    %128 = vector.broadcast %cst_48 : f32 to vector<16x1xf32>
    %129 = arith.addf %127, %128 : vector<16x1xf32>
    %130 = math.rsqrt %129 : vector<16x1xf32>
    %131 = vector.broadcast %120 : vector<16x1xf32> to vector<16x32xf32>
    %132 = arith.subf %116, %131 : vector<16x32xf32>
    %133 = vector.broadcast %130 : vector<16x1xf32> to vector<16x32xf32>
    %134 = arith.mulf %132, %133 : vector<16x32xf32>
    %c4 = arith.constant 4 : index
    %c0_49 = arith.constant 0 : index
    %135 = vector.load %arg10[%c4, %c0_49] : memref<18x32xf32, #tpu.memory_space<vmem>>, vector<1x32xf32>
    %136 = vector.broadcast %135 : vector<1x32xf32> to vector<16x32xf32>
    %137 = arith.mulf %134, %136 : vector<16x32xf32>
    %c5 = arith.constant 5 : index
    %c0_50 = arith.constant 0 : index
    %138 = vector.load %arg10[%c5, %c0_50] : memref<18x32xf32, #tpu.memory_space<vmem>>, vector<1x32xf32>
    %139 = vector.broadcast %138 : vector<1x32xf32> to vector<16x32xf32>
    %140 = arith.addf %137, %139 : vector<16x32xf32>
    %c0_51 = arith.constant 0 : index
    %c0_52 = arith.constant 0 : index
    %c0_53 = arith.constant 0 : index
    %141 = vector.load %arg7[%c0_51, %c0_52, %c0_53] : memref<2x32x128xf32, #tpu.memory_space<vmem>>, vector<1x32x128xf32>
    %142 = vector.shape_cast %141 : vector<1x32x128xf32> to vector<32x128xf32>
    %cst_54 = arith.constant dense<0.000000e+00> : vector<16x128xf32>
    %143 = tpu.matmul %140, %142, %cst_54 {dimension_numbers = #tpu.dot_dimension_numbers<[1], [0], [0], [1], [0, 0, 1, 1], [], []>} : vector<16x32xf32>, vector<32x128xf32>, vector<16x128xf32> -> vector<16x128xf32>
    %c0_55 = arith.constant 0 : index
    %c0_56 = arith.constant 0 : index
    %144 = vector.load %arg11[%c0_55, %c0_56] : memref<3x128xf32, #tpu.memory_space<vmem>>, vector<1x128xf32>
    %145 = vector.broadcast %144 : vector<1x128xf32> to vector<16x128xf32>
    %146 = arith.addf %143, %145 : vector<16x128xf32>
    %cst_57 = arith.constant 0.000000e+00 : f32
    %147 = vector.broadcast %cst_57 : f32 to vector<16x128xf32>
    %148 = arith.maximumf %146, %147 : vector<16x128xf32>
    %c0_58 = arith.constant 0 : index
    %c0_59 = arith.constant 0 : index
    %c0_60 = arith.constant 0 : index
    %149 = vector.load %arg8[%c0_58, %c0_59, %c0_60] : memref<2x128x32xf32, #tpu.memory_space<vmem>>, vector<1x128x32xf32>
    %150 = vector.shape_cast %149 : vector<1x128x32xf32> to vector<128x32xf32>
    %cst_61 = arith.constant dense<0.000000e+00> : vector<16x32xf32>
    %151 = tpu.matmul %148, %150, %cst_61 {dimension_numbers = #tpu.dot_dimension_numbers<[1], [0], [0], [1], [0, 0, 1, 1], [], []>} : vector<16x128xf32>, vector<128x32xf32>, vector<16x32xf32> -> vector<16x32xf32>
    %c8 = arith.constant 8 : index
    %c0_62 = arith.constant 0 : index
    %152 = vector.load %arg10[%c8, %c0_62] : memref<18x32xf32, #tpu.memory_space<vmem>>, vector<1x32xf32>
    %153 = vector.broadcast %152 : vector<1x32xf32> to vector<16x32xf32>
    %154 = arith.addf %151, %153 : vector<16x32xf32>
    %155 = arith.addf %154, %140 : vector<16x32xf32>
    %cst_63 = arith.constant dense<0.000000e+00> : vector<16xf32>
    %156 = vector.multi_reduction <add>, %155, %cst_63 [1] : vector<16x32xf32> to vector<16xf32>
    %157 = vector.shape_cast %156 : vector<16xf32> to vector<16x1xf32>
    %cst_64 = arith.constant 3.200000e+01 : f32
    %158 = vector.broadcast %cst_64 : f32 to vector<16x1xf32>
    %159 = arith.divf %157, %158 : vector<16x1xf32>
    %160 = vector.broadcast %159 : vector<16x1xf32> to vector<16x32xf32>
    %161 = arith.subf %155, %160 : vector<16x32xf32>
    %162 = arith.mulf %161, %161 : vector<16x32xf32>
    %cst_65 = arith.constant dense<0.000000e+00> : vector<16xf32>
    %163 = vector.multi_reduction <add>, %162, %cst_65 [1] : vector<16x32xf32> to vector<16xf32>
    %164 = vector.shape_cast %163 : vector<16xf32> to vector<16x1xf32>
    %cst_66 = arith.constant 3.200000e+01 : f32
    %165 = vector.broadcast %cst_66 : f32 to vector<16x1xf32>
    %166 = arith.divf %164, %165 : vector<16x1xf32>
    %cst_67 = arith.constant 9.99999974E-6 : f32
    %167 = vector.broadcast %cst_67 : f32 to vector<16x1xf32>
    %168 = arith.addf %166, %167 : vector<16x1xf32>
    %169 = math.rsqrt %168 : vector<16x1xf32>
    %170 = vector.broadcast %159 : vector<16x1xf32> to vector<16x32xf32>
    %171 = arith.subf %155, %170 : vector<16x32xf32>
    %172 = vector.broadcast %169 : vector<16x1xf32> to vector<16x32xf32>
    %173 = arith.mulf %171, %172 : vector<16x32xf32>
    %c6 = arith.constant 6 : index
    %c0_68 = arith.constant 0 : index
    %174 = vector.load %arg10[%c6, %c0_68] : memref<18x32xf32, #tpu.memory_space<vmem>>, vector<1x32xf32>
    %175 = vector.broadcast %174 : vector<1x32xf32> to vector<16x32xf32>
    %176 = arith.mulf %173, %175 : vector<16x32xf32>
    %c7 = arith.constant 7 : index
    %c0_69 = arith.constant 0 : index
    %177 = vector.load %arg10[%c7, %c0_69] : memref<18x32xf32, #tpu.memory_space<vmem>>, vector<1x32xf32>
    %178 = vector.broadcast %177 : vector<1x32xf32> to vector<16x32xf32>
    %179 = arith.addf %176, %178 : vector<16x32xf32>
    %c1_70 = arith.constant 1 : index
    %c0_71 = arith.constant 0 : index
    %c0_72 = arith.constant 0 : index
    %180 = vector.load %arg5[%c1_70, %c0_71, %c0_72] : memref<2x8x32xf32, #tpu.memory_space<vmem>>, vector<1x8x32xf32>
    %181 = vector.shape_cast %180 : vector<1x8x32xf32> to vector<8x32xf32>
    %182 = vector.extract_strided_slice %179 {offsets = [0, 0], sizes = [16, 8], strides = [1, 1]} : vector<16x32xf32> to vector<16x8xf32>
    %183 = vector.extract_strided_slice %179 {offsets = [0, 8], sizes = [16, 8], strides = [1, 1]} : vector<16x32xf32> to vector<16x8xf32>
    %184 = vector.extract_strided_slice %179 {offsets = [0, 16], sizes = [16, 8], strides = [1, 1]} : vector<16x32xf32> to vector<16x8xf32>
    %185 = vector.extract_strided_slice %179 {offsets = [0, 24], sizes = [16, 8], strides = [1, 1]} : vector<16x32xf32> to vector<16x8xf32>
    %186 = tpu.concatenate %182, %183, %184, %185 in 0 : vector<16x8xf32>, vector<16x8xf32>, vector<16x8xf32>, vector<16x8xf32> -> vector<64x8xf32>
    %cst_73 = arith.constant dense<0.000000e+00> : vector<64x32xf32>
    %187 = tpu.matmul %186, %181, %cst_73 {dimension_numbers = #tpu.dot_dimension_numbers<[1], [0], [0], [1], [0, 0, 1, 1], [], []>} : vector<64x8xf32>, vector<8x32xf32>, vector<64x32xf32> -> vector<64x32xf32>
    %188 = vector.extract_strided_slice %187 {offsets = [0, 0], sizes = [64, 8], strides = [1, 1]} : vector<64x32xf32> to vector<64x8xf32>
    %189 = vector.extract_strided_slice %187 {offsets = [0, 8], sizes = [64, 8], strides = [1, 1]} : vector<64x32xf32> to vector<64x8xf32>
    %190 = vector.extract_strided_slice %187 {offsets = [0, 16], sizes = [64, 8], strides = [1, 1]} : vector<64x32xf32> to vector<64x8xf32>
    %cst_74 = arith.constant dense<0.000000e+00> : vector<64x64xf32>
    %191 = tpu.matmul %188, %189, %cst_74 {dimension_numbers = #tpu.dot_dimension_numbers<[1], [1], [0], [0], [0, 0, 1, 0], [], []>} : vector<64x8xf32>, vector<64x8xf32>, vector<64x64xf32> -> vector<64x64xf32>
    %192 = arith.addf %191, %1 : vector<64x64xf32>
    %cst_75 = arith.constant dense<0xFF800000> : vector<64xf32>
    %193 = vector.multi_reduction <maximumf>, %192, %cst_75 [1] : vector<64x64xf32> to vector<64xf32>
    %194 = vector.shape_cast %193 : vector<64xf32> to vector<64x1xf32>
    %195 = vector.broadcast %194 : vector<64x1xf32> to vector<64x64xf32>
    %196 = arith.subf %192, %195 : vector<64x64xf32>
    %197 = math.exp %196 : vector<64x64xf32>
    %cst_76 = arith.constant dense<0.000000e+00> : vector<64xf32>
    %198 = vector.multi_reduction <add>, %197, %cst_76 [1] : vector<64x64xf32> to vector<64xf32>
    %199 = vector.shape_cast %198 : vector<64xf32> to vector<64x1xf32>
    %200 = tpu.reciprocal %199 : vector<64x1xf32> -> vector<64x1xf32>
    %201 = vector.broadcast %200 : vector<64x1xf32> to vector<64x64xf32>
    %202 = arith.mulf %197, %201 : vector<64x64xf32>
    %cst_77 = arith.constant dense<0.000000e+00> : vector<64x8xf32>
    %203 = tpu.matmul %202, %190, %cst_77 {dimension_numbers = #tpu.dot_dimension_numbers<[1], [0], [0], [1], [0, 0, 1, 1], [], []>} : vector<64x64xf32>, vector<64x8xf32>, vector<64x8xf32> -> vector<64x8xf32>
    %c2_78 = arith.constant 2 : index
    %c0_79 = arith.constant 0 : index
    %c0_80 = arith.constant 0 : index
    %204 = vector.load %arg6[%c2_78, %c0_79, %c0_80] : memref<4x32x32xf32, #tpu.memory_space<vmem>>, vector<1x32x32xf32>
    %205 = vector.shape_cast %204 : vector<1x32x32xf32> to vector<32x32xf32>
    %206 = vector.extract_strided_slice %203 {offsets = [0, 0], sizes = [16, 8], strides = [1, 1]} : vector<64x8xf32> to vector<16x8xf32>
    %207 = vector.extract_strided_slice %205 {offsets = [0, 0], sizes = [8, 32], strides = [1, 1]} : vector<32x32xf32> to vector<8x32xf32>
    %cst_81 = arith.constant dense<0.000000e+00> : vector<16x32xf32>
    %208 = tpu.matmul %206, %207, %cst_81 {dimension_numbers = #tpu.dot_dimension_numbers<[1], [0], [0], [1], [0, 0, 1, 1], [], []>} : vector<16x8xf32>, vector<8x32xf32>, vector<16x32xf32> -> vector<16x32xf32>
    %209 = vector.extract_strided_slice %203 {offsets = [16, 0], sizes = [16, 8], strides = [1, 1]} : vector<64x8xf32> to vector<16x8xf32>
    %210 = vector.extract_strided_slice %205 {offsets = [8, 0], sizes = [8, 32], strides = [1, 1]} : vector<32x32xf32> to vector<8x32xf32>
    %cst_82 = arith.constant dense<0.000000e+00> : vector<16x32xf32>
    %211 = tpu.matmul %209, %210, %cst_82 {dimension_numbers = #tpu.dot_dimension_numbers<[1], [0], [0], [1], [0, 0, 1, 1], [], []>} : vector<16x8xf32>, vector<8x32xf32>, vector<16x32xf32> -> vector<16x32xf32>
    %212 = arith.addf %208, %211 : vector<16x32xf32>
    %213 = vector.extract_strided_slice %203 {offsets = [32, 0], sizes = [16, 8], strides = [1, 1]} : vector<64x8xf32> to vector<16x8xf32>
    %214 = vector.extract_strided_slice %205 {offsets = [16, 0], sizes = [8, 32], strides = [1, 1]} : vector<32x32xf32> to vector<8x32xf32>
    %cst_83 = arith.constant dense<0.000000e+00> : vector<16x32xf32>
    %215 = tpu.matmul %213, %214, %cst_83 {dimension_numbers = #tpu.dot_dimension_numbers<[1], [0], [0], [1], [0, 0, 1, 1], [], []>} : vector<16x8xf32>, vector<8x32xf32>, vector<16x32xf32> -> vector<16x32xf32>
    %216 = arith.addf %212, %215 : vector<16x32xf32>
    %217 = vector.extract_strided_slice %203 {offsets = [48, 0], sizes = [16, 8], strides = [1, 1]} : vector<64x8xf32> to vector<16x8xf32>
    %218 = vector.extract_strided_slice %205 {offsets = [24, 0], sizes = [8, 32], strides = [1, 1]} : vector<32x32xf32> to vector<8x32xf32>
    %cst_84 = arith.constant dense<0.000000e+00> : vector<16x32xf32>
    %219 = tpu.matmul %217, %218, %cst_84 {dimension_numbers = #tpu.dot_dimension_numbers<[1], [0], [0], [1], [0, 0, 1, 1], [], []>} : vector<16x8xf32>, vector<8x32xf32>, vector<16x32xf32> -> vector<16x32xf32>
    %220 = arith.addf %216, %219 : vector<16x32xf32>
    %c9 = arith.constant 9 : index
    %c0_85 = arith.constant 0 : index
    %221 = vector.load %arg10[%c9, %c0_85] : memref<18x32xf32, #tpu.memory_space<vmem>>, vector<1x32xf32>
    %222 = vector.broadcast %221 : vector<1x32xf32> to vector<16x32xf32>
    %223 = arith.addf %220, %222 : vector<16x32xf32>
    %224 = arith.addf %223, %179 : vector<16x32xf32>
    %cst_86 = arith.constant dense<0.000000e+00> : vector<16xf32>
    %225 = vector.multi_reduction <add>, %224, %cst_86 [1] : vector<16x32xf32> to vector<16xf32>
    %226 = vector.shape_cast %225 : vector<16xf32> to vector<16x1xf32>
    %cst_87 = arith.constant 3.200000e+01 : f32
    %227 = vector.broadcast %cst_87 : f32 to vector<16x1xf32>
    %228 = arith.divf %226, %227 : vector<16x1xf32>
    %229 = vector.broadcast %228 : vector<16x1xf32> to vector<16x32xf32>
    %230 = arith.subf %224, %229 : vector<16x32xf32>
    %231 = arith.mulf %230, %230 : vector<16x32xf32>
    %cst_88 = arith.constant dense<0.000000e+00> : vector<16xf32>
    %232 = vector.multi_reduction <add>, %231, %cst_88 [1] : vector<16x32xf32> to vector<16xf32>
    %233 = vector.shape_cast %232 : vector<16xf32> to vector<16x1xf32>
    %cst_89 = arith.constant 3.200000e+01 : f32
    %234 = vector.broadcast %cst_89 : f32 to vector<16x1xf32>
    %235 = arith.divf %233, %234 : vector<16x1xf32>
    %cst_90 = arith.constant 9.99999974E-6 : f32
    %236 = vector.broadcast %cst_90 : f32 to vector<16x1xf32>
    %237 = arith.addf %235, %236 : vector<16x1xf32>
    %238 = math.rsqrt %237 : vector<16x1xf32>
    %239 = vector.broadcast %228 : vector<16x1xf32> to vector<16x32xf32>
    %240 = arith.subf %224, %239 : vector<16x32xf32>
    %241 = vector.broadcast %238 : vector<16x1xf32> to vector<16x32xf32>
    %242 = arith.mulf %240, %241 : vector<16x32xf32>
    %c11 = arith.constant 11 : index
    %c0_91 = arith.constant 0 : index
    %243 = vector.load %arg10[%c11, %c0_91] : memref<18x32xf32, #tpu.memory_space<vmem>>, vector<1x32xf32>
    %244 = vector.broadcast %243 : vector<1x32xf32> to vector<16x32xf32>
    %245 = arith.mulf %242, %244 : vector<16x32xf32>
    %c12 = arith.constant 12 : index
    %c0_92 = arith.constant 0 : index
    %246 = vector.load %arg10[%c12, %c0_92] : memref<18x32xf32, #tpu.memory_space<vmem>>, vector<1x32xf32>
    %247 = vector.broadcast %246 : vector<1x32xf32> to vector<16x32xf32>
    %248 = arith.addf %245, %247 : vector<16x32xf32>
    %249 = vector.extract_strided_slice %248 {offsets = [0, 0], sizes = [16, 8], strides = [1, 1]} : vector<16x32xf32> to vector<16x8xf32>
    %250 = vector.extract_strided_slice %248 {offsets = [0, 8], sizes = [16, 8], strides = [1, 1]} : vector<16x32xf32> to vector<16x8xf32>
    %251 = vector.extract_strided_slice %248 {offsets = [0, 16], sizes = [16, 8], strides = [1, 1]} : vector<16x32xf32> to vector<16x8xf32>
    %252 = vector.extract_strided_slice %248 {offsets = [0, 24], sizes = [16, 8], strides = [1, 1]} : vector<16x32xf32> to vector<16x8xf32>
    %253 = tpu.concatenate %249, %250, %251, %252 in 0 : vector<16x8xf32>, vector<16x8xf32>, vector<16x8xf32>, vector<16x8xf32> -> vector<64x8xf32>
    %cst_93 = arith.constant dense<0.000000e+00> : vector<64x32xf32>
    %254 = tpu.matmul %253, %181, %cst_93 {dimension_numbers = #tpu.dot_dimension_numbers<[1], [0], [0], [1], [0, 0, 1, 1], [], []>} : vector<64x8xf32>, vector<8x32xf32>, vector<64x32xf32> -> vector<64x32xf32>
    %255 = vector.extract_strided_slice %254 {offsets = [0, 24], sizes = [64, 8], strides = [1, 1]} : vector<64x32xf32> to vector<64x8xf32>
    %c1_94 = arith.constant 1 : index
    %c0_95 = arith.constant 0 : index
    %c0_96 = arith.constant 0 : index
    %256 = vector.load %arg2[%c1_94, %c0_95, %c0_96] : memref<2x64x16xf32, #tpu.memory_space<vmem>>, vector<1x64x16xf32>
    %257 = vector.shape_cast %256 : vector<1x64x16xf32> to vector<64x16xf32>
    %258 = vector.extract_strided_slice %257 {offsets = [0, 0], sizes = [64, 8], strides = [1, 1]} : vector<64x16xf32> to vector<64x8xf32>
    %259 = vector.extract_strided_slice %257 {offsets = [0, 8], sizes = [64, 8], strides = [1, 1]} : vector<64x16xf32> to vector<64x8xf32>
    %cst_97 = arith.constant dense<0.000000e+00> : vector<64x64xf32>
    %260 = tpu.matmul %255, %258, %cst_97 {dimension_numbers = #tpu.dot_dimension_numbers<[1], [1], [0], [0], [0, 0, 1, 0], [], []>} : vector<64x8xf32>, vector<64x8xf32>, vector<64x64xf32> -> vector<64x64xf32>
    %261 = arith.addf %260, %2 : vector<64x64xf32>
    %cst_98 = arith.constant dense<0xFF800000> : vector<64xf32>
    %262 = vector.multi_reduction <maximumf>, %261, %cst_98 [1] : vector<64x64xf32> to vector<64xf32>
    %263 = vector.shape_cast %262 : vector<64xf32> to vector<64x1xf32>
    %264 = vector.broadcast %263 : vector<64x1xf32> to vector<64x64xf32>
    %265 = arith.subf %261, %264 : vector<64x64xf32>
    %266 = math.exp %265 : vector<64x64xf32>
    %cst_99 = arith.constant dense<0.000000e+00> : vector<64xf32>
    %267 = vector.multi_reduction <add>, %266, %cst_99 [1] : vector<64x64xf32> to vector<64xf32>
    %268 = vector.shape_cast %267 : vector<64xf32> to vector<64x1xf32>
    %269 = tpu.reciprocal %268 : vector<64x1xf32> -> vector<64x1xf32>
    %270 = vector.broadcast %269 : vector<64x1xf32> to vector<64x64xf32>
    %271 = arith.mulf %266, %270 : vector<64x64xf32>
    %cst_100 = arith.constant dense<0.000000e+00> : vector<64x8xf32>
    %272 = tpu.matmul %271, %259, %cst_100 {dimension_numbers = #tpu.dot_dimension_numbers<[1], [0], [0], [1], [0, 0, 1, 1], [], []>} : vector<64x64xf32>, vector<64x8xf32>, vector<64x8xf32> -> vector<64x8xf32>
    %c3_101 = arith.constant 3 : index
    %c0_102 = arith.constant 0 : index
    %c0_103 = arith.constant 0 : index
    %273 = vector.load %arg6[%c3_101, %c0_102, %c0_103] : memref<4x32x32xf32, #tpu.memory_space<vmem>>, vector<1x32x32xf32>
    %274 = vector.shape_cast %273 : vector<1x32x32xf32> to vector<32x32xf32>
    %275 = vector.extract_strided_slice %272 {offsets = [0, 0], sizes = [16, 8], strides = [1, 1]} : vector<64x8xf32> to vector<16x8xf32>
    %276 = vector.extract_strided_slice %274 {offsets = [0, 0], sizes = [8, 32], strides = [1, 1]} : vector<32x32xf32> to vector<8x32xf32>
    %cst_104 = arith.constant dense<0.000000e+00> : vector<16x32xf32>
    %277 = tpu.matmul %275, %276, %cst_104 {dimension_numbers = #tpu.dot_dimension_numbers<[1], [0], [0], [1], [0, 0, 1, 1], [], []>} : vector<16x8xf32>, vector<8x32xf32>, vector<16x32xf32> -> vector<16x32xf32>
    %278 = vector.extract_strided_slice %272 {offsets = [16, 0], sizes = [16, 8], strides = [1, 1]} : vector<64x8xf32> to vector<16x8xf32>
    %279 = vector.extract_strided_slice %274 {offsets = [8, 0], sizes = [8, 32], strides = [1, 1]} : vector<32x32xf32> to vector<8x32xf32>
    %cst_105 = arith.constant dense<0.000000e+00> : vector<16x32xf32>
    %280 = tpu.matmul %278, %279, %cst_105 {dimension_numbers = #tpu.dot_dimension_numbers<[1], [0], [0], [1], [0, 0, 1, 1], [], []>} : vector<16x8xf32>, vector<8x32xf32>, vector<16x32xf32> -> vector<16x32xf32>
    %281 = arith.addf %277, %280 : vector<16x32xf32>
    %282 = vector.extract_strided_slice %272 {offsets = [32, 0], sizes = [16, 8], strides = [1, 1]} : vector<64x8xf32> to vector<16x8xf32>
    %283 = vector.extract_strided_slice %274 {offsets = [16, 0], sizes = [8, 32], strides = [1, 1]} : vector<32x32xf32> to vector<8x32xf32>
    %cst_106 = arith.constant dense<0.000000e+00> : vector<16x32xf32>
    %284 = tpu.matmul %282, %283, %cst_106 {dimension_numbers = #tpu.dot_dimension_numbers<[1], [0], [0], [1], [0, 0, 1, 1], [], []>} : vector<16x8xf32>, vector<8x32xf32>, vector<16x32xf32> -> vector<16x32xf32>
    %285 = arith.addf %281, %284 : vector<16x32xf32>
    %286 = vector.extract_strided_slice %272 {offsets = [48, 0], sizes = [16, 8], strides = [1, 1]} : vector<64x8xf32> to vector<16x8xf32>
    %287 = vector.extract_strided_slice %274 {offsets = [24, 0], sizes = [8, 32], strides = [1, 1]} : vector<32x32xf32> to vector<8x32xf32>
    %cst_107 = arith.constant dense<0.000000e+00> : vector<16x32xf32>
    %288 = tpu.matmul %286, %287, %cst_107 {dimension_numbers = #tpu.dot_dimension_numbers<[1], [0], [0], [1], [0, 0, 1, 1], [], []>} : vector<16x8xf32>, vector<8x32xf32>, vector<16x32xf32> -> vector<16x32xf32>
    %289 = arith.addf %285, %288 : vector<16x32xf32>
    %c10 = arith.constant 10 : index
    %c0_108 = arith.constant 0 : index
    %290 = vector.load %arg10[%c10, %c0_108] : memref<18x32xf32, #tpu.memory_space<vmem>>, vector<1x32xf32>
    %291 = vector.broadcast %290 : vector<1x32xf32> to vector<16x32xf32>
    %292 = arith.addf %289, %291 : vector<16x32xf32>
    %293 = arith.addf %292, %248 : vector<16x32xf32>
    %cst_109 = arith.constant dense<0.000000e+00> : vector<16xf32>
    %294 = vector.multi_reduction <add>, %293, %cst_109 [1] : vector<16x32xf32> to vector<16xf32>
    %295 = vector.shape_cast %294 : vector<16xf32> to vector<16x1xf32>
    %cst_110 = arith.constant 3.200000e+01 : f32
    %296 = vector.broadcast %cst_110 : f32 to vector<16x1xf32>
    %297 = arith.divf %295, %296 : vector<16x1xf32>
    %298 = vector.broadcast %297 : vector<16x1xf32> to vector<16x32xf32>
    %299 = arith.subf %293, %298 : vector<16x32xf32>
    %300 = arith.mulf %299, %299 : vector<16x32xf32>
    %cst_111 = arith.constant dense<0.000000e+00> : vector<16xf32>
    %301 = vector.multi_reduction <add>, %300, %cst_111 [1] : vector<16x32xf32> to vector<16xf32>
    %302 = vector.shape_cast %301 : vector<16xf32> to vector<16x1xf32>
    %cst_112 = arith.constant 3.200000e+01 : f32
    %303 = vector.broadcast %cst_112 : f32 to vector<16x1xf32>
    %304 = arith.divf %302, %303 : vector<16x1xf32>
    %cst_113 = arith.constant 9.99999974E-6 : f32
    %305 = vector.broadcast %cst_113 : f32 to vector<16x1xf32>
    %306 = arith.addf %304, %305 : vector<16x1xf32>
    %307 = math.rsqrt %306 : vector<16x1xf32>
    %308 = vector.broadcast %297 : vector<16x1xf32> to vector<16x32xf32>
    %309 = arith.subf %293, %308 : vector<16x32xf32>
    %310 = vector.broadcast %307 : vector<16x1xf32> to vector<16x32xf32>
    %311 = arith.mulf %309, %310 : vector<16x32xf32>
    %c13 = arith.constant 13 : index
    %c0_114 = arith.constant 0 : index
    %312 = vector.load %arg10[%c13, %c0_114] : memref<18x32xf32, #tpu.memory_space<vmem>>, vector<1x32xf32>
    %313 = vector.broadcast %312 : vector<1x32xf32> to vector<16x32xf32>
    %314 = arith.mulf %311, %313 : vector<16x32xf32>
    %c14 = arith.constant 14 : index
    %c0_115 = arith.constant 0 : index
    %315 = vector.load %arg10[%c14, %c0_115] : memref<18x32xf32, #tpu.memory_space<vmem>>, vector<1x32xf32>
    %316 = vector.broadcast %315 : vector<1x32xf32> to vector<16x32xf32>
    %317 = arith.addf %314, %316 : vector<16x32xf32>
    %c1_116 = arith.constant 1 : index
    %c0_117 = arith.constant 0 : index
    %c0_118 = arith.constant 0 : index
    %318 = vector.load %arg7[%c1_116, %c0_117, %c0_118] : memref<2x32x128xf32, #tpu.memory_space<vmem>>, vector<1x32x128xf32>
    %319 = vector.shape_cast %318 : vector<1x32x128xf32> to vector<32x128xf32>
    %cst_119 = arith.constant dense<0.000000e+00> : vector<16x128xf32>
    %320 = tpu.matmul %317, %319, %cst_119 {dimension_numbers = #tpu.dot_dimension_numbers<[1], [0], [0], [1], [0, 0, 1, 1], [], []>} : vector<16x32xf32>, vector<32x128xf32>, vector<16x128xf32> -> vector<16x128xf32>
    %c1_120 = arith.constant 1 : index
    %c0_121 = arith.constant 0 : index
    %321 = vector.load %arg11[%c1_120, %c0_121] : memref<3x128xf32, #tpu.memory_space<vmem>>, vector<1x128xf32>
    %322 = vector.broadcast %321 : vector<1x128xf32> to vector<16x128xf32>
    %323 = arith.addf %320, %322 : vector<16x128xf32>
    %cst_122 = arith.constant 0.000000e+00 : f32
    %324 = vector.broadcast %cst_122 : f32 to vector<16x128xf32>
    %325 = arith.maximumf %323, %324 : vector<16x128xf32>
    %c1_123 = arith.constant 1 : index
    %c0_124 = arith.constant 0 : index
    %c0_125 = arith.constant 0 : index
    %326 = vector.load %arg8[%c1_123, %c0_124, %c0_125] : memref<2x128x32xf32, #tpu.memory_space<vmem>>, vector<1x128x32xf32>
    %327 = vector.shape_cast %326 : vector<1x128x32xf32> to vector<128x32xf32>
    %cst_126 = arith.constant dense<0.000000e+00> : vector<16x32xf32>
    %328 = tpu.matmul %325, %327, %cst_126 {dimension_numbers = #tpu.dot_dimension_numbers<[1], [0], [0], [1], [0, 0, 1, 1], [], []>} : vector<16x128xf32>, vector<128x32xf32>, vector<16x32xf32> -> vector<16x32xf32>
    %c17 = arith.constant 17 : index
    %c0_127 = arith.constant 0 : index
    %329 = vector.load %arg10[%c17, %c0_127] : memref<18x32xf32, #tpu.memory_space<vmem>>, vector<1x32xf32>
    %330 = vector.broadcast %329 : vector<1x32xf32> to vector<16x32xf32>
    %331 = arith.addf %328, %330 : vector<16x32xf32>
    %332 = arith.addf %331, %317 : vector<16x32xf32>
    %cst_128 = arith.constant dense<0.000000e+00> : vector<16xf32>
    %333 = vector.multi_reduction <add>, %332, %cst_128 [1] : vector<16x32xf32> to vector<16xf32>
    %334 = vector.shape_cast %333 : vector<16xf32> to vector<16x1xf32>
    %cst_129 = arith.constant 3.200000e+01 : f32
    %335 = vector.broadcast %cst_129 : f32 to vector<16x1xf32>
    %336 = arith.divf %334, %335 : vector<16x1xf32>
    %337 = vector.broadcast %336 : vector<16x1xf32> to vector<16x32xf32>
    %338 = arith.subf %332, %337 : vector<16x32xf32>
    %339 = arith.mulf %338, %338 : vector<16x32xf32>
    %cst_130 = arith.constant dense<0.000000e+00> : vector<16xf32>
    %340 = vector.multi_reduction <add>, %339, %cst_130 [1] : vector<16x32xf32> to vector<16xf32>
    %341 = vector.shape_cast %340 : vector<16xf32> to vector<16x1xf32>
    %cst_131 = arith.constant 3.200000e+01 : f32
    %342 = vector.broadcast %cst_131 : f32 to vector<16x1xf32>
    %343 = arith.divf %341, %342 : vector<16x1xf32>
    %cst_132 = arith.constant 9.99999974E-6 : f32
    %344 = vector.broadcast %cst_132 : f32 to vector<16x1xf32>
    %345 = arith.addf %343, %344 : vector<16x1xf32>
    %346 = math.rsqrt %345 : vector<16x1xf32>
    %347 = vector.broadcast %336 : vector<16x1xf32> to vector<16x32xf32>
    %348 = arith.subf %332, %347 : vector<16x32xf32>
    %349 = vector.broadcast %346 : vector<16x1xf32> to vector<16x32xf32>
    %350 = arith.mulf %348, %349 : vector<16x32xf32>
    %c15 = arith.constant 15 : index
    %c0_133 = arith.constant 0 : index
    %351 = vector.load %arg10[%c15, %c0_133] : memref<18x32xf32, #tpu.memory_space<vmem>>, vector<1x32xf32>
    %352 = vector.broadcast %351 : vector<1x32xf32> to vector<16x32xf32>
    %353 = arith.mulf %350, %352 : vector<16x32xf32>
    %c16 = arith.constant 16 : index
    %c0_134 = arith.constant 0 : index
    %354 = vector.load %arg10[%c16, %c0_134] : memref<18x32xf32, #tpu.memory_space<vmem>>, vector<1x32xf32>
    %355 = vector.broadcast %354 : vector<1x32xf32> to vector<16x32xf32>
    %356 = arith.addf %353, %355 : vector<16x32xf32>
    %c0_135 = arith.constant 0 : index
    %c0_136 = arith.constant 0 : index
    %357 = vector.load %arg9[%c0_135, %c0_136] : memref<32x128xf32, #tpu.memory_space<vmem>>, vector<32x128xf32>
    %cst_137 = arith.constant dense<0.000000e+00> : vector<16x128xf32>
    %358 = tpu.matmul %356, %357, %cst_137 {dimension_numbers = #tpu.dot_dimension_numbers<[1], [0], [0], [1], [0, 0, 1, 1], [], []>} : vector<16x32xf32>, vector<32x128xf32>, vector<16x128xf32> -> vector<16x128xf32>
    %c2_138 = arith.constant 2 : index
    %c0_139 = arith.constant 0 : index
    %359 = vector.load %arg11[%c2_138, %c0_139] : memref<3x128xf32, #tpu.memory_space<vmem>>, vector<1x128xf32>
    %360 = vector.broadcast %359 : vector<1x128xf32> to vector<16x128xf32>
    %361 = arith.addf %358, %360 : vector<16x128xf32>
    %c0_140 = arith.constant 0 : index
    %c0_141 = arith.constant 0 : index
    %362 = vector.load %arg12[%c0_140, %c0_141] : memref<16x128xf32, #tpu.memory_space<vmem>>, vector<16x128xf32>
    tpu.vector_store %arg12[%c0_140, %c0_141], %361 {strides = array<i32>} : memref<16x128xf32, #tpu.memory_space<vmem>>, vector<16x128xf32>,
    return
  }
  func.func @transform_0(%arg0: i32) -> (i32, i32) {
    %c0_i32 = arith.constant 0 : i32
    %c0_i32_0 = arith.constant 0 : i32
    %c0_i32_1 = arith.constant 0 : i32
    return %c0_i32, %c0_i32_0 : i32, i32
  }
  func.func @transform_1(%arg0: i32) -> (i32, i32, i32) {
    %c0_i32 = arith.constant 0 : i32
    %c0_i32_0 = arith.constant 0 : i32
    %c0_i32_1 = arith.constant 0 : i32
    %c0_i32_2 = arith.constant 0 : i32
    return %c0_i32, %c0_i32_0, %c0_i32_1 : i32, i32, i32
  }
  func.func @transform_2(%arg0: i32) -> (i32, i32) {
    %c0_i32 = arith.constant 0 : i32
    %c0_i32_0 = arith.constant 0 : i32
    %c0_i32_1 = arith.constant 0 : i32
    return %c0_i32, %c0_i32_0 : i32, i32
  }
  func.func @transform_3(%arg0: i32) -> (i32, i32) {
    %c0_i32 = arith.constant 0 : i32
    %c0_i32_0 = arith.constant 0 : i32
    %c0_i32_1 = arith.constant 0 : i32
    return %c0_i32, %c0_i32_0 : i32, i32
  }
  func.func @transform_4(%arg0: i32) -> (i32, i32, i32) {
    %c0_i32 = arith.constant 0 : i32
    %c0_i32_0 = arith.constant 0 : i32
    %c0_i32_1 = arith.constant 0 : i32
    %c0_i32_2 = arith.constant 0 : i32
    return %c0_i32, %c0_i32_0, %c0_i32_1 : i32, i32, i32
  }
  func.func @transform_5(%arg0: i32) -> (i32, i32, i32) {
    %c0_i32 = arith.constant 0 : i32
    %c0_i32_0 = arith.constant 0 : i32
    %c0_i32_1 = arith.constant 0 : i32
    %c0_i32_2 = arith.constant 0 : i32
    return %c0_i32, %c0_i32_0, %c0_i32_1 : i32, i32, i32
  }
  func.func @transform_6(%arg0: i32) -> (i32, i32, i32) {
    %c0_i32 = arith.constant 0 : i32
    %c0_i32_0 = arith.constant 0 : i32
    %c0_i32_1 = arith.constant 0 : i32
    %c0_i32_2 = arith.constant 0 : i32
    return %c0_i32, %c0_i32_0, %c0_i32_1 : i32, i32, i32
  }
  func.func @transform_7(%arg0: i32) -> (i32, i32, i32) {
    %c0_i32 = arith.constant 0 : i32
    %c0_i32_0 = arith.constant 0 : i32
    %c0_i32_1 = arith.constant 0 : i32
    %c0_i32_2 = arith.constant 0 : i32
    return %c0_i32, %c0_i32_0, %c0_i32_1 : i32, i32, i32
  }
  func.func @transform_8(%arg0: i32) -> (i32, i32) {
    %c0_i32 = arith.constant 0 : i32
    %c0_i32_0 = arith.constant 0 : i32
    %c0_i32_1 = arith.constant 0 : i32
    return %c0_i32, %c0_i32_0 : i32, i32
  }
  func.func @transform_9(%arg0: i32) -> (i32, i32) {
    %c0_i32 = arith.constant 0 : i32
    %c0_i32_0 = arith.constant 0 : i32
    %c0_i32_1 = arith.constant 0 : i32
    return %c0_i32, %c0_i32_0 : i32, i32
  }
  func.func @transform_10(%arg0: i32) -> (i32, i32) {
    %c0_i32 = arith.constant 0 : i32
    %c0_i32_0 = arith.constant 0 : i32
    %c0_i32_1 = arith.constant 0 : i32
    return %c0_i32, %c0_i32_0 : i32, i32
  }
  func.func @transform_11(%arg0: i32) -> (i32, i32) {
    %c0_i32 = arith.constant 0 : i32
    %c0_i32_0 = arith.constant 0 : i32
    %c0_i32_1 = arith.constant 0 : i32
    return %c0_i32, %c0_i32_0 : i32, i32
  }
}

</mosaic_0001>

<llo_original>
// kernel: decoder_forward.1
$region0: #{decoder_forward.1}
  #allocation0 [shape = 'u32[]', space=smem, size = 0x4, offset = 0x4, fixed_abs, tag = 'smem constant byte address 0x4 - core index']
  #allocation1 [shape = 'u32[144,128]{1,0:T(1,128)}', space=vmem, size = 0x12000, scoped, tag = 'internal scratch']
  %s0 = inlined_call_operand.vmem [shape: f32[16,32], index: 0, kind: input, shape index: {}]
  %s1 = inlined_call_operand.vmem [shape: f32[2,64,16], index: 1, kind: input, shape index: {}]
  %s2 = inlined_call_operand.vmem [shape: f32[64,64], index: 2, kind: input, shape index: {}]
  %s3 = inlined_call_operand.vmem [shape: f32[64,64], index: 3, kind: input, shape index: {}]
  %s4 = inlined_call_operand.vmem [shape: f32[2,8,32], index: 4, kind: input, shape index: {}]
  %s5 = inlined_call_operand.vmem [shape: f32[4,32,32], index: 5, kind: input, shape index: {}]
  %s6 = inlined_call_operand.vmem [shape: f32[2,32,128], index: 6, kind: input, shape index: {}]
  %s7 = inlined_call_operand.vmem [shape: f32[2,128,32], index: 7, kind: input, shape index: {}]
  %s8 = inlined_call_operand.vmem [shape: f32[32,128], index: 8, kind: input, shape index: {}]
  %s9 = inlined_call_operand.vmem [shape: f32[18,32], index: 9, kind: input, shape index: {}]
  %s10 = inlined_call_operand.vmem [shape: f32[3,128], index: 10, kind: input, shape index: {}]
  %s11 = inlined_call_operand.vmem [shape: f32[16,128], index: 11, kind: output, shape index: {}]
  %s12 = sld [smem:[#allocation0]]
  $region54: #{decoder_forward.1} parent=0
    _
  %s14 = ssub.s32 1, %s12
  %s15 = scalar_select 0, %s14, %s12
  // Predicated region
  $region2: #{decoder_forward.1} parent=0 // pred_check
    _
  $region3: #{decoder_forward.1} parent=0 // pred_check_branch
    %17 = sbr.rel (0) target = $region5
  $region4: #{decoder_forward.1} parent=0 // pred_region
    _
  $region5: #{decoder_forward.1} parent=0 // pred_fallthru
    _
  // Predicated region
  $region6: #{decoder_forward.1} parent=0 // pred_check
    _
  $region7: #{decoder_forward.1} parent=0 // pred_check_branch
    %19 = sbr.rel (0) target = $region9
  $region8: #{decoder_forward.1} parent=0 // pred_region
    _
  $region9: #{decoder_forward.1} parent=0 // pred_fallthru
    _
  // Predicated region
  $region10: #{decoder_forward.1} parent=0 // pred_check
    _
  $region11: #{decoder_forward.1} parent=0 // pred_check_branch
    %21 = sbr.rel (0) target = $region13
  $region12: #{decoder_forward.1} parent=0 // pred_region
    _
  $region13: #{decoder_forward.1} parent=0 // pred_fallthru
    _
  // Predicated region
  $region14: #{decoder_forward.1} parent=0 // pred_check
    _
  $region15: #{decoder_forward.1} parent=0 // pred_check_branch
    %23 = sbr.rel (0) target = $region17
  $region16: #{decoder_forward.1} parent=0 // pred_region
    _
  $region17: #{decoder_forward.1} parent=0 // pred_fallthru
    _
  // Predicated region
  $region18: #{decoder_forward.1} parent=0 // pred_check
    _
  $region19: #{decoder_forward.1} parent=0 // pred_check_branch
    %25 = sbr.rel (0) target = $region21
  $region20: #{decoder_forward.1} parent=0 // pred_region
    _
  $region21: #{decoder_forward.1} parent=0 // pred_fallthru
    _
  // Predicated region
  $region22: #{decoder_forward.1} parent=0 // pred_check
    _
  $region23: #{decoder_forward.1} parent=0 // pred_check_branch
    %27 = sbr.rel (0) target = $region25
  $region24: #{decoder_forward.1} parent=0 // pred_region
    _
  $region25: #{decoder_forward.1} parent=0 // pred_fallthru
    _
  // Predicated region
  $region26: #{decoder_forward.1} parent=0 // pred_check
    _
  $region27: #{decoder_forward.1} parent=0 // pred_check_branch
    %29 = sbr.rel (0) target = $region29
  $region28: #{decoder_forward.1} parent=0 // pred_region
    _
  $region29: #{decoder_forward.1} parent=0 // pred_fallthru
    _
  // Predicated region
  $region30: #{decoder_forward.1} parent=0 // pred_check
    _
  $region31: #{decoder_forward.1} parent=0 // pred_check_branch
    %31 = sbr.rel (0) target = $region33
  $region32: #{decoder_forward.1} parent=0 // pred_region
    _
  $region33: #{decoder_forward.1} parent=0 // pred_fallthru
    _
  // Predicated region
  $region34: #{decoder_forward.1} parent=0 // pred_check
    _
  $region35: #{decoder_forward.1} parent=0 // pred_check_branch
    %33 = sbr.rel (0) target = $region37
  $region36: #{decoder_forward.1} parent=0 // pred_region
    _
  $region37: #{decoder_forward.1} parent=0 // pred_fallthru
    _
  // Predicated region
  $region38: #{decoder_forward.1} parent=0 // pred_check
    _
  $region39: #{decoder_forward.1} parent=0 // pred_check_branch
    %35 = sbr.rel (0) target = $region41
  $region40: #{decoder_forward.1} parent=0 // pred_region
    _
  $region41: #{decoder_forward.1} parent=0 // pred_fallthru
    _
  // Predicated region
  $region42: #{decoder_forward.1} parent=0 // pred_check
    _
  $region43: #{decoder_forward.1} parent=0 // pred_check_branch
    %37 = sbr.rel (0) target = $region45
  $region44: #{decoder_forward.1} parent=0 // pred_region
    _
  $region45: #{decoder_forward.1} parent=0 // pred_fallthru
    _
  %v38 = vld [vmem:[%s0] sm:$0xff]
  %v39 = vld [vmem:[%s0 + $0x8] sm:$0xff]
  %v40 = vld [vmem:[%s2] sm:$0xff]
  %v41 = vld [vmem:[%s2 + $0x8] sm:$0xff]
  %v42 = vld [vmem:[%s2 + $0x10] sm:$0xff]
  %v43 = vld [vmem:[%s2 + $0x18] sm:$0xff]
  %v44 = vld [vmem:[%s2 + $0x20] sm:$0xff]
  %v45 = vld [vmem:[%s2 + $0x28] sm:$0xff]
  %v46 = vld [vmem:[%s2 + $0x30] sm:$0xff]
  %v47 = vld [vmem:[%s2 + $0x38] sm:$0xff]
  %v48 = vld [vmem:[%s3] sm:$0xff]
  %v49 = vld [vmem:[%s3 + $0x8] sm:$0xff]
  %v50 = vld [vmem:[%s3 + $0x10] sm:$0xff]
  %v51 = vld [vmem:[%s3 + $0x18] sm:$0xff]
  %v52 = vld [vmem:[%s3 + $0x20] sm:$0xff]
  %v53 = vld [vmem:[%s3 + $0x28] sm:$0xff]
  %v54 = vld [vmem:[%s3 + $0x30] sm:$0xff]
  %v55 = vld [vmem:[%s3 + $0x38] sm:$0xff]
  %v56 = vld [vmem:[%s4] sm:$0xff]
  %59 = vrot.lane.b32.xlu0 %v38, 120
  %v60 = vpop.permute.xlu0 %59
  %61 = vrot.lane.b32.xlu0 %v39, 120
  %v62 = vpop.permute.xlu0 %61
  %63 = vrot.lane.b32.xlu0 %v38, 112
  %v64 = vpop.permute.xlu0 %63
  %65 = vrot.lane.b32.xlu0 %v39, 112
  %v66 = vpop.permute.xlu0 %65
  %67 = vrot.lane.b32.xlu0 %v38, 104
  %v68 = vpop.permute.xlu0 %67
  %69 = vrot.lane.b32.xlu0 %v39, 104
  %v70 = vpop.permute.xlu0 %69
  %vm71 = vcmask 64512
  %v72 = vsel %vm71, %v38, 0
  %v74 = vsel %vm71, %v39, 0
  %v76 = vsel %vm71, %v60, 0
  %v78 = vsel %vm71, %v62, 0
  %v80 = vsel %vm71, %v64, 0
  %v82 = vsel %vm71, %v66, 0
  %v84 = vsel %vm71, %v68, 0
  %v86 = vsel %vm71, %v70, 0
  %88 = vmatprep.subr.mxu0 0.0
  %89 = vmatpush1.msra.mxu0 0.0
  %90 = vmatprep.subr.mxu0 0.0
  %91 = vmatpush1.msra.mxu0 0.0
  %92 = vmatprep.subr.mxu0 0.0
  %93 = vmatpush1.msra.mxu0 0.0
  %94 = vmatprep.subr.mxu0 0.0
  %95 = vmatpush1.msra.mxu0 0.0
  %96 = vmatprep.subr.mxu0 0.0
  %97 = vmatpush1.msra.mxu0 0.0
  %98 = vmatprep.subr.mxu0 0.0
  %99 = vmatpush1.msra.mxu0 0.0
  %100 = vmatprep.subr.mxu0 0.0
  %101 = vmatpush1.msra.mxu0 0.0
  %102 = vmatprep.subr.mxu0 0.0
  %103 = vmatpush1.msra.mxu0 0.0
  %104 = vmatprep.subr.mxu0 0.0
  %105 = vmatpush1.msra.mxu0 0.0
  %106 = vmatprep.subr.mxu0 0.0
  %107 = vmatpush1.msra.mxu0 0.0
  %108 = vmatprep.subr.mxu0 0.0
  %109 = vmatpush1.msra.mxu0 0.0
  %110 = vmatprep.subr.mxu0 0.0
  %111 = vmatpush1.msra.mxu0 0.0
  %112 = vmatprep.subr.mxu0 0.0
  %113 = vmatpush1.msra.mxu0 0.0
  %114 = vmatprep.subr.mxu0 0.0
  %115 = vmatpush1.msra.mxu0 0.0
  %116 = vmatprep.subr.mxu0 0.0
  %117 = vmatpush1.msra.mxu0 0.0
  %118 = vmatprep.subr.mxu0 0.0
  %119 = vmatpush1.msra.mxu0 %v56
  %120 = vmatprep.subr.mxu0 0.0
  %121 = vmatpush2.msra.mxu0 0.0
  %122 = vmatprep.subr.mxu0 0.0
  %123 = vmatpush2.msra.mxu0 0.0
  %124 = vmatprep.subr.mxu0 0.0
  %125 = vmatpush2.msra.mxu0 0.0
  %126 = vmatprep.subr.mxu0 0.0
  %127 = vmatpush2.msra.mxu0 0.0
  %128 = vmatprep.subr.mxu0 0.0
  %129 = vmatpush2.msra.mxu0 0.0
  %130 = vmatprep.subr.mxu0 0.0
  %131 = vmatpush2.msra.mxu0 0.0
  %132 = vmatprep.subr.mxu0 0.0
  %133 = vmatpush2.msra.mxu0 0.0
  %134 = vmatprep.subr.mxu0 0.0
  %135 = vmatpush2.msra.mxu0 0.0
  %136 = vmatprep.subr.mxu0 0.0
  %137 = vmatpush2.msra.mxu0 0.0
  %138 = vmatprep.subr.mxu0 0.0
  %139 = vmatpush2.msra.mxu0 0.0
  %140 = vmatprep.subr.mxu0 0.0
  %141 = vmatpush2.msra.mxu0 0.0
  %142 = vmatprep.subr.mxu0 0.0
  %143 = vmatpush2.msra.mxu0 0.0
  %144 = vmatprep.subr.mxu0 0.0
  %145 = vmatpush2.msra.mxu0 0.0
  %146 = vmatprep.subr.mxu0 0.0
  %147 = vmatpush2.msra.mxu0 0.0
  %148 = vmatprep.subr.mxu0 0.0
  %149 = vmatpush2.msra.mxu0 0.0
  %150 = vmatprep.subr.mxu0 0.0
  %151 = vmatpush2.msra.mxu0 0.0
  %152 = vmatprep.mubr.f32.mxu0 0.0
  %153 = vmatmul.mubr.f32.gmra.mxu0 %v72
  %v154 = vpop.f32.mrf.mxu0
  %v155 = vadd.f32 0.0, %v154
  %v156 = vpop.f32.mrf.mxu0
  %157 = vmatprep.mubr.f32.mxu0 0.0
  %158 = vmatmul.mubr.f32.gmra.mxu0 %v74
  %v159 = vpop.f32.mrf.mxu0
  %v160 = vadd.f32 0.0, %v159
  %v161 = vpop.f32.mrf.mxu0
  %162 = vmatprep.mubr.f32.mxu0 0.0
  %163 = vmatmul.mubr.f32.gmra.mxu0 %v76
  %v164 = vpop.f32.mrf.mxu0
  %v165 = vadd.f32 0.0, %v164
  %v166 = vpop.f32.mrf.mxu0
  %167 = vmatprep.mubr.f32.mxu0 0.0
  %168 = vmatmul.mubr.f32.gmra.mxu0 %v78
  %v169 = vpop.f32.mrf.mxu0
  %v170 = vadd.f32 0.0, %v169
  %v171 = vpop.f32.mrf.mxu0
  %172 = vmatprep.mubr.f32.mxu0 0.0
  %173 = vmatmul.mubr.f32.gmra.mxu0 %v80
  %v174 = vpop.f32.mrf.mxu0
  %v175 = vadd.f32 0.0, %v174
  %v176 = vpop.f32.mrf.mxu0
  %177 = vmatprep.mubr.f32.mxu0 0.0
  %178 = vmatmul.mubr.f32.gmra.mxu0 %v82
  %v179 = vpop.f32.mrf.mxu0
  %v180 = vadd.f32 0.0, %v179
  %v181 = vpop.f32.mrf.mxu0
  %182 = vmatprep.mubr.f32.mxu0 0.0
  %183 = vmatmul.mubr.f32.gmra.mxu0 %v84
  %v184 = vpop.f32.mrf.mxu0
  %v185 = vadd.f32 0.0, %v184
  %v186 = vpop.f32.mrf.mxu0
  %187 = vmatprep.mubr.f32.mxu0 0.0
  %188 = vmatmul.mubr.f32.gmra.mxu0 %v86
  %v189 = vpop.f32.mrf.mxu0
  %v190 = vadd.f32 0.0, %v189
  %v191 = vpop.f32.mrf.mxu0
  %192 = vdwg.mxu0
  %201 = vrot.lane.b32.xlu0 %v155, 120
  %v202 = vpop.permute.xlu0 %201
  %203 = vrot.lane.b32.xlu0 %v160, 120
  %v204 = vpop.permute.xlu0 %203
  %205 = vrot.lane.b32.xlu0 %v165, 120
  %v206 = vpop.permute.xlu0 %205
  %207 = vrot.lane.b32.xlu0 %v170, 120
  %v208 = vpop.permute.xlu0 %207
  %209 = vrot.lane.b32.xlu0 %v175, 120
  %v210 = vpop.permute.xlu0 %209
  %211 = vrot.lane.b32.xlu0 %v180, 120
  %v212 = vpop.permute.xlu0 %211
  %213 = vrot.lane.b32.xlu0 %v185, 120
  %v214 = vpop.permute.xlu0 %213
  %215 = vrot.lane.b32.xlu0 %v190, 120
  %v216 = vpop.permute.xlu0 %215
  %v217 = vsel %vm71, %v155, 0
  %v219 = vsel %vm71, %v160, 0
  %v221 = vsel %vm71, %v165, 0
  %v223 = vsel %vm71, %v170, 0
  %v225 = vsel %vm71, %v175, 0
  %v227 = vsel %vm71, %v180, 0
  %v229 = vsel %vm71, %v185, 0
  %v231 = vsel %vm71, %v190, 0
  %v233 = vsel %vm71, %v202, 0
  %v235 = vsel %vm71, %v204, 0
  %v237 = vsel %vm71, %v206, 0
  %v239 = vsel %vm71, %v208, 0
  %v241 = vsel %vm71, %v210, 0
  %v243 = vsel %vm71, %v212, 0
  %v245 = vsel %vm71, %v214, 0
  %v247 = vsel %vm71, %v216, 0
  %249 = vmatprep.subr.mxu0 0.0
  %250 = vmatpush1.xpose.msra.mxu0 0.0
  %251 = vmatprep.subr.mxu0 0.0
  %252 = vmatpush1.xpose.msra.mxu0 0.0
  %253 = vmatprep.subr.mxu0 0.0
  %254 = vmatpush1.xpose.msra.mxu0 0.0
  %255 = vmatprep.subr.mxu0 0.0
  %256 = vmatpush1.xpose.msra.mxu0 0.0
  %257 = vmatprep.subr.mxu0 0.0
  %258 = vmatpush1.xpose.msra.mxu0 0.0
  %259 = vmatprep.subr.mxu0 0.0
  %260 = vmatpush1.xpose.msra.mxu0 0.0
  %261 = vmatprep.subr.mxu0 0.0
  %262 = vmatpush1.xpose.msra.mxu0 0.0
  %263 = vmatprep.subr.mxu0 0.0
  %264 = vmatpush1.xpose.msra.mxu0 0.0
  %265 = vmatprep.subr.mxu0 0.0
  %266 = vmatpush1.xpose.msra.mxu0 %v247
  %267 = vmatprep.subr.mxu0 0.0
  %268 = vmatpush1.xpose.msra.mxu0 %v245
  %269 = vmatprep.subr.mxu0 0.0
  %270 = vmatpush1.xpose.msra.mxu0 %v243
  %271 = vmatprep.subr.mxu0 0.0
  %272 = vmatpush1.xpose.msra.mxu0 %v241
  %273 = vmatprep.subr.mxu0 0.0
  %274 = vmatpush1.xpose.msra.mxu0 %v239
  %275 = vmatprep.subr.mxu0 0.0
  %276 = vmatpush1.xpose.msra.mxu0 %v237
  %277 = vmatprep.subr.mxu0 0.0
  %278 = vmatpush1.xpose.msra.mxu0 %v235
  %279 = vmatprep.subr.mxu0 0.0
  %280 = vmatpush1.xpose.msra.mxu0 %v233
  %281 = vmatprep.subr.mxu0 0.0
  %282 = vmatpush2.xpose.msra.mxu0 0.0
  %283 = vmatprep.subr.mxu0 0.0
  %284 = vmatpush2.xpose.msra.mxu0 0.0
  %285 = vmatprep.subr.mxu0 0.0
  %286 = vmatpush2.xpose.msra.mxu0 0.0
  %287 = vmatprep.subr.mxu0 0.0
  %288 = vmatpush2.xpose.msra.mxu0 0.0
  %289 = vmatprep.subr.mxu0 0.0
  %290 = vmatpush2.xpose.msra.mxu0 0.0
  %291 = vmatprep.subr.mxu0 0.0
  %292 = vmatpush2.xpose.msra.mxu0 0.0
  %293 = vmatprep.subr.mxu0 0.0
  %294 = vmatpush2.xpose.msra.mxu0 0.0
  %295 = vmatprep.subr.mxu0 0.0
  %296 = vmatpush2.xpose.msra.mxu0 0.0
  %297 = vmatprep.subr.mxu0 0.0
  %298 = vmatpush2.xpose.msra.mxu0 0.0
  %299 = vmatprep.subr.mxu0 0.0
  %300 = vmatpush2.xpose.msra.mxu0 0.0
  %301 = vmatprep.subr.mxu0 0.0
  %302 = vmatpush2.xpose.msra.mxu0 0.0
  %303 = vmatprep.subr.mxu0 0.0
  %304 = vmatpush2.xpose.msra.mxu0 0.0
  %305 = vmatprep.subr.mxu0 0.0
  %306 = vmatpush2.xpose.msra.mxu0 0.0
  %307 = vmatprep.subr.mxu0 0.0
  %308 = vmatpush2.xpose.msra.mxu0 0.0
  %309 = vmatprep.subr.mxu0 0.0
  %310 = vmatpush2.xpose.msra.mxu0 0.0
  %311 = vmatprep.subr.mxu0 0.0
  %312 = vmatpush2.xpose.msra.mxu0 0.0
  %313 = vmatprep.mubr.f32.mxu0 0.0
  %314 = vmatmul.mubr.f32.gmra.mxu0 %v217
  %v315 = vpop.f32.mrf.mxu0
  %v316 = vadd.f32 %v40, %v315
  %v317 = vpop.f32.mrf.mxu0
  %318 = vmatprep.mubr.f32.mxu0 0.0
  %319 = vmatmul.mubr.f32.gmra.mxu0 %v219
  %v320 = vpop.f32.mrf.mxu0
  %v321 = vadd.f32 %v41, %v320
  %v322 = vpop.f32.mrf.mxu0
  %323 = vmatprep.mubr.f32.mxu0 0.0
  %324 = vmatmul.mubr.f32.gmra.mxu0 %v221
  %v325 = vpop.f32.mrf.mxu0
  %v326 = vadd.f32 %v42, %v325
  %v327 = vpop.f32.mrf.mxu0
  %328 = vmatprep.mubr.f32.mxu0 0.0
  %329 = vmatmul.mubr.f32.gmra.mxu0 %v223
  %v330 = vpop.f32.mrf.mxu0
  %v331 = vadd.f32 %v43, %v330
  %v332 = vpop.f32.mrf.mxu0
  %333 = vmatprep.mubr.f32.mxu0 0.0
  %334 = vmatmul.mubr.f32.gmra.mxu0 %v225
  %v335 = vpop.f32.mrf.mxu0
  %v336 = vadd.f32 %v44, %v335
  %v337 = vpop.f32.mrf.mxu0
  %338 = vmatprep.mubr.f32.mxu0 0.0
  %339 = vmatmul.mubr.f32.gmra.mxu0 %v227
  %v340 = vpop.f32.mrf.mxu0
  %v341 = vadd.f32 %v45, %v340
  %v342 = vpop.f32.mrf.mxu0
  %343 = vmatprep.mubr.f32.mxu0 0.0
  %344 = vmatmul.mubr.f32.gmra.mxu0 %v229
  %v345 = vpop.f32.mrf.mxu0
  %v346 = vadd.f32 %v46, %v345
  %v347 = vpop.f32.mrf.mxu0
  %348 = vmatprep.mubr.f32.mxu0 0.0
  %349 = vmatmul.mubr.f32.gmra.mxu0 %v231
  %v350 = vpop.f32.mrf.mxu0
  %v351 = vadd.f32 %v47, %v350
  %v352 = vpop.f32.mrf.mxu0
  %353 = vdwg.mxu0
  %vm354 = vcmask 523264
  %v355 = vsel %vm354, %v316, -inf
  %356 = vmax.xlane.f32.xlu0 %v355
  %v357 = vpop.xlane.xlu0 %356
  %v358 = vsel %vm354, %v321, -inf
  %359 = vmax.xlane.f32.xlu0 %v358
  %v360 = vpop.xlane.xlu0 %359
  %v361 = vsel %vm354, %v326, -inf
  %362 = vmax.xlane.f32.xlu0 %v361
  %v363 = vpop.xlane.xlu0 %362
  %v364 = vsel %vm354, %v331, -inf
  %365 = vmax.xlane.f32.xlu0 %v364
  %v366 = vpop.xlane.xlu0 %365
  %v367 = vsel %vm354, %v336, -inf
  %368 = vmax.xlane.f32.xlu0 %v367
  %v369 = vpop.xlane.xlu0 %368
  %v370 = vsel %vm354, %v341, -inf
  %371 = vmax.xlane.f32.xlu0 %v370
  %v372 = vpop.xlane.xlu0 %371
  %v373 = vsel %vm354, %v346, -inf
  %374 = vmax.xlane.f32.xlu0 %v373
  %v375 = vpop.xlane.xlu0 %374
  %v376 = vsel %vm354, %v351, -inf
  %377 = vmax.xlane.f32.xlu0 %v376
  %v378 = vpop.xlane.xlu0 %377
  %v379 = vsub.f32 %v316, %v357
  %v380 = vsub.f32 %v321, %v360
  %v381 = vsub.f32 %v326, %v363
  %v382 = vsub.f32 %v331, %v366
  %v383 = vsub.f32 %v336, %v369
  %v384 = vsub.f32 %v341, %v372
  %v385 = vsub.f32 %v346, %v375
  %v386 = vsub.f32 %v351, %v378
  %v387 = vmul.f32 %v379, 1.442695
  %v388 = vpow.pop %v387
  %v389 = vmul.f32 %v380, 1.442695
  %v390 = vpow.pop %v389
  %v391 = vmul.f32 %v381, 1.442695
  %v392 = vpow.pop %v391
  %v393 = vmul.f32 %v382, 1.442695
  %v394 = vpow.pop %v393
  %v395 = vmul.f32 %v383, 1.442695
  %v396 = vpow.pop %v395
  %v397 = vmul.f32 %v384, 1.442695
  %v398 = vpow.pop %v397
  %v399 = vmul.f32 %v385, 1.442695
  %v400 = vpow.pop %v399
  %v401 = vmul.f32 %v386, 1.442695
  %v402 = vpow.pop %v401
  %v403 = vsel %vm354, %v388, 0.0
  %404 = vadd.xlane.f32.xlu0 %v403
  %v405 = vpop.xlane.xlu0 %404
  %v406 = vsel %vm354, %v390, 0.0
  %407 = vadd.xlane.f32.xlu0 %v406
  %v408 = vpop.xlane.xlu0 %407
  %v409 = vsel %vm354, %v392, 0.0
  %410 = vadd.xlane.f32.xlu0 %v409
  %v411 = vpop.xlane.xlu0 %410
  %v412 = vsel %vm354, %v394, 0.0
  %413 = vadd.xlane.f32.xlu0 %v412
  %v414 = vpop.xlane.xlu0 %413
  %v415 = vsel %vm354, %v396, 0.0
  %416 = vadd.xlane.f32.xlu0 %v415
  %v417 = vpop.xlane.xlu0 %416
  %v418 = vsel %vm354, %v398, 0.0
  %419 = vadd.xlane.f32.xlu0 %v418
  %v420 = vpop.xlane.xlu0 %419
  %v421 = vsel %vm354, %v400, 0.0
  %422 = vadd.xlane.f32.xlu0 %v421
  %v423 = vpop.xlane.xlu0 %422
  %v424 = vsel %vm354, %v402, 0.0
  %425 = vadd.xlane.f32.xlu0 %v424
  %v426 = vpop.xlane.xlu0 %425
  %v427 = vrcp.pop %v405
  %v428 = vrcp.pop %v408
  %v429 = vrcp.pop %v411
  %v430 = vrcp.pop %v414
  %v431 = vrcp.pop %v417
  %v432 = vrcp.pop %v420
  %v433 = vrcp.pop %v423
  %v434 = vrcp.pop %v426
  %v435 = vmul.f32 %v388, %v427
  %v436 = vmul.f32 %v390, %v428
  %v437 = vmul.f32 %v392, %v429
  %v438 = vmul.f32 %v394, %v430
  %v439 = vmul.f32 %v396, %v431
  %v440 = vmul.f32 %v398, %v432
  %v441 = vmul.f32 %v400, %v433
  %v442 = vmul.f32 %v402, %v434
  %443 = vrot.lane.b32.xlu0 %v155, 112
  %v444 = vpop.permute.xlu0 %443
  %445 = vrot.lane.b32.xlu0 %v160, 112
  %v446 = vpop.permute.xlu0 %445
  %447 = vrot.lane.b32.xlu0 %v165, 112
  %v448 = vpop.permute.xlu0 %447
  %449 = vrot.lane.b32.xlu0 %v170, 112
  %v450 = vpop.permute.xlu0 %449
  %451 = vrot.lane.b32.xlu0 %v175, 112
  %v452 = vpop.permute.xlu0 %451
  %453 = vrot.lane.b32.xlu0 %v180, 112
  %v454 = vpop.permute.xlu0 %453
  %455 = vrot.lane.b32.xlu0 %v185, 112
  %v456 = vpop.permute.xlu0 %455
  %457 = vrot.lane.b32.xlu0 %v190, 112
  %v458 = vpop.permute.xlu0 %457
  %v468 = vsel %vm354, %v435, 0
  %v471 = vsel %vm354, %v436, 0
  %v474 = vsel %vm354, %v437, 0
  %v477 = vsel %vm354, %v438, 0
  %v480 = vsel %vm354, %v439, 0
  %v483 = vsel %vm354, %v440, 0
  %v486 = vsel %vm354, %v441, 0
  %v489 = vsel %vm354, %v442, 0
  %491 = vmatprep.subr.mxu0 0.0
  %492 = vmatpush1.msra.mxu0 0.0
  %493 = vmatprep.subr.mxu0 0.0
  %494 = vmatpush1.msra.mxu0 0.0
  %495 = vmatprep.subr.mxu0 0.0
  %496 = vmatpush1.msra.mxu0 0.0
  %497 = vmatprep.subr.mxu0 0.0
  %498 = vmatpush1.msra.mxu0 0.0
  %499 = vmatprep.subr.mxu0 0.0
  %500 = vmatpush1.msra.mxu0 0.0
  %501 = vmatprep.subr.mxu0 0.0
  %502 = vmatpush1.msra.mxu0 0.0
  %503 = vmatprep.subr.mxu0 0.0
  %504 = vmatpush1.msra.mxu0 0.0
  %505 = vmatprep.subr.mxu0 0.0
  %506 = vmatpush1.msra.mxu0 0.0
  %507 = vmatprep.subr.mxu0 0.0
  %508 = vmatpush1.msra.mxu0 %v458
  %509 = vmatprep.subr.mxu0 0.0
  %510 = vmatpush1.msra.mxu0 %v456
  %511 = vmatprep.subr.mxu0 0.0
  %512 = vmatpush1.msra.mxu0 %v454
  %513 = vmatprep.subr.mxu0 0.0
  %514 = vmatpush1.msra.mxu0 %v452
  %515 = vmatprep.subr.mxu0 0.0
  %516 = vmatpush1.msra.mxu0 %v450
  %517 = vmatprep.subr.mxu0 0.0
  %518 = vmatpush1.msra.mxu0 %v448
  %519 = vmatprep.subr.mxu0 0.0
  %520 = vmatpush1.msra.mxu0 %v446
  %521 = vmatprep.subr.mxu0 0.0
  %522 = vmatpush1.msra.mxu0 %v444
  %523 = vmatprep.subr.mxu0 0.0
  %524 = vmatpush2.msra.mxu0 0.0
  %525 = vmatprep.subr.mxu0 0.0
  %526 = vmatpush2.msra.mxu0 0.0
  %527 = vmatprep.subr.mxu0 0.0
  %528 = vmatpush2.msra.mxu0 0.0
  %529 = vmatprep.subr.mxu0 0.0
  %530 = vmatpush2.msra.mxu0 0.0
  %531 = vmatprep.subr.mxu0 0.0
  %532 = vmatpush2.msra.mxu0 0.0
  %533 = vmatprep.subr.mxu0 0.0
  %534 = vmatpush2.msra.mxu0 0.0
  %535 = vmatprep.subr.mxu0 0.0
  %536 = vmatpush2.msra.mxu0 0.0
  %537 = vmatprep.subr.mxu0 0.0
  %538 = vmatpush2.msra.mxu0 0.0
  %539 = vmatprep.subr.mxu0 0.0
  %540 = vmatpush2.msra.mxu0 0.0
  %541 = vmatprep.subr.mxu0 0.0
  %542 = vmatpush2.msra.mxu0 0.0
  %543 = vmatprep.subr.mxu0 0.0
  %544 = vmatpush2.msra.mxu0 0.0
  %545 = vmatprep.subr.mxu0 0.0
  %546 = vmatpush2.msra.mxu0 0.0
  %547 = vmatprep.subr.mxu0 0.0
  %548 = vmatpush2.msra.mxu0 0.0
  %549 = vmatprep.subr.mxu0 0.0
  %550 = vmatpush2.msra.mxu0 0.0
  %551 = vmatprep.subr.mxu0 0.0
  %552 = vmatpush2.msra.mxu0 0.0
  %553 = vmatprep.subr.mxu0 0.0
  %554 = vmatpush2.msra.mxu0 0.0
  %555 = vmatprep.mubr.f32.mxu0 0.0
  %556 = vmatmul.mubr.f32.gmra.mxu0 %v468
  %v557 = vpop.f32.mrf.mxu0
  %v558 = vadd.f32 0.0, %v557
  %v559 = vpop.f32.mrf.mxu0
  %560 = vmatprep.mubr.f32.mxu0 0.0
  %561 = vmatmul.mubr.f32.gmra.mxu0 %v471
  %v562 = vpop.f32.mrf.mxu0
  %v563 = vadd.f32 0.0, %v562
  %v564 = vpop.f32.mrf.mxu0
  %565 = vmatprep.mubr.f32.mxu0 0.0
  %566 = vmatmul.mubr.f32.gmra.mxu0 %v474
  %v567 = vpop.f32.mrf.mxu0
  %v568 = vadd.f32 0.0, %v567
  %v569 = vpop.f32.mrf.mxu0
  %570 = vmatprep.mubr.f32.mxu0 0.0
  %571 = vmatmul.mubr.f32.gmra.mxu0 %v477
  %v572 = vpop.f32.mrf.mxu0
  %v573 = vadd.f32 0.0, %v572
  %v574 = vpop.f32.mrf.mxu0
  %575 = vmatprep.mubr.f32.mxu0 0.0
  %576 = vmatmul.mubr.f32.gmra.mxu0 %v480
  %v577 = vpop.f32.mrf.mxu0
  %v578 = vadd.f32 0.0, %v577
  %v579 = vpop.f32.mrf.mxu0
  %580 = vmatprep.mubr.f32.mxu0 0.0
  %581 = vmatmul.mubr.f32.gmra.mxu0 %v483
  %v582 = vpop.f32.mrf.mxu0
  %v583 = vadd.f32 0.0, %v582
  %v584 = vpop.f32.mrf.mxu0
  %585 = vmatprep.mubr.f32.mxu0 0.0
  %586 = vmatmul.mubr.f32.gmra.mxu0 %v486
  %v587 = vpop.f32.mrf.mxu0
  %v588 = vadd.f32 0.0, %v587
  %v589 = vpop.f32.mrf.mxu0
  %590 = vmatprep.mubr.f32.mxu0 0.0
  %591 = vmatmul.mubr.f32.gmra.mxu0 %v489
  %v592 = vpop.f32.mrf.mxu0
  %v593 = vadd.f32 0.0, %v592
  %v594 = vpop.f32.mrf.mxu0
  %595 = vdwg.mxu0
  %v596 = vld [vmem:[%s5] sm:$0xff]
  %v597 = vld [vmem:[%s5 + $0x8] sm:$0xff]
  %v598 = vld [vmem:[%s5 + $0x10] sm:$0xff]
  %v599 = vld [vmem:[%s5 + $0x18] sm:$0xff]
  %v601 = vsel %vm71, %v568, 0
  %v604 = vsel %vm71, %v573, 0
  %606 = vmatprep.subr.mxu0 0.0
  %607 = vmatpush1.msra.mxu0 0.0
  %608 = vmatprep.subr.mxu0 0.0
  %609 = vmatpush1.msra.mxu0 0.0
  %610 = vmatprep.subr.mxu0 0.0
  %611 = vmatpush1.msra.mxu0 0.0
  %612 = vmatprep.subr.mxu0 0.0
  %613 = vmatpush1.msra.mxu0 0.0
  %614 = vmatprep.subr.mxu0 0.0
  %615 = vmatpush1.msra.mxu0 0.0
  %616 = vmatprep.subr.mxu0 0.0
  %617 = vmatpush1.msra.mxu0 0.0
  %618 = vmatprep.subr.mxu0 0.0
  %619 = vmatpush1.msra.mxu0 0.0
  %620 = vmatprep.subr.mxu0 0.0
  %621 = vmatpush1.msra.mxu0 0.0
  %622 = vmatprep.subr.mxu0 0.0
  %623 = vmatpush1.msra.mxu0 0.0
  %624 = vmatprep.subr.mxu0 0.0
  %625 = vmatpush1.msra.mxu0 0.0
  %626 = vmatprep.subr.mxu0 0.0
  %627 = vmatpush1.msra.mxu0 0.0
  %628 = vmatprep.subr.mxu0 0.0
  %629 = vmatpush1.msra.mxu0 0.0
  %630 = vmatprep.subr.mxu0 0.0
  %631 = vmatpush1.msra.mxu0 0.0
  %632 = vmatprep.subr.mxu0 0.0
  %633 = vmatpush1.msra.mxu0 0.0
  %634 = vmatprep.subr.mxu0 0.0
  %635 = vmatpush1.msra.mxu0 0.0
  %636 = vmatprep.subr.mxu0 0.0
  %637 = vmatpush1.msra.mxu0 %v597
  %638 = vmatprep.subr.mxu0 0.0
  %639 = vmatpush2.msra.mxu0 0.0
  %640 = vmatprep.subr.mxu0 0.0
  %641 = vmatpush2.msra.mxu0 0.0
  %642 = vmatprep.subr.mxu0 0.0
  %643 = vmatpush2.msra.mxu0 0.0
  %644 = vmatprep.subr.mxu0 0.0
  %645 = vmatpush2.msra.mxu0 0.0
  %646 = vmatprep.subr.mxu0 0.0
  %647 = vmatpush2.msra.mxu0 0.0
  %648 = vmatprep.subr.mxu0 0.0
  %649 = vmatpush2.msra.mxu0 0.0
  %650 = vmatprep.subr.mxu0 0.0
  %651 = vmatpush2.msra.mxu0 0.0
  %652 = vmatprep.subr.mxu0 0.0
  %653 = vmatpush2.msra.mxu0 0.0
  %654 = vmatprep.subr.mxu0 0.0
  %655 = vmatpush2.msra.mxu0 0.0
  %656 = vmatprep.subr.mxu0 0.0
  %657 = vmatpush2.msra.mxu0 0.0
  %658 = vmatprep.subr.mxu0 0.0
  %659 = vmatpush2.msra.mxu0 0.0
  %660 = vmatprep.subr.mxu0 0.0
  %661 = vmatpush2.msra.mxu0 0.0
  %662 = vmatprep.subr.mxu0 0.0
  %663 = vmatpush2.msra.mxu0 0.0
  %664 = vmatprep.subr.mxu0 0.0
  %665 = vmatpush2.msra.mxu0 0.0
  %666 = vmatprep.subr.mxu0 0.0
  %667 = vmatpush2.msra.mxu0 0.0
  %668 = vmatprep.subr.mxu0 0.0
  %669 = vmatpush2.msra.mxu0 0.0
  %670 = vmatprep.mubr.f32.mxu0 0.0
  %671 = vmatmul.mubr.f32.gmra.mxu0 %v601
  %v672 = vpop.f32.mrf.mxu0
  %v673 = vadd.f32 0.0, %v672
  %v674 = vpop.f32.mrf.mxu0
  %675 = vmatprep.mubr.f32.mxu0 0.0
  %676 = vmatmul.mubr.f32.gmra.mxu0 %v604
  %v677 = vpop.f32.mrf.mxu0
  %v678 = vadd.f32 0.0, %v677
  %v679 = vpop.f32.mrf.mxu0
  %680 = vdwg.mxu0
  %v682 = vsel %vm71, %v558, 0
  %v685 = vsel %vm71, %v563, 0
  %687 = vmatprep.subr.mxu0 0.0
  %688 = vmatpush1.msra.mxu0 0.0
  %689 = vmatprep.subr.mxu0 0.0
  %690 = vmatpush1.msra.mxu0 0.0
  %691 = vmatprep.subr.mxu0 0.0
  %692 = vmatpush1.msra.mxu0 0.0
  %693 = vmatprep.subr.mxu0 0.0
  %694 = vmatpush1.msra.mxu0 0.0
  %695 = vmatprep.subr.mxu0 0.0
  %696 = vmatpush1.msra.mxu0 0.0
  %697 = vmatprep.subr.mxu0 0.0
  %698 = vmatpush1.msra.mxu0 0.0
  %699 = vmatprep.subr.mxu0 0.0
  %700 = vmatpush1.msra.mxu0 0.0
  %701 = vmatprep.subr.mxu0 0.0
  %702 = vmatpush1.msra.mxu0 0.0
  %703 = vmatprep.subr.mxu0 0.0
  %704 = vmatpush1.msra.mxu0 0.0
  %705 = vmatprep.subr.mxu0 0.0
  %706 = vmatpush1.msra.mxu0 0.0
  %707 = vmatprep.subr.mxu0 0.0
  %708 = vmatpush1.msra.mxu0 0.0
  %709 = vmatprep.subr.mxu0 0.0
  %710 = vmatpush1.msra.mxu0 0.0
  %711 = vmatprep.subr.mxu0 0.0
  %712 = vmatpush1.msra.mxu0 0.0
  %713 = vmatprep.subr.mxu0 0.0
  %714 = vmatpush1.msra.mxu0 0.0
  %715 = vmatprep.subr.mxu0 0.0
  %716 = vmatpush1.msra.mxu0 0.0
  %717 = vmatprep.subr.mxu0 0.0
  %718 = vmatpush1.msra.mxu0 %v596
  %719 = vmatprep.subr.mxu0 0.0
  %720 = vmatpush2.msra.mxu0 0.0
  %721 = vmatprep.subr.mxu0 0.0
  %722 = vmatpush2.msra.mxu0 0.0
  %723 = vmatprep.subr.mxu0 0.0
  %724 = vmatpush2.msra.mxu0 0.0
  %725 = vmatprep.subr.mxu0 0.0
  %726 = vmatpush2.msra.mxu0 0.0
  %727 = vmatprep.subr.mxu0 0.0
  %728 = vmatpush2.msra.mxu0 0.0
  %729 = vmatprep.subr.mxu0 0.0
  %730 = vmatpush2.msra.mxu0 0.0
  %731 = vmatprep.subr.mxu0 0.0
  %732 = vmatpush2.msra.mxu0 0.0
  %733 = vmatprep.subr.mxu0 0.0
  %734 = vmatpush2.msra.mxu0 0.0
  %735 = vmatprep.subr.mxu0 0.0
  %736 = vmatpush2.msra.mxu0 0.0
  %737 = vmatprep.subr.mxu0 0.0
  %738 = vmatpush2.msra.mxu0 0.0
  %739 = vmatprep.subr.mxu0 0.0
  %740 = vmatpush2.msra.mxu0 0.0
  %741 = vmatprep.subr.mxu0 0.0
  %742 = vmatpush2.msra.mxu0 0.0
  %743 = vmatprep.subr.mxu0 0.0
  %744 = vmatpush2.msra.mxu0 0.0
  %745 = vmatprep.subr.mxu0 0.0
  %746 = vmatpush2.msra.mxu0 0.0
  %747 = vmatprep.subr.mxu0 0.0
  %748 = vmatpush2.msra.mxu0 0.0
  %749 = vmatprep.subr.mxu0 0.0
  %750 = vmatpush2.msra.mxu0 0.0
  %751 = vmatprep.mubr.f32.mxu0 0.0
  %752 = vmatmul.mubr.f32.gmra.mxu0 %v682
  %v753 = vpop.f32.mrf.mxu0
  %v754 = vadd.f32 %v673, %v753
  %v755 = vpop.f32.mrf.mxu0
  %756 = vmatprep.mubr.f32.mxu0 0.0
  %757 = vmatmul.mubr.f32.gmra.mxu0 %v685
  %v758 = vpop.f32.mrf.mxu0
  %v759 = vadd.f32 %v678, %v758
  %v760 = vpop.f32.mrf.mxu0
  %761 = vdwg.mxu0
  %v763 = vsel %vm71, %v578, 0
  %v766 = vsel %vm71, %v583, 0
  %768 = vmatprep.subr.mxu0 0.0
  %769 = vmatpush1.msra.mxu0 0.0
  %770 = vmatprep.subr.mxu0 0.0
  %771 = vmatpush1.msra.mxu0 0.0
  %772 = vmatprep.subr.mxu0 0.0
  %773 = vmatpush1.msra.mxu0 0.0
  %774 = vmatprep.subr.mxu0 0.0
  %775 = vmatpush1.msra.mxu0 0.0
  %776 = vmatprep.subr.mxu0 0.0
  %777 = vmatpush1.msra.mxu0 0.0
  %778 = vmatprep.subr.mxu0 0.0
  %779 = vmatpush1.msra.mxu0 0.0
  %780 = vmatprep.subr.mxu0 0.0
  %781 = vmatpush1.msra.mxu0 0.0
  %782 = vmatprep.subr.mxu0 0.0
  %783 = vmatpush1.msra.mxu0 0.0
  %784 = vmatprep.subr.mxu0 0.0
  %785 = vmatpush1.msra.mxu0 0.0
  %786 = vmatprep.subr.mxu0 0.0
  %787 = vmatpush1.msra.mxu0 0.0
  %788 = vmatprep.subr.mxu0 0.0
  %789 = vmatpush1.msra.mxu0 0.0
  %790 = vmatprep.subr.mxu0 0.0
  %791 = vmatpush1.msra.mxu0 0.0
  %792 = vmatprep.subr.mxu0 0.0
  %793 = vmatpush1.msra.mxu0 0.0
  %794 = vmatprep.subr.mxu0 0.0
  %795 = vmatpush1.msra.mxu0 0.0
  %796 = vmatprep.subr.mxu0 0.0
  %797 = vmatpush1.msra.mxu0 0.0
  %798 = vmatprep.subr.mxu0 0.0
  %799 = vmatpush1.msra.mxu0 %v598
  %800 = vmatprep.subr.mxu0 0.0
  %801 = vmatpush2.msra.mxu0 0.0
  %802 = vmatprep.subr.mxu0 0.0
  %803 = vmatpush2.msra.mxu0 0.0
  %804 = vmatprep.subr.mxu0 0.0
  %805 = vmatpush2.msra.mxu0 0.0
  %806 = vmatprep.subr.mxu0 0.0
  %807 = vmatpush2.msra.mxu0 0.0
  %808 = vmatprep.subr.mxu0 0.0
  %809 = vmatpush2.msra.mxu0 0.0
  %810 = vmatprep.subr.mxu0 0.0
  %811 = vmatpush2.msra.mxu0 0.0
  %812 = vmatprep.subr.mxu0 0.0
  %813 = vmatpush2.msra.mxu0 0.0
  %814 = vmatprep.subr.mxu0 0.0
  %815 = vmatpush2.msra.mxu0 0.0
  %816 = vmatprep.subr.mxu0 0.0
  %817 = vmatpush2.msra.mxu0 0.0
  %818 = vmatprep.subr.mxu0 0.0
  %819 = vmatpush2.msra.mxu0 0.0
  %820 = vmatprep.subr.mxu0 0.0
  %821 = vmatpush2.msra.mxu0 0.0
  %822 = vmatprep.subr.mxu0 0.0
  %823 = vmatpush2.msra.mxu0 0.0
  %824 = vmatprep.subr.mxu0 0.0
  %825 = vmatpush2.msra.mxu0 0.0
  %826 = vmatprep.subr.mxu0 0.0
  %827 = vmatpush2.msra.mxu0 0.0
  %828 = vmatprep.subr.mxu0 0.0
  %829 = vmatpush2.msra.mxu0 0.0
  %830 = vmatprep.subr.mxu0 0.0
  %831 = vmatpush2.msra.mxu0 0.0
  %832 = vmatprep.mubr.f32.mxu0 0.0
  %833 = vmatmul.mubr.f32.gmra.mxu0 %v763
  %v834 = vpop.f32.mrf.mxu0
  %v835 = vadd.f32 0.0, %v834
  %v836 = vpop.f32.mrf.mxu0
  %837 = vmatprep.mubr.f32.mxu0 0.0
  %838 = vmatmul.mubr.f32.gmra.mxu0 %v766
  %v839 = vpop.f32.mrf.mxu0
  %v840 = vadd.f32 0.0, %v839
  %v841 = vpop.f32.mrf.mxu0
  %842 = vdwg.mxu0
  %v843 = vadd.f32 %v754, %v835
  %v844 = vadd.f32 %v759, %v840
  %v846 = vsel %vm71, %v588, 0
  %v849 = vsel %vm71, %v593, 0
  %851 = vmatprep.subr.mxu0 0.0
  %852 = vmatpush1.msra.mxu0 0.0
  %853 = vmatprep.subr.mxu0 0.0
  %854 = vmatpush1.msra.mxu0 0.0
  %855 = vmatprep.subr.mxu0 0.0
  %856 = vmatpush1.msra.mxu0 0.0
  %857 = vmatprep.subr.mxu0 0.0
  %858 = vmatpush1.msra.mxu0 0.0
  %859 = vmatprep.subr.mxu0 0.0
  %860 = vmatpush1.msra.mxu0 0.0
  %861 = vmatprep.subr.mxu0 0.0
  %862 = vmatpush1.msra.mxu0 0.0
  %863 = vmatprep.subr.mxu0 0.0
  %864 = vmatpush1.msra.mxu0 0.0
  %865 = vmatprep.subr.mxu0 0.0
  %866 = vmatpush1.msra.mxu0 0.0
  %867 = vmatprep.subr.mxu0 0.0
  %868 = vmatpush1.msra.mxu0 0.0
  %869 = vmatprep.subr.mxu0 0.0
  %870 = vmatpush1.msra.mxu0 0.0
  %871 = vmatprep.subr.mxu0 0.0
  %872 = vmatpush1.msra.mxu0 0.0
  %873 = vmatprep.subr.mxu0 0.0
  %874 = vmatpush1.msra.mxu0 0.0
  %875 = vmatprep.subr.mxu0 0.0
  %876 = vmatpush1.msra.mxu0 0.0
  %877 = vmatprep.subr.mxu0 0.0
  %878 = vmatpush1.msra.mxu0 0.0
  %879 = vmatprep.subr.mxu0 0.0
  %880 = vmatpush1.msra.mxu0 0.0
  %881 = vmatprep.subr.mxu0 0.0
  %882 = vmatpush1.msra.mxu0 %v599
  %883 = vmatprep.subr.mxu0 0.0
  %884 = vmatpush2.msra.mxu0 0.0
  %885 = vmatprep.subr.mxu0 0.0
  %886 = vmatpush2.msra.mxu0 0.0
  %887 = vmatprep.subr.mxu0 0.0
  %888 = vmatpush2.msra.mxu0 0.0
  %889 = vmatprep.subr.mxu0 0.0
  %890 = vmatpush2.msra.mxu0 0.0
  %891 = vmatprep.subr.mxu0 0.0
  %892 = vmatpush2.msra.mxu0 0.0
  %893 = vmatprep.subr.mxu0 0.0
  %894 = vmatpush2.msra.mxu0 0.0
  %895 = vmatprep.subr.mxu0 0.0
  %896 = vmatpush2.msra.mxu0 0.0
  %897 = vmatprep.subr.mxu0 0.0
  %898 = vmatpush2.msra.mxu0 0.0
  %899 = vmatprep.subr.mxu0 0.0
  %900 = vmatpush2.msra.mxu0 0.0
  %901 = vmatprep.subr.mxu0 0.0
  %902 = vmatpush2.msra.mxu0 0.0
  %903 = vmatprep.subr.mxu0 0.0
  %904 = vmatpush2.msra.mxu0 0.0
  %905 = vmatprep.subr.mxu0 0.0
  %906 = vmatpush2.msra.mxu0 0.0
  %907 = vmatprep.subr.mxu0 0.0
  %908 = vmatpush2.msra.mxu0 0.0
  %909 = vmatprep.subr.mxu0 0.0
  %910 = vmatpush2.msra.mxu0 0.0
  %911 = vmatprep.subr.mxu0 0.0
  %912 = vmatpush2.msra.mxu0 0.0
  %913 = vmatprep.subr.mxu0 0.0
  %914 = vmatpush2.msra.mxu0 0.0
  %915 = vmatprep.mubr.f32.mxu0 0.0
  %916 = vmatmul.mubr.f32.gmra.mxu0 %v846
  %v917 = vpop.f32.mrf.mxu0
  %v918 = vadd.f32 0.0, %v917
  %v919 = vpop.f32.mrf.mxu0
  %920 = vmatprep.mubr.f32.mxu0 0.0
  %921 = vmatmul.mubr.f32.gmra.mxu0 %v849
  %v922 = vpop.f32.mrf.mxu0
  %v923 = vadd.f32 0.0, %v922
  %v924 = vpop.f32.mrf.mxu0
  %925 = vdwg.mxu0
  %v926 = vadd.f32 %v843, %v918
  %v927 = vadd.f32 %v844, %v923
  %v928 = vld [vmem:[%s9] sm:$0x1]
  %v929 = vlaneseq
  %v930 = vshrl.u32 %v929, 7
  %v931 = vsub.s32 0, %v930
  %v932 = vrot.slane %v928, %v931
  %v933 = vadd.f32 %v926, %v932
  %v934 = vadd.f32 %v927, %v932
  %v935 = vadd.f32 %v933, %v38
  %v936 = vadd.f32 %v934, %v39
  %vm937 = vcmask 261120
  %v938 = vsel %vm937, %v935, 0.0
  %939 = vadd.xlane.f32.xlu0 %v938
  %v940 = vpop.xlane.xlu0 %939
  %v941 = vsel %vm937, %v936, 0.0
  %942 = vadd.xlane.f32.xlu0 %v941
  %v943 = vpop.xlane.xlu0 %942
  %v944 = vrcp.pop 32.0
  %v945 = vmul.f32 %v940, %v944
  %v946 = vmul.f32 %v943, %v944
  %v947 = vsub.f32 %v935, %v945
  %v948 = vsub.f32 %v936, %v946
  %v949 = vmul.f32 %v947, %v947
  %v950 = vmul.f32 %v948, %v948
  %v951 = vsel %vm937, %v949, 0.0
  %952 = vadd.xlane.f32.xlu0 %v951
  %v953 = vpop.xlane.xlu0 %952
  %v954 = vsel %vm937, %v950, 0.0
  %955 = vadd.xlane.f32.xlu0 %v954
  %v956 = vpop.xlane.xlu0 %955
  %v957 = vmul.f32 %v953, %v944
  %v958 = vmul.f32 %v956, %v944
  %v959 = vadd.f32 %v957, 1e-05
  %v960 = vadd.f32 %v958, 1e-05
  %v961 = vrsqrt.pop %v959
  %v962 = vrsqrt.pop %v960
  %v963 = vmul.f32 %v947, %v961
  %v964 = vmul.f32 %v948, %v962
  %v965 = vld [vmem:[%s9 + $0x2] sm:$0x1]
  %v966 = vlaneseq
  %v967 = vshrl.u32 %v966, 7
  %v968 = vsub.s32 0, %v967
  %v969 = vrot.slane %v965, %v968
  %v970 = vmul.f32 %v963, %v969
  %v971 = vmul.f32 %v964, %v969
  %v972 = vld [vmem:[%s9 + $0x3] sm:$0x1]
  %v973 = vlaneseq
  %v974 = vshrl.u32 %v973, 7
  %v975 = vsub.s32 0, %v974
  %v976 = vrot.slane %v972, %v975
  %v977 = vadd.f32 %v970, %v976
  %v978 = vadd.f32 %v971, %v976
  %981 = vrot.lane.b32.xlu0 %v977, 120
  %v982 = vpop.permute.xlu0 %981
  %983 = vrot.lane.b32.xlu0 %v978, 120
  %v984 = vpop.permute.xlu0 %983
  %985 = vrot.lane.b32.xlu0 %v977, 112
  %v986 = vpop.permute.xlu0 %985
  %987 = vrot.lane.b32.xlu0 %v978, 112
  %v988 = vpop.permute.xlu0 %987
  %989 = vrot.lane.b32.xlu0 %v977, 104
  %v990 = vpop.permute.xlu0 %989
  %991 = vrot.lane.b32.xlu0 %v978, 104
  %v992 = vpop.permute.xlu0 %991
  %v993 = vsel %vm71, %v977, 0
  %v995 = vsel %vm71, %v978, 0
  %v997 = vsel %vm71, %v982, 0
  %v999 = vsel %vm71, %v984, 0
  %v1001 = vsel %vm71, %v986, 0
  %v1003 = vsel %vm71, %v988, 0
  %v1005 = vsel %vm71, %v990, 0
  %v1007 = vsel %vm71, %v992, 0
  %1009 = vmatprep.subr.mxu0 0.0
  %1010 = vmatpush1.msra.mxu0 0.0
  %1011 = vmatprep.subr.mxu0 0.0
  %1012 = vmatpush1.msra.mxu0 0.0
  %1013 = vmatprep.subr.mxu0 0.0
  %1014 = vmatpush1.msra.mxu0 0.0
  %1015 = vmatprep.subr.mxu0 0.0
  %1016 = vmatpush1.msra.mxu0 0.0
  %1017 = vmatprep.subr.mxu0 0.0
  %1018 = vmatpush1.msra.mxu0 0.0
  %1019 = vmatprep.subr.mxu0 0.0
  %1020 = vmatpush1.msra.mxu0 0.0
  %1021 = vmatprep.subr.mxu0 0.0
  %1022 = vmatpush1.msra.mxu0 0.0
  %1023 = vmatprep.subr.mxu0 0.0
  %1024 = vmatpush1.msra.mxu0 0.0
  %1025 = vmatprep.subr.mxu0 0.0
  %1026 = vmatpush1.msra.mxu0 0.0
  %1027 = vmatprep.subr.mxu0 0.0
  %1028 = vmatpush1.msra.mxu0 0.0
  %1029 = vmatprep.subr.mxu0 0.0
  %1030 = vmatpush1.msra.mxu0 0.0
  %1031 = vmatprep.subr.mxu0 0.0
  %1032 = vmatpush1.msra.mxu0 0.0
  %1033 = vmatprep.subr.mxu0 0.0
  %1034 = vmatpush1.msra.mxu0 0.0
  %1035 = vmatprep.subr.mxu0 0.0
  %1036 = vmatpush1.msra.mxu0 0.0
  %1037 = vmatprep.subr.mxu0 0.0
  %1038 = vmatpush1.msra.mxu0 0.0
  %1039 = vmatprep.subr.mxu0 0.0
  %1040 = vmatpush1.msra.mxu0 %v56
  %1041 = vmatprep.subr.mxu0 0.0
  %1042 = vmatpush2.msra.mxu0 0.0
  %1043 = vmatprep.subr.mxu0 0.0
  %1044 = vmatpush2.msra.mxu0 0.0
  %1045 = vmatprep.subr.mxu0 0.0
  %1046 = vmatpush2.msra.mxu0 0.0
  %1047 = vmatprep.subr.mxu0 0.0
  %1048 = vmatpush2.msra.mxu0 0.0
  %1049 = vmatprep.subr.mxu0 0.0
  %1050 = vmatpush2.msra.mxu0 0.0
  %1051 = vmatprep.subr.mxu0 0.0
  %1052 = vmatpush2.msra.mxu0 0.0
  %1053 = vmatprep.subr.mxu0 0.0
  %1054 = vmatpush2.msra.mxu0 0.0
  %1055 = vmatprep.subr.mxu0 0.0
  %1056 = vmatpush2.msra.mxu0 0.0
  %1057 = vmatprep.subr.mxu0 0.0
  %1058 = vmatpush2.msra.mxu0 0.0
  %1059 = vmatprep.subr.mxu0 0.0
  %1060 = vmatpush2.msra.mxu0 0.0
  %1061 = vmatprep.subr.mxu0 0.0
  %1062 = vmatpush2.msra.mxu0 0.0
  %1063 = vmatprep.subr.mxu0 0.0
  %1064 = vmatpush2.msra.mxu0 0.0
  %1065 = vmatprep.subr.mxu0 0.0
  %1066 = vmatpush2.msra.mxu0 0.0
  %1067 = vmatprep.subr.mxu0 0.0
  %1068 = vmatpush2.msra.mxu0 0.0
  %1069 = vmatprep.subr.mxu0 0.0
  %1070 = vmatpush2.msra.mxu0 0.0
  %1071 = vmatprep.subr.mxu0 0.0
  %1072 = vmatpush2.msra.mxu0 0.0
  %1073 = vmatprep.mubr.f32.mxu0 0.0
  %1074 = vmatmul.mubr.f32.gmra.mxu0 %v993
  %v1075 = vpop.f32.mrf.mxu0
  %v1076 = vadd.f32 0.0, %v1075
  %v1077 = vpop.f32.mrf.mxu0
  %1078 = vmatprep.mubr.f32.mxu0 0.0
  %1079 = vmatmul.mubr.f32.gmra.mxu0 %v995
  %v1080 = vpop.f32.mrf.mxu0
  %v1081 = vadd.f32 0.0, %v1080
  %v1082 = vpop.f32.mrf.mxu0
  %1083 = vmatprep.mubr.f32.mxu0 0.0
  %1084 = vmatmul.mubr.f32.gmra.mxu0 %v997
  %v1085 = vpop.f32.mrf.mxu0
  %v1086 = vadd.f32 0.0, %v1085
  %v1087 = vpop.f32.mrf.mxu0
  %1088 = vmatprep.mubr.f32.mxu0 0.0
  %1089 = vmatmul.mubr.f32.gmra.mxu0 %v999
  %v1090 = vpop.f32.mrf.mxu0
  %v1091 = vadd.f32 0.0, %v1090
  %v1092 = vpop.f32.mrf.mxu0
  %1093 = vmatprep.mubr.f32.mxu0 0.0
  %1094 = vmatmul.mubr.f32.gmra.mxu0 %v1001
  %v1095 = vpop.f32.mrf.mxu0
  %v1096 = vadd.f32 0.0, %v1095
  %v1097 = vpop.f32.mrf.mxu0
  %1098 = vmatprep.mubr.f32.mxu0 0.0
  %1099 = vmatmul.mubr.f32.gmra.mxu0 %v1003
  %v1100 = vpop.f32.mrf.mxu0
  %v1101 = vadd.f32 0.0, %v1100
  %v1102 = vpop.f32.mrf.mxu0
  %1103 = vmatprep.mubr.f32.mxu0 0.0
  %1104 = vmatmul.mubr.f32.gmra.mxu0 %v1005
  %v1105 = vpop.f32.mrf.mxu0
  %v1106 = vadd.f32 0.0, %v1105
  %v1107 = vpop.f32.mrf.mxu0
  %1108 = vmatprep.mubr.f32.mxu0 0.0
  %1109 = vmatmul.mubr.f32.gmra.mxu0 %v1007
  %v1110 = vpop.f32.mrf.mxu0
  %v1111 = vadd.f32 0.0, %v1110
  %v1112 = vpop.f32.mrf.mxu0
  %1113 = vdwg.mxu0
  %v1114 = vld [vmem:[%s1] sm:$0xff]
  %v1115 = vld [vmem:[%s1 + $0x8] sm:$0xff]
  %v1116 = vld [vmem:[%s1 + $0x10] sm:$0xff]
  %v1117 = vld [vmem:[%s1 + $0x18] sm:$0xff]
  %v1118 = vld [vmem:[%s1 + $0x20] sm:$0xff]
  %v1119 = vld [vmem:[%s1 + $0x28] sm:$0xff]
  %v1120 = vld [vmem:[%s1 + $0x30] sm:$0xff]
  %v1121 = vld [vmem:[%s1 + $0x38] sm:$0xff]
  %1130 = vrot.lane.b32.xlu0 %v1076, 104
  %v1131 = vpop.permute.xlu0 %1130
  %1132 = vrot.lane.b32.xlu0 %v1081, 104
  %v1133 = vpop.permute.xlu0 %1132
  %1134 = vrot.lane.b32.xlu0 %v1086, 104
  %v1135 = vpop.permute.xlu0 %1134
  %1136 = vrot.lane.b32.xlu0 %v1091, 104
  %v1137 = vpop.permute.xlu0 %1136
  %1138 = vrot.lane.b32.xlu0 %v1096, 104
  %v1139 = vpop.permute.xlu0 %1138
  %1140 = vrot.lane.b32.xlu0 %v1101, 104
  %v1141 = vpop.permute.xlu0 %1140
  %1142 = vrot.lane.b32.xlu0 %v1106, 104
  %v1143 = vpop.permute.xlu0 %1142
  %1144 = vrot.lane.b32.xlu0 %v1111, 104
  %v1145 = vpop.permute.xlu0 %1144
  %v1146 = vsel %vm71, %v1131, 0
  %v1148 = vsel %vm71, %v1133, 0
  %v1150 = vsel %vm71, %v1135, 0
  %v1152 = vsel %vm71, %v1137, 0
  %v1154 = vsel %vm71, %v1139, 0
  %v1156 = vsel %vm71, %v1141, 0
  %v1158 = vsel %vm71, %v1143, 0
  %v1160 = vsel %vm71, %v1145, 0
  %v1163 = vsel %vm71, %v1114, 0
  %v1166 = vsel %vm71, %v1115, 0
  %v1169 = vsel %vm71, %v1116, 0
  %v1172 = vsel %vm71, %v1117, 0
  %v1175 = vsel %vm71, %v1118, 0
  %v1178 = vsel %vm71, %v1119, 0
  %v1181 = vsel %vm71, %v1120, 0
  %v1184 = vsel %vm71, %v1121, 0
  %1186 = vmatprep.subr.mxu0 0.0
  %1187 = vmatpush1.xpose.msra.mxu0 0.0
  %1188 = vmatprep.subr.mxu0 0.0
  %1189 = vmatpush1.xpose.msra.mxu0 0.0
  %1190 = vmatprep.subr.mxu0 0.0
  %1191 = vmatpush1.xpose.msra.mxu0 0.0
  %1192 = vmatprep.subr.mxu0 0.0
  %1193 = vmatpush1.xpose.msra.mxu0 0.0
  %1194 = vmatprep.subr.mxu0 0.0
  %1195 = vmatpush1.xpose.msra.mxu0 0.0
  %1196 = vmatprep.subr.mxu0 0.0
  %1197 = vmatpush1.xpose.msra.mxu0 0.0
  %1198 = vmatprep.subr.mxu0 0.0
  %1199 = vmatpush1.xpose.msra.mxu0 0.0
  %1200 = vmatprep.subr.mxu0 0.0
  %1201 = vmatpush1.xpose.msra.mxu0 0.0
  %1202 = vmatprep.subr.mxu0 0.0
  %1203 = vmatpush1.xpose.msra.mxu0 %v1184
  %1204 = vmatprep.subr.mxu0 0.0
  %1205 = vmatpush1.xpose.msra.mxu0 %v1181
  %1206 = vmatprep.subr.mxu0 0.0
  %1207 = vmatpush1.xpose.msra.mxu0 %v1178
  %1208 = vmatprep.subr.mxu0 0.0
  %1209 = vmatpush1.xpose.msra.mxu0 %v1175
  %1210 = vmatprep.subr.mxu0 0.0
  %1211 = vmatpush1.xpose.msra.mxu0 %v1172
  %1212 = vmatprep.subr.mxu0 0.0
  %1213 = vmatpush1.xpose.msra.mxu0 %v1169
  %1214 = vmatprep.subr.mxu0 0.0
  %1215 = vmatpush1.xpose.msra.mxu0 %v1166
  %1216 = vmatprep.subr.mxu0 0.0
  %1217 = vmatpush1.xpose.msra.mxu0 %v1163
  %1218 = vmatprep.subr.mxu0 0.0
  %1219 = vmatpush2.xpose.msra.mxu0 0.0
  %1220 = vmatprep.subr.mxu0 0.0
  %1221 = vmatpush2.xpose.msra.mxu0 0.0
  %1222 = vmatprep.subr.mxu0 0.0
  %1223 = vmatpush2.xpose.msra.mxu0 0.0
  %1224 = vmatprep.subr.mxu0 0.0
  %1225 = vmatpush2.xpose.msra.mxu0 0.0
  %1226 = vmatprep.subr.mxu0 0.0
  %1227 = vmatpush2.xpose.msra.mxu0 0.0
  %1228 = vmatprep.subr.mxu0 0.0
  %1229 = vmatpush2.xpose.msra.mxu0 0.0
  %1230 = vmatprep.subr.mxu0 0.0
  %1231 = vmatpush2.xpose.msra.mxu0 0.0
  %1232 = vmatprep.subr.mxu0 0.0
  %1233 = vmatpush2.xpose.msra.mxu0 0.0
  %1234 = vmatprep.subr.mxu0 0.0
  %1235 = vmatpush2.xpose.msra.mxu0 0.0
  %1236 = vmatprep.subr.mxu0 0.0
  %1237 = vmatpush2.xpose.msra.mxu0 0.0
  %1238 = vmatprep.subr.mxu0 0.0
  %1239 = vmatpush2.xpose.msra.mxu0 0.0
  %1240 = vmatprep.subr.mxu0 0.0
  %1241 = vmatpush2.xpose.msra.mxu0 0.0
  %1242 = vmatprep.subr.mxu0 0.0
  %1243 = vmatpush2.xpose.msra.mxu0 0.0
  %1244 = vmatprep.subr.mxu0 0.0
  %1245 = vmatpush2.xpose.msra.mxu0 0.0
  %1246 = vmatprep.subr.mxu0 0.0
  %1247 = vmatpush2.xpose.msra.mxu0 0.0
  %1248 = vmatprep.subr.mxu0 0.0
  %1249 = vmatpush2.xpose.msra.mxu0 0.0
  %1250 = vmatprep.mubr.f32.mxu0 0.0
  %1251 = vmatmul.mubr.f32.gmra.mxu0 %v1146
  %v1252 = vpop.f32.mrf.mxu0
  %v1253 = vadd.f32 %v48, %v1252
  %v1254 = vpop.f32.mrf.mxu0
  %1255 = vmatprep.mubr.f32.mxu0 0.0
  %1256 = vmatmul.mubr.f32.gmra.mxu0 %v1148
  %v1257 = vpop.f32.mrf.mxu0
  %v1258 = vadd.f32 %v49, %v1257
  %v1259 = vpop.f32.mrf.mxu0
  %1260 = vmatprep.mubr.f32.mxu0 0.0
  %1261 = vmatmul.mubr.f32.gmra.mxu0 %v1150
  %v1262 = vpop.f32.mrf.mxu0
  %v1263 = vadd.f32 %v50, %v1262
  %v1264 = vpop.f32.mrf.mxu0
  %1265 = vmatprep.mubr.f32.mxu0 0.0
  %1266 = vmatmul.mubr.f32.gmra.mxu0 %v1152
  %v1267 = vpop.f32.mrf.mxu0
  %v1268 = vadd.f32 %v51, %v1267
  %v1269 = vpop.f32.mrf.mxu0
  %1270 = vmatprep.mubr.f32.mxu0 0.0
  %1271 = vmatmul.mubr.f32.gmra.mxu0 %v1154
  %v1272 = vpop.f32.mrf.mxu0
  %v1273 = vadd.f32 %v52, %v1272
  %v1274 = vpop.f32.mrf.mxu0
  %1275 = vmatprep.mubr.f32.mxu0 0.0
  %1276 = vmatmul.mubr.f32.gmra.mxu0 %v1156
  %v1277 = vpop.f32.mrf.mxu0
  %v1278 = vadd.f32 %v53, %v1277
  %v1279 = vpop.f32.mrf.mxu0
  %1280 = vmatprep.mubr.f32.mxu0 0.0
  %1281 = vmatmul.mubr.f32.gmra.mxu0 %v1158
  %v1282 = vpop.f32.mrf.mxu0
  %v1283 = vadd.f32 %v54, %v1282
  %v1284 = vpop.f32.mrf.mxu0
  %1285 = vmatprep.mubr.f32.mxu0 0.0
  %1286 = vmatmul.mubr.f32.gmra.mxu0 %v1160
  %v1287 = vpop.f32.mrf.mxu0
  %v1288 = vadd.f32 %v55, %v1287
  %v1289 = vpop.f32.mrf.mxu0
  %1290 = vdwg.mxu0
  %v1291 = vsel %vm354, %v1253, -inf
  %1292 = vmax.xlane.f32.xlu0 %v1291
  %v1293 = vpop.xlane.xlu0 %1292
  %v1294 = vsel %vm354, %v1258, -inf
  %1295 = vmax.xlane.f32.xlu0 %v1294
  %v1296 = vpop.xlane.xlu0 %1295
  %v1297 = vsel %vm354, %v1263, -inf
  %1298 = vmax.xlane.f32.xlu0 %v1297
  %v1299 = vpop.xlane.xlu0 %1298
  %v1300 = vsel %vm354, %v1268, -inf
  %1301 = vmax.xlane.f32.xlu0 %v1300
  %v1302 = vpop.xlane.xlu0 %1301
  %v1303 = vsel %vm354, %v1273, -inf
  %1304 = vmax.xlane.f32.xlu0 %v1303
  %v1305 = vpop.xlane.xlu0 %1304
  %v1306 = vsel %vm354, %v1278, -inf
  %1307 = vmax.xlane.f32.xlu0 %v1306
  %v1308 = vpop.xlane.xlu0 %1307
  %v1309 = vsel %vm354, %v1283, -inf
  %1310 = vmax.xlane.f32.xlu0 %v1309
  %v1311 = vpop.xlane.xlu0 %1310
  %v1312 = vsel %vm354, %v1288, -inf
  %1313 = vmax.xlane.f32.xlu0 %v1312
  %v1314 = vpop.xlane.xlu0 %1313
  %v1315 = vsub.f32 %v1253, %v1293
  %v1316 = vsub.f32 %v1258, %v1296
  %v1317 = vsub.f32 %v1263, %v1299
  %v1318 = vsub.f32 %v1268, %v1302
  %v1319 = vsub.f32 %v1273, %v1305
  %v1320 = vsub.f32 %v1278, %v1308
  %v1321 = vsub.f32 %v1283, %v1311
  %v1322 = vsub.f32 %v1288, %v1314
  %v1323 = vmul.f32 %v1315, 1.442695
  %v1324 = vpow.pop %v1323
  %v1325 = vmul.f32 %v1316, 1.442695
  %v1326 = vpow.pop %v1325
  %v1327 = vmul.f32 %v1317, 1.442695
  %v1328 = vpow.pop %v1327
  %v1329 = vmul.f32 %v1318, 1.442695
  %v1330 = vpow.pop %v1329
  %v1331 = vmul.f32 %v1319, 1.442695
  %v1332 = vpow.pop %v1331
  %v1333 = vmul.f32 %v1320, 1.442695
  %v1334 = vpow.pop %v1333
  %v1335 = vmul.f32 %v1321, 1.442695
  %v1336 = vpow.pop %v1335
  %v1337 = vmul.f32 %v1322, 1.442695
  %v1338 = vpow.pop %v1337
  %v1339 = vsel %vm354, %v1324, 0.0
  %1340 = vadd.xlane.f32.xlu0 %v1339
  %v1341 = vpop.xlane.xlu0 %1340
  %v1342 = vsel %vm354, %v1326, 0.0
  %1343 = vadd.xlane.f32.xlu0 %v1342
  %v1344 = vpop.xlane.xlu0 %1343
  %v1345 = vsel %vm354, %v1328, 0.0
  %1346 = vadd.xlane.f32.xlu0 %v1345
  %v1347 = vpop.xlane.xlu0 %1346
  %v1348 = vsel %vm354, %v1330, 0.0
  %1349 = vadd.xlane.f32.xlu0 %v1348
  %v1350 = vpop.xlane.xlu0 %1349
  %v1351 = vsel %vm354, %v1332, 0.0
  %1352 = vadd.xlane.f32.xlu0 %v1351
  %v1353 = vpop.xlane.xlu0 %1352
  %v1354 = vsel %vm354, %v1334, 0.0
  %1355 = vadd.xlane.f32.xlu0 %v1354
  %v1356 = vpop.xlane.xlu0 %1355
  %v1357 = vsel %vm354, %v1336, 0.0
  %1358 = vadd.xlane.f32.xlu0 %v1357
  %v1359 = vpop.xlane.xlu0 %1358
  %v1360 = vsel %vm354, %v1338, 0.0
  %1361 = vadd.xlane.f32.xlu0 %v1360
  %v1362 = vpop.xlane.xlu0 %1361
  %v1363 = vrcp.pop %v1341
  %v1364 = vrcp.pop %v1344
  %v1365 = vrcp.pop %v1347
  %v1366 = vrcp.pop %v1350
  %v1367 = vrcp.pop %v1353
  %v1368 = vrcp.pop %v1356
  %v1369 = vrcp.pop %v1359
  %v1370 = vrcp.pop %v1362
  %v1371 = vmul.f32 %v1324, %v1363
  %v1372 = vmul.f32 %v1326, %v1364
  %v1373 = vmul.f32 %v1328, %v1365
  %v1374 = vmul.f32 %v1330, %v1366
  %v1375 = vmul.f32 %v1332, %v1367
  %v1376 = vmul.f32 %v1334, %v1368
  %v1377 = vmul.f32 %v1336, %v1369
  %v1378 = vmul.f32 %v1338, %v1370
  %1379 = vrot.lane.b32.xlu0 %v1114, 120
  %v1380 = vpop.permute.xlu0 %1379
  %1381 = vrot.lane.b32.xlu0 %v1115, 120
  %v1382 = vpop.permute.xlu0 %1381
  %1383 = vrot.lane.b32.xlu0 %v1116, 120
  %v1384 = vpop.permute.xlu0 %1383
  %1385 = vrot.lane.b32.xlu0 %v1117, 120
  %v1386 = vpop.permute.xlu0 %1385
  %1387 = vrot.lane.b32.xlu0 %v1118, 120
  %v1388 = vpop.permute.xlu0 %1387
  %1389 = vrot.lane.b32.xlu0 %v1119, 120
  %v1390 = vpop.permute.xlu0 %1389
  %1391 = vrot.lane.b32.xlu0 %v1120, 120
  %v1392 = vpop.permute.xlu0 %1391
  %1393 = vrot.lane.b32.xlu0 %v1121, 120
  %v1394 = vpop.permute.xlu0 %1393
  %v1404 = vsel %vm354, %v1371, 0
  %v1407 = vsel %vm354, %v1372, 0
  %v1410 = vsel %vm354, %v1373, 0
  %v1413 = vsel %vm354, %v1374, 0
  %v1416 = vsel %vm354, %v1375, 0
  %v1419 = vsel %vm354, %v1376, 0
  %v1422 = vsel %vm354, %v1377, 0
  %v1425 = vsel %vm354, %v1378, 0
  %1427 = vmatprep.subr.mxu0 0.0
  %1428 = vmatpush1.msra.mxu0 0.0
  %1429 = vmatprep.subr.mxu0 0.0
  %1430 = vmatpush1.msra.mxu0 0.0
  %1431 = vmatprep.subr.mxu0 0.0
  %1432 = vmatpush1.msra.mxu0 0.0
  %1433 = vmatprep.subr.mxu0 0.0
  %1434 = vmatpush1.msra.mxu0 0.0
  %1435 = vmatprep.subr.mxu0 0.0
  %1436 = vmatpush1.msra.mxu0 0.0
  %1437 = vmatprep.subr.mxu0 0.0
  %1438 = vmatpush1.msra.mxu0 0.0
  %1439 = vmatprep.subr.mxu0 0.0
  %1440 = vmatpush1.msra.mxu0 0.0
  %1441 = vmatprep.subr.mxu0 0.0
  %1442 = vmatpush1.msra.mxu0 0.0
  %1443 = vmatprep.subr.mxu0 0.0
  %1444 = vmatpush1.msra.mxu0 %v1394
  %1445 = vmatprep.subr.mxu0 0.0
  %1446 = vmatpush1.msra.mxu0 %v1392
  %1447 = vmatprep.subr.mxu0 0.0
  %1448 = vmatpush1.msra.mxu0 %v1390
  %1449 = vmatprep.subr.mxu0 0.0
  %1450 = vmatpush1.msra.mxu0 %v1388
  %1451 = vmatprep.subr.mxu0 0.0
  %1452 = vmatpush1.msra.mxu0 %v1386
  %1453 = vmatprep.subr.mxu0 0.0
  %1454 = vmatpush1.msra.mxu0 %v1384
  %1455 = vmatprep.subr.mxu0 0.0
  %1456 = vmatpush1.msra.mxu0 %v1382
  %1457 = vmatprep.subr.mxu0 0.0
  %1458 = vmatpush1.msra.mxu0 %v1380
  %1459 = vmatprep.subr.mxu0 0.0
  %1460 = vmatpush2.msra.mxu0 0.0
  %1461 = vmatprep.subr.mxu0 0.0
  %1462 = vmatpush2.msra.mxu0 0.0
  %1463 = vmatprep.subr.mxu0 0.0
  %1464 = vmatpush2.msra.mxu0 0.0
  %1465 = vmatprep.subr.mxu0 0.0
  %1466 = vmatpush2.msra.mxu0 0.0
  %1467 = vmatprep.subr.mxu0 0.0
  %1468 = vmatpush2.msra.mxu0 0.0
  %1469 = vmatprep.subr.mxu0 0.0
  %1470 = vmatpush2.msra.mxu0 0.0
  %1471 = vmatprep.subr.mxu0 0.0
  %1472 = vmatpush2.msra.mxu0 0.0
  %1473 = vmatprep.subr.mxu0 0.0
  %1474 = vmatpush2.msra.mxu0 0.0
  %1475 = vmatprep.subr.mxu0 0.0
  %1476 = vmatpush2.msra.mxu0 0.0
  %1477 = vmatprep.subr.mxu0 0.0
  %1478 = vmatpush2.msra.mxu0 0.0
  %1479 = vmatprep.subr.mxu0 0.0
  %1480 = vmatpush2.msra.mxu0 0.0
  %1481 = vmatprep.subr.mxu0 0.0
  %1482 = vmatpush2.msra.mxu0 0.0
  %1483 = vmatprep.subr.mxu0 0.0
  %1484 = vmatpush2.msra.mxu0 0.0
  %1485 = vmatprep.subr.mxu0 0.0
  %1486 = vmatpush2.msra.mxu0 0.0
  %1487 = vmatprep.subr.mxu0 0.0
  %1488 = vmatpush2.msra.mxu0 0.0
  %1489 = vmatprep.subr.mxu0 0.0
  %1490 = vmatpush2.msra.mxu0 0.0
  %1491 = vmatprep.mubr.f32.mxu0 0.0
  %1492 = vmatmul.mubr.f32.gmra.mxu0 %v1404
  %v1493 = vpop.f32.mrf.mxu0
  %v1494 = vadd.f32 0.0, %v1493
  %v1495 = vpop.f32.mrf.mxu0
  %1496 = vmatprep.mubr.f32.mxu0 0.0
  %1497 = vmatmul.mubr.f32.gmra.mxu0 %v1407
  %v1498 = vpop.f32.mrf.mxu0
  %v1499 = vadd.f32 0.0, %v1498
  %v1500 = vpop.f32.mrf.mxu0
  %1501 = vmatprep.mubr.f32.mxu0 0.0
  %1502 = vmatmul.mubr.f32.gmra.mxu0 %v1410
  %v1503 = vpop.f32.mrf.mxu0
  %v1504 = vadd.f32 0.0, %v1503
  %v1505 = vpop.f32.mrf.mxu0
  %1506 = vmatprep.mubr.f32.mxu0 0.0
  %1507 = vmatmul.mubr.f32.gmra.mxu0 %v1413
  %v1508 = vpop.f32.mrf.mxu0
  %v1509 = vadd.f32 0.0, %v1508
  %v1510 = vpop.f32.mrf.mxu0
  %1511 = vmatprep.mubr.f32.mxu0 0.0
  %1512 = vmatmul.mubr.f32.gmra.mxu0 %v1416
  %v1513 = vpop.f32.mrf.mxu0
  %v1514 = vadd.f32 0.0, %v1513
  %v1515 = vpop.f32.mrf.mxu0
  %1516 = vmatprep.mubr.f32.mxu0 0.0
  %1517 = vmatmul.mubr.f32.gmra.mxu0 %v1419
  %v1518 = vpop.f32.mrf.mxu0
  %v1519 = vadd.f32 0.0, %v1518
  %v1520 = vpop.f32.mrf.mxu0
  %1521 = vmatprep.mubr.f32.mxu0 0.0
  %1522 = vmatmul.mubr.f32.gmra.mxu0 %v1422
  %v1523 = vpop.f32.mrf.mxu0
  %v1524 = vadd.f32 0.0, %v1523
  %v1525 = vpop.f32.mrf.mxu0
  %1526 = vmatprep.mubr.f32.mxu0 0.0
  %1527 = vmatmul.mubr.f32.gmra.mxu0 %v1425
  %v1528 = vpop.f32.mrf.mxu0
  %v1529 = vadd.f32 0.0, %v1528
  %v1530 = vpop.f32.mrf.mxu0
  %1531 = vdwg.mxu0
  %s1532 = scalar_lea.vmem %s5, 32
  %v1533 = vld [vmem:[%s1532] sm:$0xff]
  %v1534 = vld [vmem:[%s1532 + $0x8] sm:$0xff]
  %v1535 = vld [vmem:[%s1532 + $0x10] sm:$0xff]
  %v1536 = vld [vmem:[%s1532 + $0x18] sm:$0xff]
  %v1538 = vsel %vm71, %v1504, 0
  %v1541 = vsel %vm71, %v1509, 0
  %1543 = vmatprep.subr.mxu0 0.0
  %1544 = vmatpush1.msra.mxu0 0.0
  %1545 = vmatprep.subr.mxu0 0.0
  %1546 = vmatpush1.msra.mxu0 0.0
  %1547 = vmatprep.subr.mxu0 0.0
  %1548 = vmatpush1.msra.mxu0 0.0
  %1549 = vmatprep.subr.mxu0 0.0
  %1550 = vmatpush1.msra.mxu0 0.0
  %1551 = vmatprep.subr.mxu0 0.0
  %1552 = vmatpush1.msra.mxu0 0.0
  %1553 = vmatprep.subr.mxu0 0.0
  %1554 = vmatpush1.msra.mxu0 0.0
  %1555 = vmatprep.subr.mxu0 0.0
  %1556 = vmatpush1.msra.mxu0 0.0
  %1557 = vmatprep.subr.mxu0 0.0
  %1558 = vmatpush1.msra.mxu0 0.0
  %1559 = vmatprep.subr.mxu0 0.0
  %1560 = vmatpush1.msra.mxu0 0.0
  %1561 = vmatprep.subr.mxu0 0.0
  %1562 = vmatpush1.msra.mxu0 0.0
  %1563 = vmatprep.subr.mxu0 0.0
  %1564 = vmatpush1.msra.mxu0 0.0
  %1565 = vmatprep.subr.mxu0 0.0
  %1566 = vmatpush1.msra.mxu0 0.0
  %1567 = vmatprep.subr.mxu0 0.0
  %1568 = vmatpush1.msra.mxu0 0.0
  %1569 = vmatprep.subr.mxu0 0.0
  %1570 = vmatpush1.msra.mxu0 0.0
  %1571 = vmatprep.subr.mxu0 0.0
  %1572 = vmatpush1.msra.mxu0 0.0
  %1573 = vmatprep.subr.mxu0 0.0
  %1574 = vmatpush1.msra.mxu0 %v1534
  %1575 = vmatprep.subr.mxu0 0.0
  %1576 = vmatpush2.msra.mxu0 0.0
  %1577 = vmatprep.subr.mxu0 0.0
  %1578 = vmatpush2.msra.mxu0 0.0
  %1579 = vmatprep.subr.mxu0 0.0
  %1580 = vmatpush2.msra.mxu0 0.0
  %1581 = vmatprep.subr.mxu0 0.0
  %1582 = vmatpush2.msra.mxu0 0.0
  %1583 = vmatprep.subr.mxu0 0.0
  %1584 = vmatpush2.msra.mxu0 0.0
  %1585 = vmatprep.subr.mxu0 0.0
  %1586 = vmatpush2.msra.mxu0 0.0
  %1587 = vmatprep.subr.mxu0 0.0
  %1588 = vmatpush2.msra.mxu0 0.0
  %1589 = vmatprep.subr.mxu0 0.0
  %1590 = vmatpush2.msra.mxu0 0.0
  %1591 = vmatprep.subr.mxu0 0.0
  %1592 = vmatpush2.msra.mxu0 0.0
  %1593 = vmatprep.subr.mxu0 0.0
  %1594 = vmatpush2.msra.mxu0 0.0
  %1595 = vmatprep.subr.mxu0 0.0
  %1596 = vmatpush2.msra.mxu0 0.0
  %1597 = vmatprep.subr.mxu0 0.0
  %1598 = vmatpush2.msra.mxu0 0.0
  %1599 = vmatprep.subr.mxu0 0.0
  %1600 = vmatpush2.msra.mxu0 0.0
  %1601 = vmatprep.subr.mxu0 0.0
  %1602 = vmatpush2.msra.mxu0 0.0
  %1603 = vmatprep.subr.mxu0 0.0
  %1604 = vmatpush2.msra.mxu0 0.0
  %1605 = vmatprep.subr.mxu0 0.0
  %1606 = vmatpush2.msra.mxu0 0.0
  %1607 = vmatprep.mubr.f32.mxu0 0.0
  %1608 = vmatmul.mubr.f32.gmra.mxu0 %v1538
  %v1609 = vpop.f32.mrf.mxu0
  %v1610 = vadd.f32 0.0, %v1609
  %v1611 = vpop.f32.mrf.mxu0
  %1612 = vmatprep.mubr.f32.mxu0 0.0
  %1613 = vmatmul.mubr.f32.gmra.mxu0 %v1541
  %v1614 = vpop.f32.mrf.mxu0
  %v1615 = vadd.f32 0.0, %v1614
  %v1616 = vpop.f32.mrf.mxu0
  %1617 = vdwg.mxu0
  %v1619 = vsel %vm71, %v1494, 0
  %v1622 = vsel %vm71, %v1499, 0
  %1624 = vmatprep.subr.mxu0 0.0
  %1625 = vmatpush1.msra.mxu0 0.0
  %1626 = vmatprep.subr.mxu0 0.0
  %1627 = vmatpush1.msra.mxu0 0.0
  %1628 = vmatprep.subr.mxu0 0.0
  %1629 = vmatpush1.msra.mxu0 0.0
  %1630 = vmatprep.subr.mxu0 0.0
  %1631 = vmatpush1.msra.mxu0 0.0
  %1632 = vmatprep.subr.mxu0 0.0
  %1633 = vmatpush1.msra.mxu0 0.0
  %1634 = vmatprep.subr.mxu0 0.0
  %1635 = vmatpush1.msra.mxu0 0.0
  %1636 = vmatprep.subr.mxu0 0.0
  %1637 = vmatpush1.msra.mxu0 0.0
  %1638 = vmatprep.subr.mxu0 0.0
  %1639 = vmatpush1.msra.mxu0 0.0
  %1640 = vmatprep.subr.mxu0 0.0
  %1641 = vmatpush1.msra.mxu0 0.0
  %1642 = vmatprep.subr.mxu0 0.0
  %1643 = vmatpush1.msra.mxu0 0.0
  %1644 = vmatprep.subr.mxu0 0.0
  %1645 = vmatpush1.msra.mxu0 0.0
  %1646 = vmatprep.subr.mxu0 0.0
  %1647 = vmatpush1.msra.mxu0 0.0
  %1648 = vmatprep.subr.mxu0 0.0
  %1649 = vmatpush1.msra.mxu0 0.0
  %1650 = vmatprep.subr.mxu0 0.0
  %1651 = vmatpush1.msra.mxu0 0.0
  %1652 = vmatprep.subr.mxu0 0.0
  %1653 = vmatpush1.msra.mxu0 0.0
  %1654 = vmatprep.subr.mxu0 0.0
  %1655 = vmatpush1.msra.mxu0 %v1533
  %1656 = vmatprep.subr.mxu0 0.0
  %1657 = vmatpush2.msra.mxu0 0.0
  %1658 = vmatprep.subr.mxu0 0.0
  %1659 = vmatpush2.msra.mxu0 0.0
  %1660 = vmatprep.subr.mxu0 0.0
  %1661 = vmatpush2.msra.mxu0 0.0
  %1662 = vmatprep.subr.mxu0 0.0
  %1663 = vmatpush2.msra.mxu0 0.0
  %1664 = vmatprep.subr.mxu0 0.0
  %1665 = vmatpush2.msra.mxu0 0.0
  %1666 = vmatprep.subr.mxu0 0.0
  %1667 = vmatpush2.msra.mxu0 0.0
  %1668 = vmatprep.subr.mxu0 0.0
  %1669 = vmatpush2.msra.mxu0 0.0
  %1670 = vmatprep.subr.mxu0 0.0
  %1671 = vmatpush2.msra.mxu0 0.0
  %1672 = vmatprep.subr.mxu0 0.0
  %1673 = vmatpush2.msra.mxu0 0.0
  %1674 = vmatprep.subr.mxu0 0.0
  %1675 = vmatpush2.msra.mxu0 0.0
  %1676 = vmatprep.subr.mxu0 0.0
  %1677 = vmatpush2.msra.mxu0 0.0
  %1678 = vmatprep.subr.mxu0 0.0
  %1679 = vmatpush2.msra.mxu0 0.0
  %1680 = vmatprep.subr.mxu0 0.0
  %1681 = vmatpush2.msra.mxu0 0.0
  %1682 = vmatprep.subr.mxu0 0.0
  %1683 = vmatpush2.msra.mxu0 0.0
  %1684 = vmatprep.subr.mxu0 0.0
  %1685 = vmatpush2.msra.mxu0 0.0
  %1686 = vmatprep.subr.mxu0 0.0
  %1687 = vmatpush2.msra.mxu0 0.0
  %1688 = vmatprep.mubr.f32.mxu0 0.0
  %1689 = vmatmul.mubr.f32.gmra.mxu0 %v1619
  %v1690 = vpop.f32.mrf.mxu0
  %v1691 = vadd.f32 %v1610, %v1690
  %v1692 = vpop.f32.mrf.mxu0
  %1693 = vmatprep.mubr.f32.mxu0 0.0
  %1694 = vmatmul.mubr.f32.gmra.mxu0 %v1622
  %v1695 = vpop.f32.mrf.mxu0
  %v1696 = vadd.f32 %v1615, %v1695
  %v1697 = vpop.f32.mrf.mxu0
  %1698 = vdwg.mxu0
  %v1700 = vsel %vm71, %v1514, 0
  %v1703 = vsel %vm71, %v1519, 0
  %1705 = vmatprep.subr.mxu0 0.0
  %1706 = vmatpush1.msra.mxu0 0.0
  %1707 = vmatprep.subr.mxu0 0.0
  %1708 = vmatpush1.msra.mxu0 0.0
  %1709 = vmatprep.subr.mxu0 0.0
  %1710 = vmatpush1.msra.mxu0 0.0
  %1711 = vmatprep.subr.mxu0 0.0
  %1712 = vmatpush1.msra.mxu0 0.0
  %1713 = vmatprep.subr.mxu0 0.0
  %1714 = vmatpush1.msra.mxu0 0.0
  %1715 = vmatprep.subr.mxu0 0.0
  %1716 = vmatpush1.msra.mxu0 0.0
  %1717 = vmatprep.subr.mxu0 0.0
  %1718 = vmatpush1.msra.mxu0 0.0
  %1719 = vmatprep.subr.mxu0 0.0
  %1720 = vmatpush1.msra.mxu0 0.0
  %1721 = vmatprep.subr.mxu0 0.0
  %1722 = vmatpush1.msra.mxu0 0.0
  %1723 = vmatprep.subr.mxu0 0.0
  %1724 = vmatpush1.msra.mxu0 0.0
  %1725 = vmatprep.subr.mxu0 0.0
  %1726 = vmatpush1.msra.mxu0 0.0
  %1727 = vmatprep.subr.mxu0 0.0
  %1728 = vmatpush1.msra.mxu0 0.0
  %1729 = vmatprep.subr.mxu0 0.0
  %1730 = vmatpush1.msra.mxu0 0.0
  %1731 = vmatprep.subr.mxu0 0.0
  %1732 = vmatpush1.msra.mxu0 0.0
  %1733 = vmatprep.subr.mxu0 0.0
  %1734 = vmatpush1.msra.mxu0 0.0
  %1735 = vmatprep.subr.mxu0 0.0
  %1736 = vmatpush1.msra.mxu0 %v1535
  %1737 = vmatprep.subr.mxu0 0.0
  %1738 = vmatpush2.msra.mxu0 0.0
  %1739 = vmatprep.subr.mxu0 0.0
  %1740 = vmatpush2.msra.mxu0 0.0
  %1741 = vmatprep.subr.mxu0 0.0
  %1742 = vmatpush2.msra.mxu0 0.0
  %1743 = vmatprep.subr.mxu0 0.0
  %1744 = vmatpush2.msra.mxu0 0.0
  %1745 = vmatprep.subr.mxu0 0.0
  %1746 = vmatpush2.msra.mxu0 0.0
  %1747 = vmatprep.subr.mxu0 0.0
  %1748 = vmatpush2.msra.mxu0 0.0
  %1749 = vmatprep.subr.mxu0 0.0
  %1750 = vmatpush2.msra.mxu0 0.0
  %1751 = vmatprep.subr.mxu0 0.0
  %1752 = vmatpush2.msra.mxu0 0.0
  %1753 = vmatprep.subr.mxu0 0.0
  %1754 = vmatpush2.msra.mxu0 0.0
  %1755 = vmatprep.subr.mxu0 0.0
  %1756 = vmatpush2.msra.mxu0 0.0
  %1757 = vmatprep.subr.mxu0 0.0
  %1758 = vmatpush2.msra.mxu0 0.0
  %1759 = vmatprep.subr.mxu0 0.0
  %1760 = vmatpush2.msra.mxu0 0.0
  %1761 = vmatprep.subr.mxu0 0.0
  %1762 = vmatpush2.msra.mxu0 0.0
  %1763 = vmatprep.subr.mxu0 0.0
  %1764 = vmatpush2.msra.mxu0 0.0
  %1765 = vmatprep.subr.mxu0 0.0
  %1766 = vmatpush2.msra.mxu0 0.0
  %1767 = vmatprep.subr.mxu0 0.0
  %1768 = vmatpush2.msra.mxu0 0.0
  %1769 = vmatprep.mubr.f32.mxu0 0.0
  %1770 = vmatmul.mubr.f32.gmra.mxu0 %v1700
  %v1771 = vpop.f32.mrf.mxu0
  %v1772 = vadd.f32 0.0, %v1771
  %v1773 = vpop.f32.mrf.mxu0
  %1774 = vmatprep.mubr.f32.mxu0 0.0
  %1775 = vmatmul.mubr.f32.gmra.mxu0 %v1703
  %v1776 = vpop.f32.mrf.mxu0
  %v1777 = vadd.f32 0.0, %v1776
  %v1778 = vpop.f32.mrf.mxu0
  %1779 = vdwg.mxu0
  %v1780 = vadd.f32 %v1691, %v1772
  %v1781 = vadd.f32 %v1696, %v1777
  %v1783 = vsel %vm71, %v1524, 0
  %v1786 = vsel %vm71, %v1529, 0
  %1788 = vmatprep.subr.mxu0 0.0
  %1789 = vmatpush1.msra.mxu0 0.0
  %1790 = vmatprep.subr.mxu0 0.0
  %1791 = vmatpush1.msra.mxu0 0.0
  %1792 = vmatprep.subr.mxu0 0.0
  %1793 = vmatpush1.msra.mxu0 0.0
  %1794 = vmatprep.subr.mxu0 0.0
  %1795 = vmatpush1.msra.mxu0 0.0
  %1796 = vmatprep.subr.mxu0 0.0
  %1797 = vmatpush1.msra.mxu0 0.0
  %1798 = vmatprep.subr.mxu0 0.0
  %1799 = vmatpush1.msra.mxu0 0.0
  %1800 = vmatprep.subr.mxu0 0.0
  %1801 = vmatpush1.msra.mxu0 0.0
  %1802 = vmatprep.subr.mxu0 0.0
  %1803 = vmatpush1.msra.mxu0 0.0
  %1804 = vmatprep.subr.mxu0 0.0
  %1805 = vmatpush1.msra.mxu0 0.0
  %1806 = vmatprep.subr.mxu0 0.0
  %1807 = vmatpush1.msra.mxu0 0.0
  %1808 = vmatprep.subr.mxu0 0.0
  %1809 = vmatpush1.msra.mxu0 0.0
  %1810 = vmatprep.subr.mxu0 0.0
  %1811 = vmatpush1.msra.mxu0 0.0
  %1812 = vmatprep.subr.mxu0 0.0
  %1813 = vmatpush1.msra.mxu0 0.0
  %1814 = vmatprep.subr.mxu0 0.0
  %1815 = vmatpush1.msra.mxu0 0.0
  %1816 = vmatprep.subr.mxu0 0.0
  %1817 = vmatpush1.msra.mxu0 0.0
  %1818 = vmatprep.subr.mxu0 0.0
  %1819 = vmatpush1.msra.mxu0 %v1536
  %1820 = vmatprep.subr.mxu0 0.0
  %1821 = vmatpush2.msra.mxu0 0.0
  %1822 = vmatprep.subr.mxu0 0.0
  %1823 = vmatpush2.msra.mxu0 0.0
  %1824 = vmatprep.subr.mxu0 0.0
  %1825 = vmatpush2.msra.mxu0 0.0
  %1826 = vmatprep.subr.mxu0 0.0
  %1827 = vmatpush2.msra.mxu0 0.0
  %1828 = vmatprep.subr.mxu0 0.0
  %1829 = vmatpush2.msra.mxu0 0.0
  %1830 = vmatprep.subr.mxu0 0.0
  %1831 = vmatpush2.msra.mxu0 0.0
  %1832 = vmatprep.subr.mxu0 0.0
  %1833 = vmatpush2.msra.mxu0 0.0
  %1834 = vmatprep.subr.mxu0 0.0
  %1835 = vmatpush2.msra.mxu0 0.0
  %1836 = vmatprep.subr.mxu0 0.0
  %1837 = vmatpush2.msra.mxu0 0.0
  %1838 = vmatprep.subr.mxu0 0.0
  %1839 = vmatpush2.msra.mxu0 0.0
  %1840 = vmatprep.subr.mxu0 0.0
  %1841 = vmatpush2.msra.mxu0 0.0
  %1842 = vmatprep.subr.mxu0 0.0
  %1843 = vmatpush2.msra.mxu0 0.0
  %1844 = vmatprep.subr.mxu0 0.0
  %1845 = vmatpush2.msra.mxu0 0.0
  %1846 = vmatprep.subr.mxu0 0.0
  %1847 = vmatpush2.msra.mxu0 0.0
  %1848 = vmatprep.subr.mxu0 0.0
  %1849 = vmatpush2.msra.mxu0 0.0
  %1850 = vmatprep.subr.mxu0 0.0
  %1851 = vmatpush2.msra.mxu0 0.0
  %1852 = vmatprep.mubr.f32.mxu0 0.0
  %1853 = vmatmul.mubr.f32.gmra.mxu0 %v1783
  %v1854 = vpop.f32.mrf.mxu0
  %v1855 = vadd.f32 0.0, %v1854
  %v1856 = vpop.f32.mrf.mxu0
  %1857 = vmatprep.mubr.f32.mxu0 0.0
  %1858 = vmatmul.mubr.f32.gmra.mxu0 %v1786
  %v1859 = vpop.f32.mrf.mxu0
  %v1860 = vadd.f32 0.0, %v1859
  %v1861 = vpop.f32.mrf.mxu0
  %1862 = vdwg.mxu0
  %v1863 = vadd.f32 %v1780, %v1855
  %v1864 = vadd.f32 %v1781, %v1860
  %v1865 = vld [vmem:[%s9 + $0x1] sm:$0x1]
  %v1866 = vlaneseq
  %v1867 = vshrl.u32 %v1866, 7
  %v1868 = vsub.s32 0, %v1867
  %v1869 = vrot.slane %v1865, %v1868
  %v1870 = vadd.f32 %v1863, %v1869
  %v1871 = vadd.f32 %v1864, %v1869
  %v1872 = vadd.f32 %v1870, %v977
  %v1873 = vadd.f32 %v1871, %v978
  %v1874 = vsel %vm937, %v1872, 0.0
  %1875 = vadd.xlane.f32.xlu0 %v1874
  %v1876 = vpop.xlane.xlu0 %1875
  %v1877 = vsel %vm937, %v1873, 0.0
  %1878 = vadd.xlane.f32.xlu0 %v1877
  %v1879 = vpop.xlane.xlu0 %1878
  %v1880 = vmul.f32 %v1876, %v944
  %v1881 = vmul.f32 %v1879, %v944
  %v1882 = vsub.f32 %v1872, %v1880
  %v1883 = vsub.f32 %v1873, %v1881
  %v1884 = vmul.f32 %v1882, %v1882
  %v1885 = vmul.f32 %v1883, %v1883
  %v1886 = vsel %vm937, %v1884, 0.0
  %1887 = vadd.xlane.f32.xlu0 %v1886
  %v1888 = vpop.xlane.xlu0 %1887
  %v1889 = vsel %vm937, %v1885, 0.0
  %1890 = vadd.xlane.f32.xlu0 %v1889
  %v1891 = vpop.xlane.xlu0 %1890
  %v1892 = vmul.f32 %v1888, %v944
  %v1893 = vmul.f32 %v1891, %v944
  %v1894 = vadd.f32 %v1892, 1e-05
  %v1895 = vadd.f32 %v1893, 1e-05
  %v1896 = vrsqrt.pop %v1894
  %v1897 = vrsqrt.pop %v1895
  %v1898 = vmul.f32 %v1882, %v1896
  %v1899 = vmul.f32 %v1883, %v1897
  %v1900 = vld [vmem:[%s9 + $0x4] sm:$0x1]
  %v1901 = vlaneseq
  %v1902 = vshrl.u32 %v1901, 7
  %v1903 = vsub.s32 0, %v1902
  %v1904 = vrot.slane %v1900, %v1903
  %v1905 = vmul.f32 %v1898, %v1904
  %v1906 = vmul.f32 %v1899, %v1904
  %v1907 = vld [vmem:[%s9 + $0x5] sm:$0x1]
  %v1908 = vlaneseq
  %v1909 = vshrl.u32 %v1908, 7
  %v1910 = vsub.s32 0, %v1909
  %v1911 = vrot.slane %v1907, %v1910
  %v1912 = vadd.f32 %v1905, %v1911
  %v1913 = vadd.f32 %v1906, %v1911
  %v1914 = vld [vmem:[%s6] sm:$0xff]
  %v1915 = vld [vmem:[%s6 + $0x8] sm:$0xff]
  %v1916 = vld [vmem:[%s6 + $0x10] sm:$0xff]
  %v1917 = vld [vmem:[%s6 + $0x18] sm:$0xff]
  %v1918 = vld [vmem:[%s10] sm:$0x1]
  %v1919 = vlaneseq
  %v1920 = vshrl.u32 %v1919, 7
  %v1921 = vsub.s32 0, %v1920
  %v1922 = vrot.slane %v1918, %v1921
  %v1924 = vsel %vm937, %v1912, 0
  %v1927 = vsel %vm937, %v1913, 0
  %1929 = vmatprep.subr.mxu0 0.0
  %1930 = vmatpush1.msra.mxu0 0.0
  %1931 = vmatprep.subr.mxu0 0.0
  %1932 = vmatpush1.msra.mxu0 0.0
  %1933 = vmatprep.subr.mxu0 0.0
  %1934 = vmatpush1.msra.mxu0 0.0
  %1935 = vmatprep.subr.mxu0 0.0
  %1936 = vmatpush1.msra.mxu0 0.0
  %1937 = vmatprep.subr.mxu0 0.0
  %1938 = vmatpush1.msra.mxu0 0.0
  %1939 = vmatprep.subr.mxu0 0.0
  %1940 = vmatpush1.msra.mxu0 0.0
  %1941 = vmatprep.subr.mxu0 0.0
  %1942 = vmatpush1.msra.mxu0 0.0
  %1943 = vmatprep.subr.mxu0 0.0
  %1944 = vmatpush1.msra.mxu0 0.0
  %1945 = vmatprep.subr.mxu0 0.0
  %1946 = vmatpush1.msra.mxu0 0.0
  %1947 = vmatprep.subr.mxu0 0.0
  %1948 = vmatpush1.msra.mxu0 0.0
  %1949 = vmatprep.subr.mxu0 0.0
  %1950 = vmatpush1.msra.mxu0 0.0
  %1951 = vmatprep.subr.mxu0 0.0
  %1952 = vmatpush1.msra.mxu0 0.0
  %1953 = vmatprep.subr.mxu0 0.0
  %1954 = vmatpush1.msra.mxu0 %v1917
  %1955 = vmatprep.subr.mxu0 0.0
  %1956 = vmatpush1.msra.mxu0 %v1916
  %1957 = vmatprep.subr.mxu0 0.0
  %1958 = vmatpush1.msra.mxu0 %v1915
  %1959 = vmatprep.subr.mxu0 0.0
  %1960 = vmatpush1.msra.mxu0 %v1914
  %1961 = vmatprep.subr.mxu0 0.0
  %1962 = vmatpush2.msra.mxu0 0.0
  %1963 = vmatprep.subr.mxu0 0.0
  %1964 = vmatpush2.msra.mxu0 0.0
  %1965 = vmatprep.subr.mxu0 0.0
  %1966 = vmatpush2.msra.mxu0 0.0
  %1967 = vmatprep.subr.mxu0 0.0
  %1968 = vmatpush2.msra.mxu0 0.0
  %1969 = vmatprep.subr.mxu0 0.0
  %1970 = vmatpush2.msra.mxu0 0.0
  %1971 = vmatprep.subr.mxu0 0.0
  %1972 = vmatpush2.msra.mxu0 0.0
  %1973 = vmatprep.subr.mxu0 0.0
  %1974 = vmatpush2.msra.mxu0 0.0
  %1975 = vmatprep.subr.mxu0 0.0
  %1976 = vmatpush2.msra.mxu0 0.0
  %1977 = vmatprep.subr.mxu0 0.0
  %1978 = vmatpush2.msra.mxu0 0.0
  %1979 = vmatprep.subr.mxu0 0.0
  %1980 = vmatpush2.msra.mxu0 0.0
  %1981 = vmatprep.subr.mxu0 0.0
  %1982 = vmatpush2.msra.mxu0 0.0
  %1983 = vmatprep.subr.mxu0 0.0
  %1984 = vmatpush2.msra.mxu0 0.0
  %1985 = vmatprep.subr.mxu0 0.0
  %1986 = vmatpush2.msra.mxu0 0.0
  %1987 = vmatprep.subr.mxu0 0.0
  %1988 = vmatpush2.msra.mxu0 0.0
  %1989 = vmatprep.subr.mxu0 0.0
  %1990 = vmatpush2.msra.mxu0 0.0
  %1991 = vmatprep.subr.mxu0 0.0
  %1992 = vmatpush2.msra.mxu0 0.0
  %1993 = vmatprep.mubr.f32.mxu0 0.0
  %1994 = vmatmul.mubr.f32.gmra.mxu0 %v1924
  %v1995 = vpop.f32.mrf.mxu0
  %v1996 = vadd.f32 %v1922, %v1995
  %v1997 = vpop.f32.mrf.mxu0
  %1998 = vmatprep.mubr.f32.mxu0 0.0
  %1999 = vmatmul.mubr.f32.gmra.mxu0 %v1927
  %v2000 = vpop.f32.mrf.mxu0
  %v2001 = vadd.f32 %v1922, %v2000
  %v2002 = vpop.f32.mrf.mxu0
  %2003 = vdwg.mxu0
  %v2004 = vmax.f32 %v1996, 0.0
  %v2005 = vmax.f32 %v2001, 0.0
  %v2006 = vld [vmem:[%s7] sm:$0xff]
  %v2007 = vld [vmem:[%s7 + $0x8] sm:$0xff]
  %v2008 = vld [vmem:[%s7 + $0x10] sm:$0xff]
  %v2009 = vld [vmem:[%s7 + $0x18] sm:$0xff]
  %v2010 = vld [vmem:[%s7 + $0x20] sm:$0xff]
  %v2011 = vld [vmem:[%s7 + $0x28] sm:$0xff]
  %v2012 = vld [vmem:[%s7 + $0x30] sm:$0xff]
  %v2013 = vld [vmem:[%s7 + $0x38] sm:$0xff]
  %v2014 = vld [vmem:[%s7 + $0x40] sm:$0xff]
  %v2015 = vld [vmem:[%s7 + $0x48] sm:$0xff]
  %v2016 = vld [vmem:[%s7 + $0x50] sm:$0xff]
  %v2017 = vld [vmem:[%s7 + $0x58] sm:$0xff]
  %v2018 = vld [vmem:[%s7 + $0x60] sm:$0xff]
  %v2019 = vld [vmem:[%s7 + $0x68] sm:$0xff]
  %v2020 = vld [vmem:[%s7 + $0x70] sm:$0xff]
  %v2021 = vld [vmem:[%s7 + $0x78] sm:$0xff]
  %v2022 = vld [vmem:[%s9 + $0x8] sm:$0x1]
  %v2023 = vlaneseq
  %v2024 = vshrl.u32 %v2023, 7
  %v2025 = vsub.s32 0, %v2024
  %v2026 = vrot.slane %v2022, %v2025
  %2027 = vmatprep.subr.mxu0 0.0
  %2028 = vmatpush1.msra.mxu0 %v2021
  %2029 = vmatprep.subr.mxu0 0.0
  %2030 = vmatpush1.msra.mxu0 %v2020
  %2031 = vmatprep.subr.mxu0 0.0
  %2032 = vmatpush1.msra.mxu0 %v2019
  %2033 = vmatprep.subr.mxu0 0.0
  %2034 = vmatpush1.msra.mxu0 %v2018
  %2035 = vmatprep.subr.mxu0 0.0
  %2036 = vmatpush1.msra.mxu0 %v2017
  %2037 = vmatprep.subr.mxu0 0.0
  %2038 = vmatpush1.msra.mxu0 %v2016
  %2039 = vmatprep.subr.mxu0 0.0
  %2040 = vmatpush1.msra.mxu0 %v2015
  %2041 = vmatprep.subr.mxu0 0.0
  %2042 = vmatpush1.msra.mxu0 %v2014
  %2043 = vmatprep.subr.mxu0 0.0
  %2044 = vmatpush1.msra.mxu0 %v2013
  %2045 = vmatprep.subr.mxu0 0.0
  %2046 = vmatpush1.msra.mxu0 %v2012
  %2047 = vmatprep.subr.mxu0 0.0
  %2048 = vmatpush1.msra.mxu0 %v2011
  %2049 = vmatprep.subr.mxu0 0.0
  %2050 = vmatpush1.msra.mxu0 %v2010
  %2051 = vmatprep.subr.mxu0 0.0
  %2052 = vmatpush1.msra.mxu0 %v2009
  %2053 = vmatprep.subr.mxu0 0.0
  %2054 = vmatpush1.msra.mxu0 %v2008
  %2055 = vmatprep.subr.mxu0 0.0
  %2056 = vmatpush1.msra.mxu0 %v2007
  %2057 = vmatprep.subr.mxu0 0.0
  %2058 = vmatpush1.msra.mxu0 %v2006
  %2059 = vmatprep.subr.mxu0 0.0
  %2060 = vmatpush2.msra.mxu0 0.0
  %2061 = vmatprep.subr.mxu0 0.0
  %2062 = vmatpush2.msra.mxu0 0.0
  %2063 = vmatprep.subr.mxu0 0.0
  %2064 = vmatpush2.msra.mxu0 0.0
  %2065 = vmatprep.subr.mxu0 0.0
  %2066 = vmatpush2.msra.mxu0 0.0
  %2067 = vmatprep.subr.mxu0 0.0
  %2068 = vmatpush2.msra.mxu0 0.0
  %2069 = vmatprep.subr.mxu0 0.0
  %2070 = vmatpush2.msra.mxu0 0.0
  %2071 = vmatprep.subr.mxu0 0.0
  %2072 = vmatpush2.msra.mxu0 0.0
  %2073 = vmatprep.subr.mxu0 0.0
  %2074 = vmatpush2.msra.mxu0 0.0
  %2075 = vmatprep.subr.mxu0 0.0
  %2076 = vmatpush2.msra.mxu0 0.0
  %2077 = vmatprep.subr.mxu0 0.0
  %2078 = vmatpush2.msra.mxu0 0.0
  %2079 = vmatprep.subr.mxu0 0.0
  %2080 = vmatpush2.msra.mxu0 0.0
  %2081 = vmatprep.subr.mxu0 0.0
  %2082 = vmatpush2.msra.mxu0 0.0
  %2083 = vmatprep.subr.mxu0 0.0
  %2084 = vmatpush2.msra.mxu0 0.0
  %2085 = vmatprep.subr.mxu0 0.0
  %2086 = vmatpush2.msra.mxu0 0.0
  %2087 = vmatprep.subr.mxu0 0.0
  %2088 = vmatpush2.msra.mxu0 0.0
  %2089 = vmatprep.subr.mxu0 0.0
  %2090 = vmatpush2.msra.mxu0 0.0
  %2091 = vmatprep.mubr.f32.mxu0 0.0
  %2092 = vmatmul.mubr.f32.gmra.mxu0 %v2004
  %v2093 = vpop.f32.mrf.mxu0
  %v2094 = vadd.f32 %v2026, %v2093
  %v2095 = vpop.f32.mrf.mxu0
  %2096 = vmatprep.mubr.f32.mxu0 0.0
  %2097 = vmatmul.mubr.f32.gmra.mxu0 %v2005
  %v2098 = vpop.f32.mrf.mxu0
  %v2099 = vadd.f32 %v2026, %v2098
  %v2100 = vpop.f32.mrf.mxu0
  %2101 = vdwg.mxu0
  %v2102 = vadd.f32 %v2094, %v1912
  %v2103 = vadd.f32 %v2099, %v1913
  %v2104 = vsel %vm937, %v2102, 0.0
  %2105 = vadd.xlane.f32.xlu0 %v2104
  %v2106 = vpop.xlane.xlu0 %2105
  %v2107 = vsel %vm937, %v2103, 0.0
  %2108 = vadd.xlane.f32.xlu0 %v2107
  %v2109 = vpop.xlane.xlu0 %2108
  %v2110 = vmul.f32 %v2106, %v944
  %v2111 = vmul.f32 %v2109, %v944
  %v2112 = vsub.f32 %v2102, %v2110
  %v2113 = vsub.f32 %v2103, %v2111
  %v2114 = vmul.f32 %v2112, %v2112
  %v2115 = vmul.f32 %v2113, %v2113
  %v2116 = vsel %vm937, %v2114, 0.0
  %2117 = vadd.xlane.f32.xlu0 %v2116
  %v2118 = vpop.xlane.xlu0 %2117
  %v2119 = vsel %vm937, %v2115, 0.0
  %2120 = vadd.xlane.f32.xlu0 %v2119
  %v2121 = vpop.xlane.xlu0 %2120
  %v2122 = vmul.f32 %v2118, %v944
  %v2123 = vmul.f32 %v2121, %v944
  %v2124 = vadd.f32 %v2122, 1e-05
  %v2125 = vadd.f32 %v2123, 1e-05
  %v2126 = vrsqrt.pop %v2124
  %v2127 = vrsqrt.pop %v2125
  %v2128 = vmul.f32 %v2112, %v2126
  %v2129 = vmul.f32 %v2113, %v2127
  %v2130 = vld [vmem:[%s9 + $0x6] sm:$0x1]
  %v2131 = vlaneseq
  %v2132 = vshrl.u32 %v2131, 7
  %v2133 = vsub.s32 0, %v2132
  %v2134 = vrot.slane %v2130, %v2133
  %v2135 = vmul.f32 %v2128, %v2134
  %v2136 = vmul.f32 %v2129, %v2134
  %v2137 = vld [vmem:[%s9 + $0x7] sm:$0x1]
  %v2138 = vlaneseq
  %v2139 = vshrl.u32 %v2138, 7
  %v2140 = vsub.s32 0, %v2139
  %v2141 = vrot.slane %v2137, %v2140
  %v2142 = vadd.f32 %v2135, %v2141
  %v2143 = vadd.f32 %v2136, %v2141
  %s2144 = scalar_lea.vmem %s4, 8
  %v2145 = vld [vmem:[%s2144] sm:$0xff]
  %2148 = vrot.lane.b32.xlu0 %v2142, 120
  %v2149 = vpop.permute.xlu0 %2148
  %2150 = vrot.lane.b32.xlu0 %v2143, 120
  %v2151 = vpop.permute.xlu0 %2150
  %2152 = vrot.lane.b32.xlu0 %v2142, 112
  %v2153 = vpop.permute.xlu0 %2152
  %2154 = vrot.lane.b32.xlu0 %v2143, 112
  %v2155 = vpop.permute.xlu0 %2154
  %2156 = vrot.lane.b32.xlu0 %v2142, 104
  %v2157 = vpop.permute.xlu0 %2156
  %2158 = vrot.lane.b32.xlu0 %v2143, 104
  %v2159 = vpop.permute.xlu0 %2158
  %v2160 = vsel %vm71, %v2142, 0
  %v2162 = vsel %vm71, %v2143, 0
  %v2164 = vsel %vm71, %v2149, 0
  %v2166 = vsel %vm71, %v2151, 0
  %v2168 = vsel %vm71, %v2153, 0
  %v2170 = vsel %vm71, %v2155, 0
  %v2172 = vsel %vm71, %v2157, 0
  %v2174 = vsel %vm71, %v2159, 0
  %2176 = vmatprep.subr.mxu0 0.0
  %2177 = vmatpush1.msra.mxu0 0.0
  %2178 = vmatprep.subr.mxu0 0.0
  %2179 = vmatpush1.msra.mxu0 0.0
  %2180 = vmatprep.subr.mxu0 0.0
  %2181 = vmatpush1.msra.mxu0 0.0
  %2182 = vmatprep.subr.mxu0 0.0
  %2183 = vmatpush1.msra.mxu0 0.0
  %2184 = vmatprep.subr.mxu0 0.0
  %2185 = vmatpush1.msra.mxu0 0.0
  %2186 = vmatprep.subr.mxu0 0.0
  %2187 = vmatpush1.msra.mxu0 0.0
  %2188 = vmatprep.subr.mxu0 0.0
  %2189 = vmatpush1.msra.mxu0 0.0
  %2190 = vmatprep.subr.mxu0 0.0
  %2191 = vmatpush1.msra.mxu0 0.0
  %2192 = vmatprep.subr.mxu0 0.0
  %2193 = vmatpush1.msra.mxu0 0.0
  %2194 = vmatprep.subr.mxu0 0.0
  %2195 = vmatpush1.msra.mxu0 0.0
  %2196 = vmatprep.subr.mxu0 0.0
  %2197 = vmatpush1.msra.mxu0 0.0
  %2198 = vmatprep.subr.mxu0 0.0
  %2199 = vmatpush1.msra.mxu0 0.0
  %2200 = vmatprep.subr.mxu0 0.0
  %2201 = vmatpush1.msra.mxu0 0.0
  %2202 = vmatprep.subr.mxu0 0.0
  %2203 = vmatpush1.msra.mxu0 0.0
  %2204 = vmatprep.subr.mxu0 0.0
  %2205 = vmatpush1.msra.mxu0 0.0
  %2206 = vmatprep.subr.mxu0 0.0
  %2207 = vmatpush1.msra.mxu0 %v2145
  %2208 = vmatprep.subr.mxu0 0.0
  %2209 = vmatpush2.msra.mxu0 0.0
  %2210 = vmatprep.subr.mxu0 0.0
  %2211 = vmatpush2.msra.mxu0 0.0
  %2212 = vmatprep.subr.mxu0 0.0
  %2213 = vmatpush2.msra.mxu0 0.0
  %2214 = vmatprep.subr.mxu0 0.0
  %2215 = vmatpush2.msra.mxu0 0.0
  %2216 = vmatprep.subr.mxu0 0.0
  %2217 = vmatpush2.msra.mxu0 0.0
  %2218 = vmatprep.subr.mxu0 0.0
  %2219 = vmatpush2.msra.mxu0 0.0
  %2220 = vmatprep.subr.mxu0 0.0
  %2221 = vmatpush2.msra.mxu0 0.0
  %2222 = vmatprep.subr.mxu0 0.0
  %2223 = vmatpush2.msra.mxu0 0.0
  %2224 = vmatprep.subr.mxu0 0.0
  %2225 = vmatpush2.msra.mxu0 0.0
  %2226 = vmatprep.subr.mxu0 0.0
  %2227 = vmatpush2.msra.mxu0 0.0
  %2228 = vmatprep.subr.mxu0 0.0
  %2229 = vmatpush2.msra.mxu0 0.0
  %2230 = vmatprep.subr.mxu0 0.0
  %2231 = vmatpush2.msra.mxu0 0.0
  %2232 = vmatprep.subr.mxu0 0.0
  %2233 = vmatpush2.msra.mxu0 0.0
  %2234 = vmatprep.subr.mxu0 0.0
  %2235 = vmatpush2.msra.mxu0 0.0
  %2236 = vmatprep.subr.mxu0 0.0
  %2237 = vmatpush2.msra.mxu0 0.0
  %2238 = vmatprep.subr.mxu0 0.0
  %2239 = vmatpush2.msra.mxu0 0.0
  %2240 = vmatprep.mubr.f32.mxu0 0.0
  %2241 = vmatmul.mubr.f32.gmra.mxu0 %v2160
  %v2242 = vpop.f32.mrf.mxu0
  %v2243 = vadd.f32 0.0, %v2242
  %v2244 = vpop.f32.mrf.mxu0
  %2245 = vmatprep.mubr.f32.mxu0 0.0
  %2246 = vmatmul.mubr.f32.gmra.mxu0 %v2162
  %v2247 = vpop.f32.mrf.mxu0
  %v2248 = vadd.f32 0.0, %v2247
  %v2249 = vpop.f32.mrf.mxu0
  %2250 = vmatprep.mubr.f32.mxu0 0.0
  %2251 = vmatmul.mubr.f32.gmra.mxu0 %v2164
  %v2252 = vpop.f32.mrf.mxu0
  %v2253 = vadd.f32 0.0, %v2252
  %v2254 = vpop.f32.mrf.mxu0
  %2255 = vmatprep.mubr.f32.mxu0 0.0
  %2256 = vmatmul.mubr.f32.gmra.mxu0 %v2166
  %v2257 = vpop.f32.mrf.mxu0
  %v2258 = vadd.f32 0.0, %v2257
  %v2259 = vpop.f32.mrf.mxu0
  %2260 = vmatprep.mubr.f32.mxu0 0.0
  %2261 = vmatmul.mubr.f32.gmra.mxu0 %v2168
  %v2262 = vpop.f32.mrf.mxu0
  %v2263 = vadd.f32 0.0, %v2262
  %v2264 = vpop.f32.mrf.mxu0
  %2265 = vmatprep.mubr.f32.mxu0 0.0
  %2266 = vmatmul.mubr.f32.gmra.mxu0 %v2170
  %v2267 = vpop.f32.mrf.mxu0
  %v2268 = vadd.f32 0.0, %v2267
  %v2269 = vpop.f32.mrf.mxu0
  %2270 = vmatprep.mubr.f32.mxu0 0.0
  %2271 = vmatmul.mubr.f32.gmra.mxu0 %v2172
  %v2272 = vpop.f32.mrf.mxu0
  %v2273 = vadd.f32 0.0, %v2272
  %v2274 = vpop.f32.mrf.mxu0
  %2275 = vmatprep.mubr.f32.mxu0 0.0
  %2276 = vmatmul.mubr.f32.gmra.mxu0 %v2174
  %v2277 = vpop.f32.mrf.mxu0
  %v2278 = vadd.f32 0.0, %v2277
  %v2279 = vpop.f32.mrf.mxu0
  %2280 = vdwg.mxu0
  %2289 = vrot.lane.b32.xlu0 %v2243, 120
  %v2290 = vpop.permute.xlu0 %2289
  %2291 = vrot.lane.b32.xlu0 %v2248, 120
  %v2292 = vpop.permute.xlu0 %2291
  %2293 = vrot.lane.b32.xlu0 %v2253, 120
  %v2294 = vpop.permute.xlu0 %2293
  %2295 = vrot.lane.b32.xlu0 %v2258, 120
  %v2296 = vpop.permute.xlu0 %2295
  %2297 = vrot.lane.b32.xlu0 %v2263, 120
  %v2298 = vpop.permute.xlu0 %2297
  %2299 = vrot.lane.b32.xlu0 %v2268, 120
  %v2300 = vpop.permute.xlu0 %2299
  %2301 = vrot.lane.b32.xlu0 %v2273, 120
  %v2302 = vpop.permute.xlu0 %2301
  %2303 = vrot.lane.b32.xlu0 %v2278, 120
  %v2304 = vpop.permute.xlu0 %2303
  %v2305 = vsel %vm71, %v2243, 0
  %v2307 = vsel %vm71, %v2248, 0
  %v2309 = vsel %vm71, %v2253, 0
  %v2311 = vsel %vm71, %v2258, 0
  %v2313 = vsel %vm71, %v2263, 0
  %v2315 = vsel %vm71, %v2268, 0
  %v2317 = vsel %vm71, %v2273, 0
  %v2319 = vsel %vm71, %v2278, 0
  %v2321 = vsel %vm71, %v2290, 0
  %v2323 = vsel %vm71, %v2292, 0
  %v2325 = vsel %vm71, %v2294, 0
  %v2327 = vsel %vm71, %v2296, 0
  %v2329 = vsel %vm71, %v2298, 0
  %v2331 = vsel %vm71, %v2300, 0
  %v2333 = vsel %vm71, %v2302, 0
  %v2335 = vsel %vm71, %v2304, 0
  %2337 = vmatprep.subr.mxu0 0.0
  %2338 = vmatpush1.xpose.msra.mxu0 0.0
  %2339 = vmatprep.subr.mxu0 0.0
  %2340 = vmatpush1.xpose.msra.mxu0 0.0
  %2341 = vmatprep.subr.mxu0 0.0
  %2342 = vmatpush1.xpose.msra.mxu0 0.0
  %2343 = vmatprep.subr.mxu0 0.0
  %2344 = vmatpush1.xpose.msra.mxu0 0.0
  %2345 = vmatprep.subr.mxu0 0.0
  %2346 = vmatpush1.xpose.msra.mxu0 0.0
  %2347 = vmatprep.subr.mxu0 0.0
  %2348 = vmatpush1.xpose.msra.mxu0 0.0
  %2349 = vmatprep.subr.mxu0 0.0
  %2350 = vmatpush1.xpose.msra.mxu0 0.0
  %2351 = vmatprep.subr.mxu0 0.0
  %2352 = vmatpush1.xpose.msra.mxu0 0.0
  %2353 = vmatprep.subr.mxu0 0.0
  %2354 = vmatpush1.xpose.msra.mxu0 %v2335
  %2355 = vmatprep.subr.mxu0 0.0
  %2356 = vmatpush1.xpose.msra.mxu0 %v2333
  %2357 = vmatprep.subr.mxu0 0.0
  %2358 = vmatpush1.xpose.msra.mxu0 %v2331
  %2359 = vmatprep.subr.mxu0 0.0
  %2360 = vmatpush1.xpose.msra.mxu0 %v2329
  %2361 = vmatprep.subr.mxu0 0.0
  %2362 = vmatpush1.xpose.msra.mxu0 %v2327
  %2363 = vmatprep.subr.mxu0 0.0
  %2364 = vmatpush1.xpose.msra.mxu0 %v2325
  %2365 = vmatprep.subr.mxu0 0.0
  %2366 = vmatpush1.xpose.msra.mxu0 %v2323
  %2367 = vmatprep.subr.mxu0 0.0
  %2368 = vmatpush1.xpose.msra.mxu0 %v2321
  %2369 = vmatprep.subr.mxu0 0.0
  %2370 = vmatpush2.xpose.msra.mxu0 0.0
  %2371 = vmatprep.subr.mxu0 0.0
  %2372 = vmatpush2.xpose.msra.mxu0 0.0
  %2373 = vmatprep.subr.mxu0 0.0
  %2374 = vmatpush2.xpose.msra.mxu0 0.0
  %2375 = vmatprep.subr.mxu0 0.0
  %2376 = vmatpush2.xpose.msra.mxu0 0.0
  %2377 = vmatprep.subr.mxu0 0.0
  %2378 = vmatpush2.xpose.msra.mxu0 0.0
  %2379 = vmatprep.subr.mxu0 0.0
  %2380 = vmatpush2.xpose.msra.mxu0 0.0
  %2381 = vmatprep.subr.mxu0 0.0
  %2382 = vmatpush2.xpose.msra.mxu0 0.0
  %2383 = vmatprep.subr.mxu0 0.0
  %2384 = vmatpush2.xpose.msra.mxu0 0.0
  %2385 = vmatprep.subr.mxu0 0.0
  %2386 = vmatpush2.xpose.msra.mxu0 0.0
  %2387 = vmatprep.subr.mxu0 0.0
  %2388 = vmatpush2.xpose.msra.mxu0 0.0
  %2389 = vmatprep.subr.mxu0 0.0
  %2390 = vmatpush2.xpose.msra.mxu0 0.0
  %2391 = vmatprep.subr.mxu0 0.0
  %2392 = vmatpush2.xpose.msra.mxu0 0.0
  %2393 = vmatprep.subr.mxu0 0.0
  %2394 = vmatpush2.xpose.msra.mxu0 0.0
  %2395 = vmatprep.subr.mxu0 0.0
  %2396 = vmatpush2.xpose.msra.mxu0 0.0
  %2397 = vmatprep.subr.mxu0 0.0
  %2398 = vmatpush2.xpose.msra.mxu0 0.0
  %2399 = vmatprep.subr.mxu0 0.0
  %2400 = vmatpush2.xpose.msra.mxu0 0.0
  %2401 = vmatprep.mubr.f32.mxu0 0.0
  %2402 = vmatmul.mubr.f32.gmra.mxu0 %v2305
  %v2403 = vpop.f32.mrf.mxu0
  %v2404 = vadd.f32 %v40, %v2403
  %v2405 = vpop.f32.mrf.mxu0
  %2406 = vmatprep.mubr.f32.mxu0 0.0
  %2407 = vmatmul.mubr.f32.gmra.mxu0 %v2307
  %v2408 = vpop.f32.mrf.mxu0
  %v2409 = vadd.f32 %v41, %v2408
  %v2410 = vpop.f32.mrf.mxu0
  %2411 = vmatprep.mubr.f32.mxu0 0.0
  %2412 = vmatmul.mubr.f32.gmra.mxu0 %v2309
  %v2413 = vpop.f32.mrf.mxu0
  %v2414 = vadd.f32 %v42, %v2413
  %v2415 = vpop.f32.mrf.mxu0
  %2416 = vmatprep.mubr.f32.mxu0 0.0
  %2417 = vmatmul.mubr.f32.gmra.mxu0 %v2311
  %v2418 = vpop.f32.mrf.mxu0
  %v2419 = vadd.f32 %v43, %v2418
  %v2420 = vpop.f32.mrf.mxu0
  %2421 = vmatprep.mubr.f32.mxu0 0.0
  %2422 = vmatmul.mubr.f32.gmra.mxu0 %v2313
  %v2423 = vpop.f32.mrf.mxu0
  %v2424 = vadd.f32 %v44, %v2423
  %v2425 = vpop.f32.mrf.mxu0
  %2426 = vmatprep.mubr.f32.mxu0 0.0
  %2427 = vmatmul.mubr.f32.gmra.mxu0 %v2315
  %v2428 = vpop.f32.mrf.mxu0
  %v2429 = vadd.f32 %v45, %v2428
  %v2430 = vpop.f32.mrf.mxu0
  %2431 = vmatprep.mubr.f32.mxu0 0.0
  %2432 = vmatmul.mubr.f32.gmra.mxu0 %v2317
  %v2433 = vpop.f32.mrf.mxu0
  %v2434 = vadd.f32 %v46, %v2433
  %v2435 = vpop.f32.mrf.mxu0
  %2436 = vmatprep.mubr.f32.mxu0 0.0
  %2437 = vmatmul.mubr.f32.gmra.mxu0 %v2319
  %v2438 = vpop.f32.mrf.mxu0
  %v2439 = vadd.f32 %v47, %v2438
  %v2440 = vpop.f32.mrf.mxu0
  %2441 = vdwg.mxu0
  %v2442 = vsel %vm354, %v2404, -inf
  %2443 = vmax.xlane.f32.xlu0 %v2442
  %v2444 = vpop.xlane.xlu0 %2443
  %v2445 = vsel %vm354, %v2409, -inf
  %2446 = vmax.xlane.f32.xlu0 %v2445
  %v2447 = vpop.xlane.xlu0 %2446
  %v2448 = vsel %vm354, %v2414, -inf
  %2449 = vmax.xlane.f32.xlu0 %v2448
  %v2450 = vpop.xlane.xlu0 %2449
  %v2451 = vsel %vm354, %v2419, -inf
  %2452 = vmax.xlane.f32.xlu0 %v2451
  %v2453 = vpop.xlane.xlu0 %2452
  %v2454 = vsel %vm354, %v2424, -inf
  %2455 = vmax.xlane.f32.xlu0 %v2454
  %v2456 = vpop.xlane.xlu0 %2455
  %v2457 = vsel %vm354, %v2429, -inf
  %2458 = vmax.xlane.f32.xlu0 %v2457
  %v2459 = vpop.xlane.xlu0 %2458
  %v2460 = vsel %vm354, %v2434, -inf
  %2461 = vmax.xlane.f32.xlu0 %v2460
  %v2462 = vpop.xlane.xlu0 %2461
  %v2463 = vsel %vm354, %v2439, -inf
  %2464 = vmax.xlane.f32.xlu0 %v2463
  %v2465 = vpop.xlane.xlu0 %2464
  %v2466 = vsub.f32 %v2404, %v2444
  %v2467 = vsub.f32 %v2409, %v2447
  %v2468 = vsub.f32 %v2414, %v2450
  %v2469 = vsub.f32 %v2419, %v2453
  %v2470 = vsub.f32 %v2424, %v2456
  %v2471 = vsub.f32 %v2429, %v2459
  %v2472 = vsub.f32 %v2434, %v2462
  %v2473 = vsub.f32 %v2439, %v2465
  %v2474 = vmul.f32 %v2466, 1.442695
  %v2475 = vpow.pop %v2474
  %v2476 = vmul.f32 %v2467, 1.442695
  %v2477 = vpow.pop %v2476
  %v2478 = vmul.f32 %v2468, 1.442695
  %v2479 = vpow.pop %v2478
  %v2480 = vmul.f32 %v2469, 1.442695
  %v2481 = vpow.pop %v2480
  %v2482 = vmul.f32 %v2470, 1.442695
  %v2483 = vpow.pop %v2482
  %v2484 = vmul.f32 %v2471, 1.442695
  %v2485 = vpow.pop %v2484
  %v2486 = vmul.f32 %v2472, 1.442695
  %v2487 = vpow.pop %v2486
  %v2488 = vmul.f32 %v2473, 1.442695
  %v2489 = vpow.pop %v2488
  %v2490 = vsel %vm354, %v2475, 0.0
  %2491 = vadd.xlane.f32.xlu0 %v2490
  %v2492 = vpop.xlane.xlu0 %2491
  %v2493 = vsel %vm354, %v2477, 0.0
  %2494 = vadd.xlane.f32.xlu0 %v2493
  %v2495 = vpop.xlane.xlu0 %2494
  %v2496 = vsel %vm354, %v2479, 0.0
  %2497 = vadd.xlane.f32.xlu0 %v2496
  %v2498 = vpop.xlane.xlu0 %2497
  %v2499 = vsel %vm354, %v2481, 0.0
  %2500 = vadd.xlane.f32.xlu0 %v2499
  %v2501 = vpop.xlane.xlu0 %2500
  %v2502 = vsel %vm354, %v2483, 0.0
  %2503 = vadd.xlane.f32.xlu0 %v2502
  %v2504 = vpop.xlane.xlu0 %2503
  %v2505 = vsel %vm354, %v2485, 0.0
  %2506 = vadd.xlane.f32.xlu0 %v2505
  %v2507 = vpop.xlane.xlu0 %2506
  %v2508 = vsel %vm354, %v2487, 0.0
  %2509 = vadd.xlane.f32.xlu0 %v2508
  %v2510 = vpop.xlane.xlu0 %2509
  %v2511 = vsel %vm354, %v2489, 0.0
  %2512 = vadd.xlane.f32.xlu0 %v2511
  %v2513 = vpop.xlane.xlu0 %2512
  %v2514 = vrcp.pop %v2492
  %v2515 = vrcp.pop %v2495
  %v2516 = vrcp.pop %v2498
  %v2517 = vrcp.pop %v2501
  %v2518 = vrcp.pop %v2504
  %v2519 = vrcp.pop %v2507
  %v2520 = vrcp.pop %v2510
  %v2521 = vrcp.pop %v2513
  %v2522 = vmul.f32 %v2475, %v2514
  %v2523 = vmul.f32 %v2477, %v2515
  %v2524 = vmul.f32 %v2479, %v2516
  %v2525 = vmul.f32 %v2481, %v2517
  %v2526 = vmul.f32 %v2483, %v2518
  %v2527 = vmul.f32 %v2485, %v2519
  %v2528 = vmul.f32 %v2487, %v2520
  %v2529 = vmul.f32 %v2489, %v2521
  %2530 = vrot.lane.b32.xlu0 %v2243, 112
  %v2531 = vpop.permute.xlu0 %2530
  %2532 = vrot.lane.b32.xlu0 %v2248, 112
  %v2533 = vpop.permute.xlu0 %2532
  %2534 = vrot.lane.b32.xlu0 %v2253, 112
  %v2535 = vpop.permute.xlu0 %2534
  %2536 = vrot.lane.b32.xlu0 %v2258, 112
  %v2537 = vpop.permute.xlu0 %2536
  %2538 = vrot.lane.b32.xlu0 %v2263, 112
  %v2539 = vpop.permute.xlu0 %2538
  %2540 = vrot.lane.b32.xlu0 %v2268, 112
  %v2541 = vpop.permute.xlu0 %2540
  %2542 = vrot.lane.b32.xlu0 %v2273, 112
  %v2543 = vpop.permute.xlu0 %2542
  %2544 = vrot.lane.b32.xlu0 %v2278, 112
  %v2545 = vpop.permute.xlu0 %2544
  %v2555 = vsel %vm354, %v2522, 0
  %v2558 = vsel %vm354, %v2523, 0
  %v2561 = vsel %vm354, %v2524, 0
  %v2564 = vsel %vm354, %v2525, 0
  %v2567 = vsel %vm354, %v2526, 0
  %v2570 = vsel %vm354, %v2527, 0
  %v2573 = vsel %vm354, %v2528, 0
  %v2576 = vsel %vm354, %v2529, 0
  %2578 = vmatprep.subr.mxu0 0.0
  %2579 = vmatpush1.msra.mxu0 0.0
  %2580 = vmatprep.subr.mxu0 0.0
  %2581 = vmatpush1.msra.mxu0 0.0
  %2582 = vmatprep.subr.mxu0 0.0
  %2583 = vmatpush1.msra.mxu0 0.0
  %2584 = vmatprep.subr.mxu0 0.0
  %2585 = vmatpush1.msra.mxu0 0.0
  %2586 = vmatprep.subr.mxu0 0.0
  %2587 = vmatpush1.msra.mxu0 0.0
  %2588 = vmatprep.subr.mxu0 0.0
  %2589 = vmatpush1.msra.mxu0 0.0
  %2590 = vmatprep.subr.mxu0 0.0
  %2591 = vmatpush1.msra.mxu0 0.0
  %2592 = vmatprep.subr.mxu0 0.0
  %2593 = vmatpush1.msra.mxu0 0.0
  %2594 = vmatprep.subr.mxu0 0.0
  %2595 = vmatpush1.msra.mxu0 %v2545
  %2596 = vmatprep.subr.mxu0 0.0
  %2597 = vmatpush1.msra.mxu0 %v2543
  %2598 = vmatprep.subr.mxu0 0.0
  %2599 = vmatpush1.msra.mxu0 %v2541
  %2600 = vmatprep.subr.mxu0 0.0
  %2601 = vmatpush1.msra.mxu0 %v2539
  %2602 = vmatprep.subr.mxu0 0.0
  %2603 = vmatpush1.msra.mxu0 %v2537
  %2604 = vmatprep.subr.mxu0 0.0
  %2605 = vmatpush1.msra.mxu0 %v2535
  %2606 = vmatprep.subr.mxu0 0.0
  %2607 = vmatpush1.msra.mxu0 %v2533
  %2608 = vmatprep.subr.mxu0 0.0
  %2609 = vmatpush1.msra.mxu0 %v2531
  %2610 = vmatprep.subr.mxu0 0.0
  %2611 = vmatpush2.msra.mxu0 0.0
  %2612 = vmatprep.subr.mxu0 0.0
  %2613 = vmatpush2.msra.mxu0 0.0
  %2614 = vmatprep.subr.mxu0 0.0
  %2615 = vmatpush2.msra.mxu0 0.0
  %2616 = vmatprep.subr.mxu0 0.0
  %2617 = vmatpush2.msra.mxu0 0.0
  %2618 = vmatprep.subr.mxu0 0.0
  %2619 = vmatpush2.msra.mxu0 0.0
  %2620 = vmatprep.subr.mxu0 0.0
  %2621 = vmatpush2.msra.mxu0 0.0
  %2622 = vmatprep.subr.mxu0 0.0
  %2623 = vmatpush2.msra.mxu0 0.0
  %2624 = vmatprep.subr.mxu0 0.0
  %2625 = vmatpush2.msra.mxu0 0.0
  %2626 = vmatprep.subr.mxu0 0.0
  %2627 = vmatpush2.msra.mxu0 0.0
  %2628 = vmatprep.subr.mxu0 0.0
  %2629 = vmatpush2.msra.mxu0 0.0
  %2630 = vmatprep.subr.mxu0 0.0
  %2631 = vmatpush2.msra.mxu0 0.0
  %2632 = vmatprep.subr.mxu0 0.0
  %2633 = vmatpush2.msra.mxu0 0.0
  %2634 = vmatprep.subr.mxu0 0.0
  %2635 = vmatpush2.msra.mxu0 0.0
  %2636 = vmatprep.subr.mxu0 0.0
  %2637 = vmatpush2.msra.mxu0 0.0
  %2638 = vmatprep.subr.mxu0 0.0
  %2639 = vmatpush2.msra.mxu0 0.0
  %2640 = vmatprep.subr.mxu0 0.0
  %2641 = vmatpush2.msra.mxu0 0.0
  %2642 = vmatprep.mubr.f32.mxu0 0.0
  %2643 = vmatmul.mubr.f32.gmra.mxu0 %v2555
  %v2644 = vpop.f32.mrf.mxu0
  %v2645 = vadd.f32 0.0, %v2644
  %v2646 = vpop.f32.mrf.mxu0
  %2647 = vmatprep.mubr.f32.mxu0 0.0
  %2648 = vmatmul.mubr.f32.gmra.mxu0 %v2558
  %v2649 = vpop.f32.mrf.mxu0
  %v2650 = vadd.f32 0.0, %v2649
  %v2651 = vpop.f32.mrf.mxu0
  %2652 = vmatprep.mubr.f32.mxu0 0.0
  %2653 = vmatmul.mubr.f32.gmra.mxu0 %v2561
  %v2654 = vpop.f32.mrf.mxu0
  %v2655 = vadd.f32 0.0, %v2654
  %v2656 = vpop.f32.mrf.mxu0
  %2657 = vmatprep.mubr.f32.mxu0 0.0
  %2658 = vmatmul.mubr.f32.gmra.mxu0 %v2564
  %v2659 = vpop.f32.mrf.mxu0
  %v2660 = vadd.f32 0.0, %v2659
  %v2661 = vpop.f32.mrf.mxu0
  %2662 = vmatprep.mubr.f32.mxu0 0.0
  %2663 = vmatmul.mubr.f32.gmra.mxu0 %v2567
  %v2664 = vpop.f32.mrf.mxu0
  %v2665 = vadd.f32 0.0, %v2664
  %v2666 = vpop.f32.mrf.mxu0
  %2667 = vmatprep.mubr.f32.mxu0 0.0
  %2668 = vmatmul.mubr.f32.gmra.mxu0 %v2570
  %v2669 = vpop.f32.mrf.mxu0
  %v2670 = vadd.f32 0.0, %v2669
  %v2671 = vpop.f32.mrf.mxu0
  %2672 = vmatprep.mubr.f32.mxu0 0.0
  %2673 = vmatmul.mubr.f32.gmra.mxu0 %v2573
  %v2674 = vpop.f32.mrf.mxu0
  %v2675 = vadd.f32 0.0, %v2674
  %v2676 = vpop.f32.mrf.mxu0
  %2677 = vmatprep.mubr.f32.mxu0 0.0
  %2678 = vmatmul.mubr.f32.gmra.mxu0 %v2576
  %v2679 = vpop.f32.mrf.mxu0
  %v2680 = vadd.f32 0.0, %v2679
  %v2681 = vpop.f32.mrf.mxu0
  %2682 = vdwg.mxu0
  %s2683 = scalar_lea.vmem %s5, 64
  %v2684 = vld [vmem:[%s2683] sm:$0xff]
  %v2685 = vld [vmem:[%s2683 + $0x8] sm:$0xff]
  %v2686 = vld [vmem:[%s2683 + $0x10] sm:$0xff]
  %v2687 = vld [vmem:[%s2683 + $0x18] sm:$0xff]
  %v2689 = vsel %vm71, %v2655, 0
  %v2692 = vsel %vm71, %v2660, 0
  %2694 = vmatprep.subr.mxu0 0.0
  %2695 = vmatpush1.msra.mxu0 0.0
  %2696 = vmatprep.subr.mxu0 0.0
  %2697 = vmatpush1.msra.mxu0 0.0
  %2698 = vmatprep.subr.mxu0 0.0
  %2699 = vmatpush1.msra.mxu0 0.0
  %2700 = vmatprep.subr.mxu0 0.0
  %2701 = vmatpush1.msra.mxu0 0.0
  %2702 = vmatprep.subr.mxu0 0.0
  %2703 = vmatpush1.msra.mxu0 0.0
  %2704 = vmatprep.subr.mxu0 0.0
  %2705 = vmatpush1.msra.mxu0 0.0
  %2706 = vmatprep.subr.mxu0 0.0
  %2707 = vmatpush1.msra.mxu0 0.0
  %2708 = vmatprep.subr.mxu0 0.0
  %2709 = vmatpush1.msra.mxu0 0.0
  %2710 = vmatprep.subr.mxu0 0.0
  %2711 = vmatpush1.msra.mxu0 0.0
  %2712 = vmatprep.subr.mxu0 0.0
  %2713 = vmatpush1.msra.mxu0 0.0
  %2714 = vmatprep.subr.mxu0 0.0
  %2715 = vmatpush1.msra.mxu0 0.0
  %2716 = vmatprep.subr.mxu0 0.0
  %2717 = vmatpush1.msra.mxu0 0.0
  %2718 = vmatprep.subr.mxu0 0.0
  %2719 = vmatpush1.msra.mxu0 0.0
  %2720 = vmatprep.subr.mxu0 0.0
  %2721 = vmatpush1.msra.mxu0 0.0
  %2722 = vmatprep.subr.mxu0 0.0
  %2723 = vmatpush1.msra.mxu0 0.0
  %2724 = vmatprep.subr.mxu0 0.0
  %2725 = vmatpush1.msra.mxu0 %v2685
  %2726 = vmatprep.subr.mxu0 0.0
  %2727 = vmatpush2.msra.mxu0 0.0
  %2728 = vmatprep.subr.mxu0 0.0
  %2729 = vmatpush2.msra.mxu0 0.0
  %2730 = vmatprep.subr.mxu0 0.0
  %2731 = vmatpush2.msra.mxu0 0.0
  %2732 = vmatprep.subr.mxu0 0.0
  %2733 = vmatpush2.msra.mxu0 0.0
  %2734 = vmatprep.subr.mxu0 0.0
  %2735 = vmatpush2.msra.mxu0 0.0
  %2736 = vmatprep.subr.mxu0 0.0
  %2737 = vmatpush2.msra.mxu0 0.0
  %2738 = vmatprep.subr.mxu0 0.0
  %2739 = vmatpush2.msra.mxu0 0.0
  %2740 = vmatprep.subr.mxu0 0.0
  %2741 = vmatpush2.msra.mxu0 0.0
  %2742 = vmatprep.subr.mxu0 0.0
  %2743 = vmatpush2.msra.mxu0 0.0
  %2744 = vmatprep.subr.mxu0 0.0
  %2745 = vmatpush2.msra.mxu0 0.0
  %2746 = vmatprep.subr.mxu0 0.0
  %2747 = vmatpush2.msra.mxu0 0.0
  %2748 = vmatprep.subr.mxu0 0.0
  %2749 = vmatpush2.msra.mxu0 0.0
  %2750 = vmatprep.subr.mxu0 0.0
  %2751 = vmatpush2.msra.mxu0 0.0
  %2752 = vmatprep.subr.mxu0 0.0
  %2753 = vmatpush2.msra.mxu0 0.0
  %2754 = vmatprep.subr.mxu0 0.0
  %2755 = vmatpush2.msra.mxu0 0.0
  %2756 = vmatprep.subr.mxu0 0.0
  %2757 = vmatpush2.msra.mxu0 0.0
  %2758 = vmatprep.mubr.f32.mxu0 0.0
  %2759 = vmatmul.mubr.f32.gmra.mxu0 %v2689
  %v2760 = vpop.f32.mrf.mxu0
  %v2761 = vadd.f32 0.0, %v2760
  %v2762 = vpop.f32.mrf.mxu0
  %2763 = vmatprep.mubr.f32.mxu0 0.0
  %2764 = vmatmul.mubr.f32.gmra.mxu0 %v2692
  %v2765 = vpop.f32.mrf.mxu0
  %v2766 = vadd.f32 0.0, %v2765
  %v2767 = vpop.f32.mrf.mxu0
  %2768 = vdwg.mxu0
  %v2770 = vsel %vm71, %v2645, 0
  %v2773 = vsel %vm71, %v2650, 0
  %2775 = vmatprep.subr.mxu0 0.0
  %2776 = vmatpush1.msra.mxu0 0.0
  %2777 = vmatprep.subr.mxu0 0.0
  %2778 = vmatpush1.msra.mxu0 0.0
  %2779 = vmatprep.subr.mxu0 0.0
  %2780 = vmatpush1.msra.mxu0 0.0
  %2781 = vmatprep.subr.mxu0 0.0
  %2782 = vmatpush1.msra.mxu0 0.0
  %2783 = vmatprep.subr.mxu0 0.0
  %2784 = vmatpush1.msra.mxu0 0.0
  %2785 = vmatprep.subr.mxu0 0.0
  %2786 = vmatpush1.msra.mxu0 0.0
  %2787 = vmatprep.subr.mxu0 0.0
  %2788 = vmatpush1.msra.mxu0 0.0
  %2789 = vmatprep.subr.mxu0 0.0
  %2790 = vmatpush1.msra.mxu0 0.0
  %2791 = vmatprep.subr.mxu0 0.0
  %2792 = vmatpush1.msra.mxu0 0.0
  %2793 = vmatprep.subr.mxu0 0.0
  %2794 = vmatpush1.msra.mxu0 0.0
  %2795 = vmatprep.subr.mxu0 0.0
  %2796 = vmatpush1.msra.mxu0 0.0
  %2797 = vmatprep.subr.mxu0 0.0
  %2798 = vmatpush1.msra.mxu0 0.0
  %2799 = vmatprep.subr.mxu0 0.0
  %2800 = vmatpush1.msra.mxu0 0.0
  %2801 = vmatprep.subr.mxu0 0.0
  %2802 = vmatpush1.msra.mxu0 0.0
  %2803 = vmatprep.subr.mxu0 0.0
  %2804 = vmatpush1.msra.mxu0 0.0
  %2805 = vmatprep.subr.mxu0 0.0
  %2806 = vmatpush1.msra.mxu0 %v2684
  %2807 = vmatprep.subr.mxu0 0.0
  %2808 = vmatpush2.msra.mxu0 0.0
  %2809 = vmatprep.subr.mxu0 0.0
  %2810 = vmatpush2.msra.mxu0 0.0
  %2811 = vmatprep.subr.mxu0 0.0
  %2812 = vmatpush2.msra.mxu0 0.0
  %2813 = vmatprep.subr.mxu0 0.0
  %2814 = vmatpush2.msra.mxu0 0.0
  %2815 = vmatprep.subr.mxu0 0.0
  %2816 = vmatpush2.msra.mxu0 0.0
  %2817 = vmatprep.subr.mxu0 0.0
  %2818 = vmatpush2.msra.mxu0 0.0
  %2819 = vmatprep.subr.mxu0 0.0
  %2820 = vmatpush2.msra.mxu0 0.0
  %2821 = vmatprep.subr.mxu0 0.0
  %2822 = vmatpush2.msra.mxu0 0.0
  %2823 = vmatprep.subr.mxu0 0.0
  %2824 = vmatpush2.msra.mxu0 0.0
  %2825 = vmatprep.subr.mxu0 0.0
  %2826 = vmatpush2.msra.mxu0 0.0
  %2827 = vmatprep.subr.mxu0 0.0
  %2828 = vmatpush2.msra.mxu0 0.0
  %2829 = vmatprep.subr.mxu0 0.0
  %2830 = vmatpush2.msra.mxu0 0.0
  %2831 = vmatprep.subr.mxu0 0.0
  %2832 = vmatpush2.msra.mxu0 0.0
  %2833 = vmatprep.subr.mxu0 0.0
  %2834 = vmatpush2.msra.mxu0 0.0
  %2835 = vmatprep.subr.mxu0 0.0
  %2836 = vmatpush2.msra.mxu0 0.0
  %2837 = vmatprep.subr.mxu0 0.0
  %2838 = vmatpush2.msra.mxu0 0.0
  %2839 = vmatprep.mubr.f32.mxu0 0.0
  %2840 = vmatmul.mubr.f32.gmra.mxu0 %v2770
  %v2841 = vpop.f32.mrf.mxu0
  %v2842 = vadd.f32 %v2761, %v2841
  %v2843 = vpop.f32.mrf.mxu0
  %2844 = vmatprep.mubr.f32.mxu0 0.0
  %2845 = vmatmul.mubr.f32.gmra.mxu0 %v2773
  %v2846 = vpop.f32.mrf.mxu0
  %v2847 = vadd.f32 %v2766, %v2846
  %v2848 = vpop.f32.mrf.mxu0
  %2849 = vdwg.mxu0
  %v2851 = vsel %vm71, %v2665, 0
  %v2854 = vsel %vm71, %v2670, 0
  %2856 = vmatprep.subr.mxu0 0.0
  %2857 = vmatpush1.msra.mxu0 0.0
  %2858 = vmatprep.subr.mxu0 0.0
  %2859 = vmatpush1.msra.mxu0 0.0
  %2860 = vmatprep.subr.mxu0 0.0
  %2861 = vmatpush1.msra.mxu0 0.0
  %2862 = vmatprep.subr.mxu0 0.0
  %2863 = vmatpush1.msra.mxu0 0.0
  %2864 = vmatprep.subr.mxu0 0.0
  %2865 = vmatpush1.msra.mxu0 0.0
  %2866 = vmatprep.subr.mxu0 0.0
  %2867 = vmatpush1.msra.mxu0 0.0
  %2868 = vmatprep.subr.mxu0 0.0
  %2869 = vmatpush1.msra.mxu0 0.0
  %2870 = vmatprep.subr.mxu0 0.0
  %2871 = vmatpush1.msra.mxu0 0.0
  %2872 = vmatprep.subr.mxu0 0.0
  %2873 = vmatpush1.msra.mxu0 0.0
  %2874 = vmatprep.subr.mxu0 0.0
  %2875 = vmatpush1.msra.mxu0 0.0
  %2876 = vmatprep.subr.mxu0 0.0
  %2877 = vmatpush1.msra.mxu0 0.0
  %2878 = vmatprep.subr.mxu0 0.0
  %2879 = vmatpush1.msra.mxu0 0.0
  %2880 = vmatprep.subr.mxu0 0.0
  %2881 = vmatpush1.msra.mxu0 0.0
  %2882 = vmatprep.subr.mxu0 0.0
  %2883 = vmatpush1.msra.mxu0 0.0
  %2884 = vmatprep.subr.mxu0 0.0
  %2885 = vmatpush1.msra.mxu0 0.0
  %2886 = vmatprep.subr.mxu0 0.0
  %2887 = vmatpush1.msra.mxu0 %v2686
  %2888 = vmatprep.subr.mxu0 0.0
  %2889 = vmatpush2.msra.mxu0 0.0
  %2890 = vmatprep.subr.mxu0 0.0
  %2891 = vmatpush2.msra.mxu0 0.0
  %2892 = vmatprep.subr.mxu0 0.0
  %2893 = vmatpush2.msra.mxu0 0.0
  %2894 = vmatprep.subr.mxu0 0.0
  %2895 = vmatpush2.msra.mxu0 0.0
  %2896 = vmatprep.subr.mxu0 0.0
  %2897 = vmatpush2.msra.mxu0 0.0
  %2898 = vmatprep.subr.mxu0 0.0
  %2899 = vmatpush2.msra.mxu0 0.0
  %2900 = vmatprep.subr.mxu0 0.0
  %2901 = vmatpush2.msra.mxu0 0.0
  %2902 = vmatprep.subr.mxu0 0.0
  %2903 = vmatpush2.msra.mxu0 0.0
  %2904 = vmatprep.subr.mxu0 0.0
  %2905 = vmatpush2.msra.mxu0 0.0
  %2906 = vmatprep.subr.mxu0 0.0
  %2907 = vmatpush2.msra.mxu0 0.0
  %2908 = vmatprep.subr.mxu0 0.0
  %2909 = vmatpush2.msra.mxu0 0.0
  %2910 = vmatprep.subr.mxu0 0.0
  %2911 = vmatpush2.msra.mxu0 0.0
  %2912 = vmatprep.subr.mxu0 0.0
  %2913 = vmatpush2.msra.mxu0 0.0
  %2914 = vmatprep.subr.mxu0 0.0
  %2915 = vmatpush2.msra.mxu0 0.0
  %2916 = vmatprep.subr.mxu0 0.0
  %2917 = vmatpush2.msra.mxu0 0.0
  %2918 = vmatprep.subr.mxu0 0.0
  %2919 = vmatpush2.msra.mxu0 0.0
  %2920 = vmatprep.mubr.f32.mxu0 0.0
  %2921 = vmatmul.mubr.f32.gmra.mxu0 %v2851
  %v2922 = vpop.f32.mrf.mxu0
  %v2923 = vadd.f32 0.0, %v2922
  %v2924 = vpop.f32.mrf.mxu0
  %2925 = vmatprep.mubr.f32.mxu0 0.0
  %2926 = vmatmul.mubr.f32.gmra.mxu0 %v2854
  %v2927 = vpop.f32.mrf.mxu0
  %v2928 = vadd.f32 0.0, %v2927
  %v2929 = vpop.f32.mrf.mxu0
  %2930 = vdwg.mxu0
  %v2931 = vadd.f32 %v2842, %v2923
  %v2932 = vadd.f32 %v2847, %v2928
  %v2934 = vsel %vm71, %v2675, 0
  %v2937 = vsel %vm71, %v2680, 0
  %2939 = vmatprep.subr.mxu0 0.0
  %2940 = vmatpush1.msra.mxu0 0.0
  %2941 = vmatprep.subr.mxu0 0.0
  %2942 = vmatpush1.msra.mxu0 0.0
  %2943 = vmatprep.subr.mxu0 0.0
  %2944 = vmatpush1.msra.mxu0 0.0
  %2945 = vmatprep.subr.mxu0 0.0
  %2946 = vmatpush1.msra.mxu0 0.0
  %2947 = vmatprep.subr.mxu0 0.0
  %2948 = vmatpush1.msra.mxu0 0.0
  %2949 = vmatprep.subr.mxu0 0.0
  %2950 = vmatpush1.msra.mxu0 0.0
  %2951 = vmatprep.subr.mxu0 0.0
  %2952 = vmatpush1.msra.mxu0 0.0
  %2953 = vmatprep.subr.mxu0 0.0
  %2954 = vmatpush1.msra.mxu0 0.0
  %2955 = vmatprep.subr.mxu0 0.0
  %2956 = vmatpush1.msra.mxu0 0.0
  %2957 = vmatprep.subr.mxu0 0.0
  %2958 = vmatpush1.msra.mxu0 0.0
  %2959 = vmatprep.subr.mxu0 0.0
  %2960 = vmatpush1.msra.mxu0 0.0
  %2961 = vmatprep.subr.mxu0 0.0
  %2962 = vmatpush1.msra.mxu0 0.0
  %2963 = vmatprep.subr.mxu0 0.0
  %2964 = vmatpush1.msra.mxu0 0.0
  %2965 = vmatprep.subr.mxu0 0.0
  %2966 = vmatpush1.msra.mxu0 0.0
  %2967 = vmatprep.subr.mxu0 0.0
  %2968 = vmatpush1.msra.mxu0 0.0
  %2969 = vmatprep.subr.mxu0 0.0
  %2970 = vmatpush1.msra.mxu0 %v2687
  %2971 = vmatprep.subr.mxu0 0.0
  %2972 = vmatpush2.msra.mxu0 0.0
  %2973 = vmatprep.subr.mxu0 0.0
  %2974 = vmatpush2.msra.mxu0 0.0
  %2975 = vmatprep.subr.mxu0 0.0
  %2976 = vmatpush2.msra.mxu0 0.0
  %2977 = vmatprep.subr.mxu0 0.0
  %2978 = vmatpush2.msra.mxu0 0.0
  %2979 = vmatprep.subr.mxu0 0.0
  %2980 = vmatpush2.msra.mxu0 0.0
  %2981 = vmatprep.subr.mxu0 0.0
  %2982 = vmatpush2.msra.mxu0 0.0
  %2983 = vmatprep.subr.mxu0 0.0
  %2984 = vmatpush2.msra.mxu0 0.0
  %2985 = vmatprep.subr.mxu0 0.0
  %2986 = vmatpush2.msra.mxu0 0.0
  %2987 = vmatprep.subr.mxu0 0.0
  %2988 = vmatpush2.msra.mxu0 0.0
  %2989 = vmatprep.subr.mxu0 0.0
  %2990 = vmatpush2.msra.mxu0 0.0
  %2991 = vmatprep.subr.mxu0 0.0
  %2992 = vmatpush2.msra.mxu0 0.0
  %2993 = vmatprep.subr.mxu0 0.0
  %2994 = vmatpush2.msra.mxu0 0.0
  %2995 = vmatprep.subr.mxu0 0.0
  %2996 = vmatpush2.msra.mxu0 0.0
  %2997 = vmatprep.subr.mxu0 0.0
  %2998 = vmatpush2.msra.mxu0 0.0
  %2999 = vmatprep.subr.mxu0 0.0
  %3000 = vmatpush2.msra.mxu0 0.0
  %3001 = vmatprep.subr.mxu0 0.0
  %3002 = vmatpush2.msra.mxu0 0.0
  %3003 = vmatprep.mubr.f32.mxu0 0.0
  %3004 = vmatmul.mubr.f32.gmra.mxu0 %v2934
  %v3005 = vpop.f32.mrf.mxu0
  %v3006 = vadd.f32 0.0, %v3005
  %v3007 = vpop.f32.mrf.mxu0
  %3008 = vmatprep.mubr.f32.mxu0 0.0
  %3009 = vmatmul.mubr.f32.gmra.mxu0 %v2937
  %v3010 = vpop.f32.mrf.mxu0
  %v3011 = vadd.f32 0.0, %v3010
  %v3012 = vpop.f32.mrf.mxu0
  %3013 = vdwg.mxu0
  %v3014 = vadd.f32 %v2931, %v3006
  %v3015 = vadd.f32 %v2932, %v3011
  %v3016 = vld [vmem:[%s9 + $0x9] sm:$0x1]
  %v3017 = vlaneseq
  %v3018 = vshrl.u32 %v3017, 7
  %v3019 = vsub.s32 0, %v3018
  %v3020 = vrot.slane %v3016, %v3019
  %v3021 = vadd.f32 %v3014, %v3020
  %v3022 = vadd.f32 %v3015, %v3020
  %v3023 = vadd.f32 %v3021, %v2142
  %v3024 = vadd.f32 %v3022, %v2143
  %v3025 = vsel %vm937, %v3023, 0.0
  %3026 = vadd.xlane.f32.xlu0 %v3025
  %v3027 = vpop.xlane.xlu0 %3026
  %v3028 = vsel %vm937, %v3024, 0.0
  %3029 = vadd.xlane.f32.xlu0 %v3028
  %v3030 = vpop.xlane.xlu0 %3029
  %v3031 = vmul.f32 %v3027, %v944
  %v3032 = vmul.f32 %v3030, %v944
  %v3033 = vsub.f32 %v3023, %v3031
  %v3034 = vsub.f32 %v3024, %v3032
  %v3035 = vmul.f32 %v3033, %v3033
  %v3036 = vmul.f32 %v3034, %v3034
  %v3037 = vsel %vm937, %v3035, 0.0
  %3038 = vadd.xlane.f32.xlu0 %v3037
  %v3039 = vpop.xlane.xlu0 %3038
  %v3040 = vsel %vm937, %v3036, 0.0
  %3041 = vadd.xlane.f32.xlu0 %v3040
  %v3042 = vpop.xlane.xlu0 %3041
  %v3043 = vmul.f32 %v3039, %v944
  %v3044 = vmul.f32 %v3042, %v944
  %v3045 = vadd.f32 %v3043, 1e-05
  %v3046 = vadd.f32 %v3044, 1e-05
  %v3047 = vrsqrt.pop %v3045
  %v3048 = vrsqrt.pop %v3046
  %v3049 = vmul.f32 %v3033, %v3047
  %v3050 = vmul.f32 %v3034, %v3048
  %v3051 = vld [vmem:[%s9 + $0xb] sm:$0x1]
  %v3052 = vlaneseq
  %v3053 = vshrl.u32 %v3052, 7
  %v3054 = vsub.s32 0, %v3053
  %v3055 = vrot.slane %v3051, %v3054
  %v3056 = vmul.f32 %v3049, %v3055
  %v3057 = vmul.f32 %v3050, %v3055
  %v3058 = vld [vmem:[%s9 + $0xc] sm:$0x1]
  %v3059 = vlaneseq
  %v3060 = vshrl.u32 %v3059, 7
  %v3061 = vsub.s32 0, %v3060
  %v3062 = vrot.slane %v3058, %v3061
  %v3063 = vadd.f32 %v3056, %v3062
  %v3064 = vadd.f32 %v3057, %v3062
  %3067 = vrot.lane.b32.xlu0 %v3063, 120
  %v3068 = vpop.permute.xlu0 %3067
  %3069 = vrot.lane.b32.xlu0 %v3064, 120
  %v3070 = vpop.permute.xlu0 %3069
  %3071 = vrot.lane.b32.xlu0 %v3063, 112
  %v3072 = vpop.permute.xlu0 %3071
  %3073 = vrot.lane.b32.xlu0 %v3064, 112
  %v3074 = vpop.permute.xlu0 %3073
  %3075 = vrot.lane.b32.xlu0 %v3063, 104
  %v3076 = vpop.permute.xlu0 %3075
  %3077 = vrot.lane.b32.xlu0 %v3064, 104
  %v3078 = vpop.permute.xlu0 %3077
  %v3079 = vsel %vm71, %v3063, 0
  %v3081 = vsel %vm71, %v3064, 0
  %v3083 = vsel %vm71, %v3068, 0
  %v3085 = vsel %vm71, %v3070, 0
  %v3087 = vsel %vm71, %v3072, 0
  %v3089 = vsel %vm71, %v3074, 0
  %v3091 = vsel %vm71, %v3076, 0
  %v3093 = vsel %vm71, %v3078, 0
  %3095 = vmatprep.subr.mxu0 0.0
  %3096 = vmatpush1.msra.mxu0 0.0
  %3097 = vmatprep.subr.mxu0 0.0
  %3098 = vmatpush1.msra.mxu0 0.0
  %3099 = vmatprep.subr.mxu0 0.0
  %3100 = vmatpush1.msra.mxu0 0.0
  %3101 = vmatprep.subr.mxu0 0.0
  %3102 = vmatpush1.msra.mxu0 0.0
  %3103 = vmatprep.subr.mxu0 0.0
  %3104 = vmatpush1.msra.mxu0 0.0
  %3105 = vmatprep.subr.mxu0 0.0
  %3106 = vmatpush1.msra.mxu0 0.0
  %3107 = vmatprep.subr.mxu0 0.0
  %3108 = vmatpush1.msra.mxu0 0.0
  %3109 = vmatprep.subr.mxu0 0.0
  %3110 = vmatpush1.msra.mxu0 0.0
  %3111 = vmatprep.subr.mxu0 0.0
  %3112 = vmatpush1.msra.mxu0 0.0
  %3113 = vmatprep.subr.mxu0 0.0
  %3114 = vmatpush1.msra.mxu0 0.0
  %3115 = vmatprep.subr.mxu0 0.0
  %3116 = vmatpush1.msra.mxu0 0.0
  %3117 = vmatprep.subr.mxu0 0.0
  %3118 = vmatpush1.msra.mxu0 0.0
  %3119 = vmatprep.subr.mxu0 0.0
  %3120 = vmatpush1.msra.mxu0 0.0
  %3121 = vmatprep.subr.mxu0 0.0
  %3122 = vmatpush1.msra.mxu0 0.0
  %3123 = vmatprep.subr.mxu0 0.0
  %3124 = vmatpush1.msra.mxu0 0.0
  %3125 = vmatprep.subr.mxu0 0.0
  %3126 = vmatpush1.msra.mxu0 %v2145
  %3127 = vmatprep.subr.mxu0 0.0
  %3128 = vmatpush2.msra.mxu0 0.0
  %3129 = vmatprep.subr.mxu0 0.0
  %3130 = vmatpush2.msra.mxu0 0.0
  %3131 = vmatprep.subr.mxu0 0.0
  %3132 = vmatpush2.msra.mxu0 0.0
  %3133 = vmatprep.subr.mxu0 0.0
  %3134 = vmatpush2.msra.mxu0 0.0
  %3135 = vmatprep.subr.mxu0 0.0
  %3136 = vmatpush2.msra.mxu0 0.0
  %3137 = vmatprep.subr.mxu0 0.0
  %3138 = vmatpush2.msra.mxu0 0.0
  %3139 = vmatprep.subr.mxu0 0.0
  %3140 = vmatpush2.msra.mxu0 0.0
  %3141 = vmatprep.subr.mxu0 0.0
  %3142 = vmatpush2.msra.mxu0 0.0
  %3143 = vmatprep.subr.mxu0 0.0
  %3144 = vmatpush2.msra.mxu0 0.0
  %3145 = vmatprep.subr.mxu0 0.0
  %3146 = vmatpush2.msra.mxu0 0.0
  %3147 = vmatprep.subr.mxu0 0.0
  %3148 = vmatpush2.msra.mxu0 0.0
  %3149 = vmatprep.subr.mxu0 0.0
  %3150 = vmatpush2.msra.mxu0 0.0
  %3151 = vmatprep.subr.mxu0 0.0
  %3152 = vmatpush2.msra.mxu0 0.0
  %3153 = vmatprep.subr.mxu0 0.0
  %3154 = vmatpush2.msra.mxu0 0.0
  %3155 = vmatprep.subr.mxu0 0.0
  %3156 = vmatpush2.msra.mxu0 0.0
  %3157 = vmatprep.subr.mxu0 0.0
  %3158 = vmatpush2.msra.mxu0 0.0
  %3159 = vmatprep.mubr.f32.mxu0 0.0
  %3160 = vmatmul.mubr.f32.gmra.mxu0 %v3079
  %v3161 = vpop.f32.mrf.mxu0
  %v3162 = vadd.f32 0.0, %v3161
  %v3163 = vpop.f32.mrf.mxu0
  %3164 = vmatprep.mubr.f32.mxu0 0.0
  %3165 = vmatmul.mubr.f32.gmra.mxu0 %v3081
  %v3166 = vpop.f32.mrf.mxu0
  %v3167 = vadd.f32 0.0, %v3166
  %v3168 = vpop.f32.mrf.mxu0
  %3169 = vmatprep.mubr.f32.mxu0 0.0
  %3170 = vmatmul.mubr.f32.gmra.mxu0 %v3083
  %v3171 = vpop.f32.mrf.mxu0
  %v3172 = vadd.f32 0.0, %v3171
  %v3173 = vpop.f32.mrf.mxu0
  %3174 = vmatprep.mubr.f32.mxu0 0.0
  %3175 = vmatmul.mubr.f32.gmra.mxu0 %v3085
  %v3176 = vpop.f32.mrf.mxu0
  %v3177 = vadd.f32 0.0, %v3176
  %v3178 = vpop.f32.mrf.mxu0
  %3179 = vmatprep.mubr.f32.mxu0 0.0
  %3180 = vmatmul.mubr.f32.gmra.mxu0 %v3087
  %v3181 = vpop.f32.mrf.mxu0
  %v3182 = vadd.f32 0.0, %v3181
  %v3183 = vpop.f32.mrf.mxu0
  %3184 = vmatprep.mubr.f32.mxu0 0.0
  %3185 = vmatmul.mubr.f32.gmra.mxu0 %v3089
  %v3186 = vpop.f32.mrf.mxu0
  %v3187 = vadd.f32 0.0, %v3186
  %v3188 = vpop.f32.mrf.mxu0
  %3189 = vmatprep.mubr.f32.mxu0 0.0
  %3190 = vmatmul.mubr.f32.gmra.mxu0 %v3091
  %v3191 = vpop.f32.mrf.mxu0
  %v3192 = vadd.f32 0.0, %v3191
  %v3193 = vpop.f32.mrf.mxu0
  %3194 = vmatprep.mubr.f32.mxu0 0.0
  %3195 = vmatmul.mubr.f32.gmra.mxu0 %v3093
  %v3196 = vpop.f32.mrf.mxu0
  %v3197 = vadd.f32 0.0, %v3196
  %v3198 = vpop.f32.mrf.mxu0
  %3199 = vdwg.mxu0
  %s3200 = scalar_lea.vmem %s1, 64
  %v3201 = vld [vmem:[%s3200] sm:$0xff]
  %v3202 = vld [vmem:[%s3200 + $0x8] sm:$0xff]
  %v3203 = vld [vmem:[%s3200 + $0x10] sm:$0xff]
  %v3204 = vld [vmem:[%s3200 + $0x18] sm:$0xff]
  %v3205 = vld [vmem:[%s3200 + $0x20] sm:$0xff]
  %v3206 = vld [vmem:[%s3200 + $0x28] sm:$0xff]
  %v3207 = vld [vmem:[%s3200 + $0x30] sm:$0xff]
  %v3208 = vld [vmem:[%s3200 + $0x38] sm:$0xff]
  %3217 = vrot.lane.b32.xlu0 %v3162, 104
  %v3218 = vpop.permute.xlu0 %3217
  %3219 = vrot.lane.b32.xlu0 %v3167, 104
  %v3220 = vpop.permute.xlu0 %3219
  %3221 = vrot.lane.b32.xlu0 %v3172, 104
  %v3222 = vpop.permute.xlu0 %3221
  %3223 = vrot.lane.b32.xlu0 %v3177, 104
  %v3224 = vpop.permute.xlu0 %3223
  %3225 = vrot.lane.b32.xlu0 %v3182, 104
  %v3226 = vpop.permute.xlu0 %3225
  %3227 = vrot.lane.b32.xlu0 %v3187, 104
  %v3228 = vpop.permute.xlu0 %3227
  %3229 = vrot.lane.b32.xlu0 %v3192, 104
  %v3230 = vpop.permute.xlu0 %3229
  %3231 = vrot.lane.b32.xlu0 %v3197, 104
  %v3232 = vpop.permute.xlu0 %3231
  %v3233 = vsel %vm71, %v3218, 0
  %v3235 = vsel %vm71, %v3220, 0
  %v3237 = vsel %vm71, %v3222, 0
  %v3239 = vsel %vm71, %v3224, 0
  %v3241 = vsel %vm71, %v3226, 0
  %v3243 = vsel %vm71, %v3228, 0
  %v3245 = vsel %vm71, %v3230, 0
  %v3247 = vsel %vm71, %v3232, 0
  %v3250 = vsel %vm71, %v3201, 0
  %v3253 = vsel %vm71, %v3202, 0
  %v3256 = vsel %vm71, %v3203, 0
  %v3259 = vsel %vm71, %v3204, 0
  %v3262 = vsel %vm71, %v3205, 0
  %v3265 = vsel %vm71, %v3206, 0
  %v3268 = vsel %vm71, %v3207, 0
  %v3271 = vsel %vm71, %v3208, 0
  %3273 = vmatprep.subr.mxu0 0.0
  %3274 = vmatpush1.xpose.msra.mxu0 0.0
  %3275 = vmatprep.subr.mxu0 0.0
  %3276 = vmatpush1.xpose.msra.mxu0 0.0
  %3277 = vmatprep.subr.mxu0 0.0
  %3278 = vmatpush1.xpose.msra.mxu0 0.0
  %3279 = vmatprep.subr.mxu0 0.0
  %3280 = vmatpush1.xpose.msra.mxu0 0.0
  %3281 = vmatprep.subr.mxu0 0.0
  %3282 = vmatpush1.xpose.msra.mxu0 0.0
  %3283 = vmatprep.subr.mxu0 0.0
  %3284 = vmatpush1.xpose.msra.mxu0 0.0
  %3285 = vmatprep.subr.mxu0 0.0
  %3286 = vmatpush1.xpose.msra.mxu0 0.0
  %3287 = vmatprep.subr.mxu0 0.0
  %3288 = vmatpush1.xpose.msra.mxu0 0.0
  %3289 = vmatprep.subr.mxu0 0.0
  %3290 = vmatpush1.xpose.msra.mxu0 %v3271
  %3291 = vmatprep.subr.mxu0 0.0
  %3292 = vmatpush1.xpose.msra.mxu0 %v3268
  %3293 = vmatprep.subr.mxu0 0.0
  %3294 = vmatpush1.xpose.msra.mxu0 %v3265
  %3295 = vmatprep.subr.mxu0 0.0
  %3296 = vmatpush1.xpose.msra.mxu0 %v3262
  %3297 = vmatprep.subr.mxu0 0.0
  %3298 = vmatpush1.xpose.msra.mxu0 %v3259
  %3299 = vmatprep.subr.mxu0 0.0
  %3300 = vmatpush1.xpose.msra.mxu0 %v3256
  %3301 = vmatprep.subr.mxu0 0.0
  %3302 = vmatpush1.xpose.msra.mxu0 %v3253
  %3303 = vmatprep.subr.mxu0 0.0
  %3304 = vmatpush1.xpose.msra.mxu0 %v3250
  %3305 = vmatprep.subr.mxu0 0.0
  %3306 = vmatpush2.xpose.msra.mxu0 0.0
  %3307 = vmatprep.subr.mxu0 0.0
  %3308 = vmatpush2.xpose.msra.mxu0 0.0
  %3309 = vmatprep.subr.mxu0 0.0
  %3310 = vmatpush2.xpose.msra.mxu0 0.0
  %3311 = vmatprep.subr.mxu0 0.0
  %3312 = vmatpush2.xpose.msra.mxu0 0.0
  %3313 = vmatprep.subr.mxu0 0.0
  %3314 = vmatpush2.xpose.msra.mxu0 0.0
  %3315 = vmatprep.subr.mxu0 0.0
  %3316 = vmatpush2.xpose.msra.mxu0 0.0
  %3317 = vmatprep.subr.mxu0 0.0
  %3318 = vmatpush2.xpose.msra.mxu0 0.0
  %3319 = vmatprep.subr.mxu0 0.0
  %3320 = vmatpush2.xpose.msra.mxu0 0.0
  %3321 = vmatprep.subr.mxu0 0.0
  %3322 = vmatpush2.xpose.msra.mxu0 0.0
  %3323 = vmatprep.subr.mxu0 0.0
  %3324 = vmatpush2.xpose.msra.mxu0 0.0
  %3325 = vmatprep.subr.mxu0 0.0
  %3326 = vmatpush2.xpose.msra.mxu0 0.0
  %3327 = vmatprep.subr.mxu0 0.0
  %3328 = vmatpush2.xpose.msra.mxu0 0.0
  %3329 = vmatprep.subr.mxu0 0.0
  %3330 = vmatpush2.xpose.msra.mxu0 0.0
  %3331 = vmatprep.subr.mxu0 0.0
  %3332 = vmatpush2.xpose.msra.mxu0 0.0
  %3333 = vmatprep.subr.mxu0 0.0
  %3334 = vmatpush2.xpose.msra.mxu0 0.0
  %3335 = vmatprep.subr.mxu0 0.0
  %3336 = vmatpush2.xpose.msra.mxu0 0.0
  %3337 = vmatprep.mubr.f32.mxu0 0.0
  %3338 = vmatmul.mubr.f32.gmra.mxu0 %v3233
  %v3339 = vpop.f32.mrf.mxu0
  %v3340 = vadd.f32 %v48, %v3339
  %v3341 = vpop.f32.mrf.mxu0
  %3342 = vmatprep.mubr.f32.mxu0 0.0
  %3343 = vmatmul.mubr.f32.gmra.mxu0 %v3235
  %v3344 = vpop.f32.mrf.mxu0
  %v3345 = vadd.f32 %v49, %v3344
  %v3346 = vpop.f32.mrf.mxu0
  %3347 = vmatprep.mubr.f32.mxu0 0.0
  %3348 = vmatmul.mubr.f32.gmra.mxu0 %v3237
  %v3349 = vpop.f32.mrf.mxu0
  %v3350 = vadd.f32 %v50, %v3349
  %v3351 = vpop.f32.mrf.mxu0
  %3352 = vmatprep.mubr.f32.mxu0 0.0
  %3353 = vmatmul.mubr.f32.gmra.mxu0 %v3239
  %v3354 = vpop.f32.mrf.mxu0
  %v3355 = vadd.f32 %v51, %v3354
  %v3356 = vpop.f32.mrf.mxu0
  %3357 = vmatprep.mubr.f32.mxu0 0.0
  %3358 = vmatmul.mubr.f32.gmra.mxu0 %v3241
  %v3359 = vpop.f32.mrf.mxu0
  %v3360 = vadd.f32 %v52, %v3359
  %v3361 = vpop.f32.mrf.mxu0
  %3362 = vmatprep.mubr.f32.mxu0 0.0
  %3363 = vmatmul.mubr.f32.gmra.mxu0 %v3243
  %v3364 = vpop.f32.mrf.mxu0
  %v3365 = vadd.f32 %v53, %v3364
  %v3366 = vpop.f32.mrf.mxu0
  %3367 = vmatprep.mubr.f32.mxu0 0.0
  %3368 = vmatmul.mubr.f32.gmra.mxu0 %v3245
  %v3369 = vpop.f32.mrf.mxu0
  %v3370 = vadd.f32 %v54, %v3369
  %v3371 = vpop.f32.mrf.mxu0
  %3372 = vmatprep.mubr.f32.mxu0 0.0
  %3373 = vmatmul.mubr.f32.gmra.mxu0 %v3247
  %v3374 = vpop.f32.mrf.mxu0
  %v3375 = vadd.f32 %v55, %v3374
  %v3376 = vpop.f32.mrf.mxu0
  %3377 = vdwg.mxu0
  %v3378 = vsel %vm354, %v3340, -inf
  %3379 = vmax.xlane.f32.xlu0 %v3378
  %v3380 = vpop.xlane.xlu0 %3379
  %v3381 = vsel %vm354, %v3345, -inf
  %3382 = vmax.xlane.f32.xlu0 %v3381
  %v3383 = vpop.xlane.xlu0 %3382
  %v3384 = vsel %vm354, %v3350, -inf
  %3385 = vmax.xlane.f32.xlu0 %v3384
  %v3386 = vpop.xlane.xlu0 %3385
  %v3387 = vsel %vm354, %v3355, -inf
  %3388 = vmax.xlane.f32.xlu0 %v3387
  %v3389 = vpop.xlane.xlu0 %3388
  %v3390 = vsel %vm354, %v3360, -inf
  %3391 = vmax.xlane.f32.xlu0 %v3390
  %v3392 = vpop.xlane.xlu0 %3391
  %v3393 = vsel %vm354, %v3365, -inf
  %3394 = vmax.xlane.f32.xlu0 %v3393
  %v3395 = vpop.xlane.xlu0 %3394
  %v3396 = vsel %vm354, %v3370, -inf
  %3397 = vmax.xlane.f32.xlu0 %v3396
  %v3398 = vpop.xlane.xlu0 %3397
  %v3399 = vsel %vm354, %v3375, -inf
  %3400 = vmax.xlane.f32.xlu0 %v3399
  %v3401 = vpop.xlane.xlu0 %3400
  %v3402 = vsub.f32 %v3340, %v3380
  %v3403 = vsub.f32 %v3345, %v3383
  %v3404 = vsub.f32 %v3350, %v3386
  %v3405 = vsub.f32 %v3355, %v3389
  %v3406 = vsub.f32 %v3360, %v3392
  %v3407 = vsub.f32 %v3365, %v3395
  %v3408 = vsub.f32 %v3370, %v3398
  %v3409 = vsub.f32 %v3375, %v3401
  %v3410 = vmul.f32 %v3402, 1.442695
  %v3411 = vpow.pop %v3410
  %v3412 = vmul.f32 %v3403, 1.442695
  %v3413 = vpow.pop %v3412
  %v3414 = vmul.f32 %v3404, 1.442695
  %v3415 = vpow.pop %v3414
  %v3416 = vmul.f32 %v3405, 1.442695
  %v3417 = vpow.pop %v3416
  %v3418 = vmul.f32 %v3406, 1.442695
  %v3419 = vpow.pop %v3418
  %v3420 = vmul.f32 %v3407, 1.442695
  %v3421 = vpow.pop %v3420
  %v3422 = vmul.f32 %v3408, 1.442695
  %v3423 = vpow.pop %v3422
  %v3424 = vmul.f32 %v3409, 1.442695
  %v3425 = vpow.pop %v3424
  %v3426 = vsel %vm354, %v3411, 0.0
  %3427 = vadd.xlane.f32.xlu0 %v3426
  %v3428 = vpop.xlane.xlu0 %3427
  %v3429 = vsel %vm354, %v3413, 0.0
  %3430 = vadd.xlane.f32.xlu0 %v3429
  %v3431 = vpop.xlane.xlu0 %3430
  %v3432 = vsel %vm354, %v3415, 0.0
  %3433 = vadd.xlane.f32.xlu0 %v3432
  %v3434 = vpop.xlane.xlu0 %3433
  %v3435 = vsel %vm354, %v3417, 0.0
  %3436 = vadd.xlane.f32.xlu0 %v3435
  %v3437 = vpop.xlane.xlu0 %3436
  %v3438 = vsel %vm354, %v3419, 0.0
  %3439 = vadd.xlane.f32.xlu0 %v3438
  %v3440 = vpop.xlane.xlu0 %3439
  %v3441 = vsel %vm354, %v3421, 0.0
  %3442 = vadd.xlane.f32.xlu0 %v3441
  %v3443 = vpop.xlane.xlu0 %3442
  %v3444 = vsel %vm354, %v3423, 0.0
  %3445 = vadd.xlane.f32.xlu0 %v3444
  %v3446 = vpop.xlane.xlu0 %3445
  %v3447 = vsel %vm354, %v3425, 0.0
  %3448 = vadd.xlane.f32.xlu0 %v3447
  %v3449 = vpop.xlane.xlu0 %3448
  %v3450 = vrcp.pop %v3428
  %v3451 = vrcp.pop %v3431
  %v3452 = vrcp.pop %v3434
  %v3453 = vrcp.pop %v3437
  %v3454 = vrcp.pop %v3440
  %v3455 = vrcp.pop %v3443
  %v3456 = vrcp.pop %v3446
  %v3457 = vrcp.pop %v3449
  %v3458 = vmul.f32 %v3411, %v3450
  %v3459 = vmul.f32 %v3413, %v3451
  %v3460 = vmul.f32 %v3415, %v3452
  %v3461 = vmul.f32 %v3417, %v3453
  %v3462 = vmul.f32 %v3419, %v3454
  %v3463 = vmul.f32 %v3421, %v3455
  %v3464 = vmul.f32 %v3423, %v3456
  %v3465 = vmul.f32 %v3425, %v3457
  %3466 = vrot.lane.b32.xlu0 %v3201, 120
  %v3467 = vpop.permute.xlu0 %3466
  %3468 = vrot.lane.b32.xlu0 %v3202, 120
  %v3469 = vpop.permute.xlu0 %3468
  %3470 = vrot.lane.b32.xlu0 %v3203, 120
  %v3471 = vpop.permute.xlu0 %3470
  %3472 = vrot.lane.b32.xlu0 %v3204, 120
  %v3473 = vpop.permute.xlu0 %3472
  %3474 = vrot.lane.b32.xlu0 %v3205, 120
  %v3475 = vpop.permute.xlu0 %3474
  %3476 = vrot.lane.b32.xlu0 %v3206, 120
  %v3477 = vpop.permute.xlu0 %3476
  %3478 = vrot.lane.b32.xlu0 %v3207, 120
  %v3479 = vpop.permute.xlu0 %3478
  %3480 = vrot.lane.b32.xlu0 %v3208, 120
  %v3481 = vpop.permute.xlu0 %3480
  %v3491 = vsel %vm354, %v3458, 0
  %v3494 = vsel %vm354, %v3459, 0
  %v3497 = vsel %vm354, %v3460, 0
  %v3500 = vsel %vm354, %v3461, 0
  %v3503 = vsel %vm354, %v3462, 0
  %v3506 = vsel %vm354, %v3463, 0
  %v3509 = vsel %vm354, %v3464, 0
  %v3512 = vsel %vm354, %v3465, 0
  %3514 = vmatprep.subr.mxu0 0.0
  %3515 = vmatpush1.msra.mxu0 0.0
  %3516 = vmatprep.subr.mxu0 0.0
  %3517 = vmatpush1.msra.mxu0 0.0
  %3518 = vmatprep.subr.mxu0 0.0
  %3519 = vmatpush1.msra.mxu0 0.0
  %3520 = vmatprep.subr.mxu0 0.0
  %3521 = vmatpush1.msra.mxu0 0.0
  %3522 = vmatprep.subr.mxu0 0.0
  %3523 = vmatpush1.msra.mxu0 0.0
  %3524 = vmatprep.subr.mxu0 0.0
  %3525 = vmatpush1.msra.mxu0 0.0
  %3526 = vmatprep.subr.mxu0 0.0
  %3527 = vmatpush1.msra.mxu0 0.0
  %3528 = vmatprep.subr.mxu0 0.0
  %3529 = vmatpush1.msra.mxu0 0.0
  %3530 = vmatprep.subr.mxu0 0.0
  %3531 = vmatpush1.msra.mxu0 %v3481
  %3532 = vmatprep.subr.mxu0 0.0
  %3533 = vmatpush1.msra.mxu0 %v3479
  %3534 = vmatprep.subr.mxu0 0.0
  %3535 = vmatpush1.msra.mxu0 %v3477
  %3536 = vmatprep.subr.mxu0 0.0
  %3537 = vmatpush1.msra.mxu0 %v3475
  %3538 = vmatprep.subr.mxu0 0.0
  %3539 = vmatpush1.msra.mxu0 %v3473
  %3540 = vmatprep.subr.mxu0 0.0
  %3541 = vmatpush1.msra.mxu0 %v3471
  %3542 = vmatprep.subr.mxu0 0.0
  %3543 = vmatpush1.msra.mxu0 %v3469
  %3544 = vmatprep.subr.mxu0 0.0
  %3545 = vmatpush1.msra.mxu0 %v3467
  %3546 = vmatprep.subr.mxu0 0.0
  %3547 = vmatpush2.msra.mxu0 0.0
  %3548 = vmatprep.subr.mxu0 0.0
  %3549 = vmatpush2.msra.mxu0 0.0
  %3550 = vmatprep.subr.mxu0 0.0
  %3551 = vmatpush2.msra.mxu0 0.0
  %3552 = vmatprep.subr.mxu0 0.0
  %3553 = vmatpush2.msra.mxu0 0.0
  %3554 = vmatprep.subr.mxu0 0.0
  %3555 = vmatpush2.msra.mxu0 0.0
  %3556 = vmatprep.subr.mxu0 0.0
  %3557 = vmatpush2.msra.mxu0 0.0
  %3558 = vmatprep.subr.mxu0 0.0
  %3559 = vmatpush2.msra.mxu0 0.0
  %3560 = vmatprep.subr.mxu0 0.0
  %3561 = vmatpush2.msra.mxu0 0.0
  %3562 = vmatprep.subr.mxu0 0.0
  %3563 = vmatpush2.msra.mxu0 0.0
  %3564 = vmatprep.subr.mxu0 0.0
  %3565 = vmatpush2.msra.mxu0 0.0
  %3566 = vmatprep.subr.mxu0 0.0
  %3567 = vmatpush2.msra.mxu0 0.0
  %3568 = vmatprep.subr.mxu0 0.0
  %3569 = vmatpush2.msra.mxu0 0.0
  %3570 = vmatprep.subr.mxu0 0.0
  %3571 = vmatpush2.msra.mxu0 0.0
  %3572 = vmatprep.subr.mxu0 0.0
  %3573 = vmatpush2.msra.mxu0 0.0
  %3574 = vmatprep.subr.mxu0 0.0
  %3575 = vmatpush2.msra.mxu0 0.0
  %3576 = vmatprep.subr.mxu0 0.0
  %3577 = vmatpush2.msra.mxu0 0.0
  %3578 = vmatprep.mubr.f32.mxu0 0.0
  %3579 = vmatmul.mubr.f32.gmra.mxu0 %v3491
  %v3580 = vpop.f32.mrf.mxu0
  %v3581 = vadd.f32 0.0, %v3580
  %v3582 = vpop.f32.mrf.mxu0
  %3583 = vmatprep.mubr.f32.mxu0 0.0
  %3584 = vmatmul.mubr.f32.gmra.mxu0 %v3494
  %v3585 = vpop.f32.mrf.mxu0
  %v3586 = vadd.f32 0.0, %v3585
  %v3587 = vpop.f32.mrf.mxu0
  %3588 = vmatprep.mubr.f32.mxu0 0.0
  %3589 = vmatmul.mubr.f32.gmra.mxu0 %v3497
  %v3590 = vpop.f32.mrf.mxu0
  %v3591 = vadd.f32 0.0, %v3590
  %v3592 = vpop.f32.mrf.mxu0
  %3593 = vmatprep.mubr.f32.mxu0 0.0
  %3594 = vmatmul.mubr.f32.gmra.mxu0 %v3500
  %v3595 = vpop.f32.mrf.mxu0
  %v3596 = vadd.f32 0.0, %v3595
  %v3597 = vpop.f32.mrf.mxu0
  %3598 = vmatprep.mubr.f32.mxu0 0.0
  %3599 = vmatmul.mubr.f32.gmra.mxu0 %v3503
  %v3600 = vpop.f32.mrf.mxu0
  %v3601 = vadd.f32 0.0, %v3600
  %v3602 = vpop.f32.mrf.mxu0
  %3603 = vmatprep.mubr.f32.mxu0 0.0
  %3604 = vmatmul.mubr.f32.gmra.mxu0 %v3506
  %v3605 = vpop.f32.mrf.mxu0
  %v3606 = vadd.f32 0.0, %v3605
  %v3607 = vpop.f32.mrf.mxu0
  %3608 = vmatprep.mubr.f32.mxu0 0.0
  %3609 = vmatmul.mubr.f32.gmra.mxu0 %v3509
  %v3610 = vpop.f32.mrf.mxu0
  %v3611 = vadd.f32 0.0, %v3610
  %v3612 = vpop.f32.mrf.mxu0
  %3613 = vmatprep.mubr.f32.mxu0 0.0
  %3614 = vmatmul.mubr.f32.gmra.mxu0 %v3512
  %v3615 = vpop.f32.mrf.mxu0
  %v3616 = vadd.f32 0.0, %v3615
  %v3617 = vpop.f32.mrf.mxu0
  %3618 = vdwg.mxu0
  %s3619 = scalar_lea.vmem %s5, 96
  %v3620 = vld [vmem:[%s3619] sm:$0xff]
  %v3621 = vld [vmem:[%s3619 + $0x8] sm:$0xff]
  %v3622 = vld [vmem:[%s3619 + $0x10] sm:$0xff]
  %v3623 = vld [vmem:[%s3619 + $0x18] sm:$0xff]
  %v3625 = vsel %vm71, %v3591, 0
  %v3628 = vsel %vm71, %v3596, 0
  %3630 = vmatprep.subr.mxu0 0.0
  %3631 = vmatpush1.msra.mxu0 0.0
  %3632 = vmatprep.subr.mxu0 0.0
  %3633 = vmatpush1.msra.mxu0 0.0
  %3634 = vmatprep.subr.mxu0 0.0
  %3635 = vmatpush1.msra.mxu0 0.0
  %3636 = vmatprep.subr.mxu0 0.0
  %3637 = vmatpush1.msra.mxu0 0.0
  %3638 = vmatprep.subr.mxu0 0.0
  %3639 = vmatpush1.msra.mxu0 0.0
  %3640 = vmatprep.subr.mxu0 0.0
  %3641 = vmatpush1.msra.mxu0 0.0
  %3642 = vmatprep.subr.mxu0 0.0
  %3643 = vmatpush1.msra.mxu0 0.0
  %3644 = vmatprep.subr.mxu0 0.0
  %3645 = vmatpush1.msra.mxu0 0.0
  %3646 = vmatprep.subr.mxu0 0.0
  %3647 = vmatpush1.msra.mxu0 0.0
  %3648 = vmatprep.subr.mxu0 0.0
  %3649 = vmatpush1.msra.mxu0 0.0
  %3650 = vmatprep.subr.mxu0 0.0
  %3651 = vmatpush1.msra.mxu0 0.0
  %3652 = vmatprep.subr.mxu0 0.0
  %3653 = vmatpush1.msra.mxu0 0.0
  %3654 = vmatprep.subr.mxu0 0.0
  %3655 = vmatpush1.msra.mxu0 0.0
  %3656 = vmatprep.subr.mxu0 0.0
  %3657 = vmatpush1.msra.mxu0 0.0
  %3658 = vmatprep.subr.mxu0 0.0
  %3659 = vmatpush1.msra.mxu0 0.0
  %3660 = vmatprep.subr.mxu0 0.0
  %3661 = vmatpush1.msra.mxu0 %v3621
  %3662 = vmatprep.subr.mxu0 0.0
  %3663 = vmatpush2.msra.mxu0 0.0
  %3664 = vmatprep.subr.mxu0 0.0
  %3665 = vmatpush2.msra.mxu0 0.0
  %3666 = vmatprep.subr.mxu0 0.0
  %3667 = vmatpush2.msra.mxu0 0.0
  %3668 = vmatprep.subr.mxu0 0.0
  %3669 = vmatpush2.msra.mxu0 0.0
  %3670 = vmatprep.subr.mxu0 0.0
  %3671 = vmatpush2.msra.mxu0 0.0
  %3672 = vmatprep.subr.mxu0 0.0
  %3673 = vmatpush2.msra.mxu0 0.0
  %3674 = vmatprep.subr.mxu0 0.0
  %3675 = vmatpush2.msra.mxu0 0.0
  %3676 = vmatprep.subr.mxu0 0.0
  %3677 = vmatpush2.msra.mxu0 0.0
  %3678 = vmatprep.subr.mxu0 0.0
  %3679 = vmatpush2.msra.mxu0 0.0
  %3680 = vmatprep.subr.mxu0 0.0
  %3681 = vmatpush2.msra.mxu0 0.0
  %3682 = vmatprep.subr.mxu0 0.0
  %3683 = vmatpush2.msra.mxu0 0.0
  %3684 = vmatprep.subr.mxu0 0.0
  %3685 = vmatpush2.msra.mxu0 0.0
  %3686 = vmatprep.subr.mxu0 0.0
  %3687 = vmatpush2.msra.mxu0 0.0
  %3688 = vmatprep.subr.mxu0 0.0
  %3689 = vmatpush2.msra.mxu0 0.0
  %3690 = vmatprep.subr.mxu0 0.0
  %3691 = vmatpush2.msra.mxu0 0.0
  %3692 = vmatprep.subr.mxu0 0.0
  %3693 = vmatpush2.msra.mxu0 0.0
  %3694 = vmatprep.mubr.f32.mxu0 0.0
  %3695 = vmatmul.mubr.f32.gmra.mxu0 %v3625
  %v3696 = vpop.f32.mrf.mxu0
  %v3697 = vadd.f32 0.0, %v3696
  %v3698 = vpop.f32.mrf.mxu0
  %3699 = vmatprep.mubr.f32.mxu0 0.0
  %3700 = vmatmul.mubr.f32.gmra.mxu0 %v3628
  %v3701 = vpop.f32.mrf.mxu0
  %v3702 = vadd.f32 0.0, %v3701
  %v3703 = vpop.f32.mrf.mxu0
  %3704 = vdwg.mxu0
  %v3706 = vsel %vm71, %v3581, 0
  %v3709 = vsel %vm71, %v3586, 0
  %3711 = vmatprep.subr.mxu0 0.0
  %3712 = vmatpush1.msra.mxu0 0.0
  %3713 = vmatprep.subr.mxu0 0.0
  %3714 = vmatpush1.msra.mxu0 0.0
  %3715 = vmatprep.subr.mxu0 0.0
  %3716 = vmatpush1.msra.mxu0 0.0
  %3717 = vmatprep.subr.mxu0 0.0
  %3718 = vmatpush1.msra.mxu0 0.0
  %3719 = vmatprep.subr.mxu0 0.0
  %3720 = vmatpush1.msra.mxu0 0.0
  %3721 = vmatprep.subr.mxu0 0.0
  %3722 = vmatpush1.msra.mxu0 0.0
  %3723 = vmatprep.subr.mxu0 0.0
  %3724 = vmatpush1.msra.mxu0 0.0
  %3725 = vmatprep.subr.mxu0 0.0
  %3726 = vmatpush1.msra.mxu0 0.0
  %3727 = vmatprep.subr.mxu0 0.0
  %3728 = vmatpush1.msra.mxu0 0.0
  %3729 = vmatprep.subr.mxu0 0.0
  %3730 = vmatpush1.msra.mxu0 0.0
  %3731 = vmatprep.subr.mxu0 0.0
  %3732 = vmatpush1.msra.mxu0 0.0
  %3733 = vmatprep.subr.mxu0 0.0
  %3734 = vmatpush1.msra.mxu0 0.0
  %3735 = vmatprep.subr.mxu0 0.0
  %3736 = vmatpush1.msra.mxu0 0.0
  %3737 = vmatprep.subr.mxu0 0.0
  %3738 = vmatpush1.msra.mxu0 0.0
  %3739 = vmatprep.subr.mxu0 0.0
  %3740 = vmatpush1.msra.mxu0 0.0
  %3741 = vmatprep.subr.mxu0 0.0
  %3742 = vmatpush1.msra.mxu0 %v3620
  %3743 = vmatprep.subr.mxu0 0.0
  %3744 = vmatpush2.msra.mxu0 0.0
  %3745 = vmatprep.subr.mxu0 0.0
  %3746 = vmatpush2.msra.mxu0 0.0
  %3747 = vmatprep.subr.mxu0 0.0
  %3748 = vmatpush2.msra.mxu0 0.0
  %3749 = vmatprep.subr.mxu0 0.0
  %3750 = vmatpush2.msra.mxu0 0.0
  %3751 = vmatprep.subr.mxu0 0.0
  %3752 = vmatpush2.msra.mxu0 0.0
  %3753 = vmatprep.subr.mxu0 0.0
  %3754 = vmatpush2.msra.mxu0 0.0
  %3755 = vmatprep.subr.mxu0 0.0
  %3756 = vmatpush2.msra.mxu0 0.0
  %3757 = vmatprep.subr.mxu0 0.0
  %3758 = vmatpush2.msra.mxu0 0.0
  %3759 = vmatprep.subr.mxu0 0.0
  %3760 = vmatpush2.msra.mxu0 0.0
  %3761 = vmatprep.subr.mxu0 0.0
  %3762 = vmatpush2.msra.mxu0 0.0
  %3763 = vmatprep.subr.mxu0 0.0
  %3764 = vmatpush2.msra.mxu0 0.0
  %3765 = vmatprep.subr.mxu0 0.0
  %3766 = vmatpush2.msra.mxu0 0.0
  %3767 = vmatprep.subr.mxu0 0.0
  %3768 = vmatpush2.msra.mxu0 0.0
  %3769 = vmatprep.subr.mxu0 0.0
  %3770 = vmatpush2.msra.mxu0 0.0
  %3771 = vmatprep.subr.mxu0 0.0
  %3772 = vmatpush2.msra.mxu0 0.0
  %3773 = vmatprep.subr.mxu0 0.0
  %3774 = vmatpush2.msra.mxu0 0.0
  %3775 = vmatprep.mubr.f32.mxu0 0.0
  %3776 = vmatmul.mubr.f32.gmra.mxu0 %v3706
  %v3777 = vpop.f32.mrf.mxu0
  %v3778 = vadd.f32 %v3697, %v3777
  %v3779 = vpop.f32.mrf.mxu0
  %3780 = vmatprep.mubr.f32.mxu0 0.0
  %3781 = vmatmul.mubr.f32.gmra.mxu0 %v3709
  %v3782 = vpop.f32.mrf.mxu0
  %v3783 = vadd.f32 %v3702, %v3782
  %v3784 = vpop.f32.mrf.mxu0
  %3785 = vdwg.mxu0
  %v3787 = vsel %vm71, %v3601, 0
  %v3790 = vsel %vm71, %v3606, 0
  %3792 = vmatprep.subr.mxu0 0.0
  %3793 = vmatpush1.msra.mxu0 0.0
  %3794 = vmatprep.subr.mxu0 0.0
  %3795 = vmatpush1.msra.mxu0 0.0
  %3796 = vmatprep.subr.mxu0 0.0
  %3797 = vmatpush1.msra.mxu0 0.0
  %3798 = vmatprep.subr.mxu0 0.0
  %3799 = vmatpush1.msra.mxu0 0.0
  %3800 = vmatprep.subr.mxu0 0.0
  %3801 = vmatpush1.msra.mxu0 0.0
  %3802 = vmatprep.subr.mxu0 0.0
  %3803 = vmatpush1.msra.mxu0 0.0
  %3804 = vmatprep.subr.mxu0 0.0
  %3805 = vmatpush1.msra.mxu0 0.0
  %3806 = vmatprep.subr.mxu0 0.0
  %3807 = vmatpush1.msra.mxu0 0.0
  %3808 = vmatprep.subr.mxu0 0.0
  %3809 = vmatpush1.msra.mxu0 0.0
  %3810 = vmatprep.subr.mxu0 0.0
  %3811 = vmatpush1.msra.mxu0 0.0
  %3812 = vmatprep.subr.mxu0 0.0
  %3813 = vmatpush1.msra.mxu0 0.0
  %3814 = vmatprep.subr.mxu0 0.0
  %3815 = vmatpush1.msra.mxu0 0.0
  %3816 = vmatprep.subr.mxu0 0.0
  %3817 = vmatpush1.msra.mxu0 0.0
  %3818 = vmatprep.subr.mxu0 0.0
  %3819 = vmatpush1.msra.mxu0 0.0
  %3820 = vmatprep.subr.mxu0 0.0
  %3821 = vmatpush1.msra.mxu0 0.0
  %3822 = vmatprep.subr.mxu0 0.0
  %3823 = vmatpush1.msra.mxu0 %v3622
  %3824 = vmatprep.subr.mxu0 0.0
  %3825 = vmatpush2.msra.mxu0 0.0
  %3826 = vmatprep.subr.mxu0 0.0
  %3827 = vmatpush2.msra.mxu0 0.0
  %3828 = vmatprep.subr.mxu0 0.0
  %3829 = vmatpush2.msra.mxu0 0.0
  %3830 = vmatprep.subr.mxu0 0.0
  %3831 = vmatpush2.msra.mxu0 0.0
  %3832 = vmatprep.subr.mxu0 0.0
  %3833 = vmatpush2.msra.mxu0 0.0
  %3834 = vmatprep.subr.mxu0 0.0
  %3835 = vmatpush2.msra.mxu0 0.0
  %3836 = vmatprep.subr.mxu0 0.0
  %3837 = vmatpush2.msra.mxu0 0.0
  %3838 = vmatprep.subr.mxu0 0.0
  %3839 = vmatpush2.msra.mxu0 0.0
  %3840 = vmatprep.subr.mxu0 0.0
  %3841 = vmatpush2.msra.mxu0 0.0
  %3842 = vmatprep.subr.mxu0 0.0
  %3843 = vmatpush2.msra.mxu0 0.0
  %3844 = vmatprep.subr.mxu0 0.0
  %3845 = vmatpush2.msra.mxu0 0.0
  %3846 = vmatprep.subr.mxu0 0.0
  %3847 = vmatpush2.msra.mxu0 0.0
  %3848 = vmatprep.subr.mxu0 0.0
  %3849 = vmatpush2.msra.mxu0 0.0
  %3850 = vmatprep.subr.mxu0 0.0
  %3851 = vmatpush2.msra.mxu0 0.0
  %3852 = vmatprep.subr.mxu0 0.0
  %3853 = vmatpush2.msra.mxu0 0.0
  %3854 = vmatprep.subr.mxu0 0.0
  %3855 = vmatpush2.msra.mxu0 0.0
  %3856 = vmatprep.mubr.f32.mxu0 0.0
  %3857 = vmatmul.mubr.f32.gmra.mxu0 %v3787
  %v3858 = vpop.f32.mrf.mxu0
  %v3859 = vadd.f32 0.0, %v3858
  %v3860 = vpop.f32.mrf.mxu0
  %3861 = vmatprep.mubr.f32.mxu0 0.0
  %3862 = vmatmul.mubr.f32.gmra.mxu0 %v3790
  %v3863 = vpop.f32.mrf.mxu0
  %v3864 = vadd.f32 0.0, %v3863
  %v3865 = vpop.f32.mrf.mxu0
  %3866 = vdwg.mxu0
  %v3867 = vadd.f32 %v3778, %v3859
  %v3868 = vadd.f32 %v3783, %v3864
  %v3870 = vsel %vm71, %v3611, 0
  %v3873 = vsel %vm71, %v3616, 0
  %3875 = vmatprep.subr.mxu0 0.0
  %3876 = vmatpush1.msra.mxu0 0.0
  %3877 = vmatprep.subr.mxu0 0.0
  %3878 = vmatpush1.msra.mxu0 0.0
  %3879 = vmatprep.subr.mxu0 0.0
  %3880 = vmatpush1.msra.mxu0 0.0
  %3881 = vmatprep.subr.mxu0 0.0
  %3882 = vmatpush1.msra.mxu0 0.0
  %3883 = vmatprep.subr.mxu0 0.0
  %3884 = vmatpush1.msra.mxu0 0.0
  %3885 = vmatprep.subr.mxu0 0.0
  %3886 = vmatpush1.msra.mxu0 0.0
  %3887 = vmatprep.subr.mxu0 0.0
  %3888 = vmatpush1.msra.mxu0 0.0
  %3889 = vmatprep.subr.mxu0 0.0
  %3890 = vmatpush1.msra.mxu0 0.0
  %3891 = vmatprep.subr.mxu0 0.0
  %3892 = vmatpush1.msra.mxu0 0.0
  %3893 = vmatprep.subr.mxu0 0.0
  %3894 = vmatpush1.msra.mxu0 0.0
  %3895 = vmatprep.subr.mxu0 0.0
  %3896 = vmatpush1.msra.mxu0 0.0
  %3897 = vmatprep.subr.mxu0 0.0
  %3898 = vmatpush1.msra.mxu0 0.0
  %3899 = vmatprep.subr.mxu0 0.0
  %3900 = vmatpush1.msra.mxu0 0.0
  %3901 = vmatprep.subr.mxu0 0.0
  %3902 = vmatpush1.msra.mxu0 0.0
  %3903 = vmatprep.subr.mxu0 0.0
  %3904 = vmatpush1.msra.mxu0 0.0
  %3905 = vmatprep.subr.mxu0 0.0
  %3906 = vmatpush1.msra.mxu0 %v3623
  %3907 = vmatprep.subr.mxu0 0.0
  %3908 = vmatpush2.msra.mxu0 0.0
  %3909 = vmatprep.subr.mxu0 0.0
  %3910 = vmatpush2.msra.mxu0 0.0
  %3911 = vmatprep.subr.mxu0 0.0
  %3912 = vmatpush2.msra.mxu0 0.0
  %3913 = vmatprep.subr.mxu0 0.0
  %3914 = vmatpush2.msra.mxu0 0.0
  %3915 = vmatprep.subr.mxu0 0.0
  %3916 = vmatpush2.msra.mxu0 0.0
  %3917 = vmatprep.subr.mxu0 0.0
  %3918 = vmatpush2.msra.mxu0 0.0
  %3919 = vmatprep.subr.mxu0 0.0
  %3920 = vmatpush2.msra.mxu0 0.0
  %3921 = vmatprep.subr.mxu0 0.0
  %3922 = vmatpush2.msra.mxu0 0.0
  %3923 = vmatprep.subr.mxu0 0.0
  %3924 = vmatpush2.msra.mxu0 0.0
  %3925 = vmatprep.subr.mxu0 0.0
  %3926 = vmatpush2.msra.mxu0 0.0
  %3927 = vmatprep.subr.mxu0 0.0
  %3928 = vmatpush2.msra.mxu0 0.0
  %3929 = vmatprep.subr.mxu0 0.0
  %3930 = vmatpush2.msra.mxu0 0.0
  %3931 = vmatprep.subr.mxu0 0.0
  %3932 = vmatpush2.msra.mxu0 0.0
  %3933 = vmatprep.subr.mxu0 0.0
  %3934 = vmatpush2.msra.mxu0 0.0
  %3935 = vmatprep.subr.mxu0 0.0
  %3936 = vmatpush2.msra.mxu0 0.0
  %3937 = vmatprep.subr.mxu0 0.0
  %3938 = vmatpush2.msra.mxu0 0.0
  %3939 = vmatprep.mubr.f32.mxu0 0.0
  %3940 = vmatmul.mubr.f32.gmra.mxu0 %v3870
  %v3941 = vpop.f32.mrf.mxu0
  %v3942 = vadd.f32 0.0, %v3941
  %v3943 = vpop.f32.mrf.mxu0
  %3944 = vmatprep.mubr.f32.mxu0 0.0
  %3945 = vmatmul.mubr.f32.gmra.mxu0 %v3873
  %v3946 = vpop.f32.mrf.mxu0
  %v3947 = vadd.f32 0.0, %v3946
  %v3948 = vpop.f32.mrf.mxu0
  %3949 = vdwg.mxu0
  %v3950 = vadd.f32 %v3867, %v3942
  %v3951 = vadd.f32 %v3868, %v3947
  %v3952 = vld [vmem:[%s9 + $0xa] sm:$0x1]
  %v3953 = vlaneseq
  %v3954 = vshrl.u32 %v3953, 7
  %v3955 = vsub.s32 0, %v3954
  %v3956 = vrot.slane %v3952, %v3955
  %v3957 = vadd.f32 %v3950, %v3956
  %v3958 = vadd.f32 %v3951, %v3956
  %v3959 = vadd.f32 %v3957, %v3063
  %v3960 = vadd.f32 %v3958, %v3064
  %v3961 = vsel %vm937, %v3959, 0.0
  %3962 = vadd.xlane.f32.xlu0 %v3961
  %v3963 = vpop.xlane.xlu0 %3962
  %v3964 = vsel %vm937, %v3960, 0.0
  %3965 = vadd.xlane.f32.xlu0 %v3964
  %v3966 = vpop.xlane.xlu0 %3965
  %v3967 = vmul.f32 %v3963, %v944
  %v3968 = vmul.f32 %v3966, %v944
  %v3969 = vsub.f32 %v3959, %v3967
  %v3970 = vsub.f32 %v3960, %v3968
  %v3971 = vmul.f32 %v3969, %v3969
  %v3972 = vmul.f32 %v3970, %v3970
  %v3973 = vsel %vm937, %v3971, 0.0
  %3974 = vadd.xlane.f32.xlu0 %v3973
  %v3975 = vpop.xlane.xlu0 %3974
  %v3976 = vsel %vm937, %v3972, 0.0
  %3977 = vadd.xlane.f32.xlu0 %v3976
  %v3978 = vpop.xlane.xlu0 %3977
  %v3979 = vmul.f32 %v3975, %v944
  %v3980 = vmul.f32 %v3978, %v944
  %v3981 = vadd.f32 %v3979, 1e-05
  %v3982 = vadd.f32 %v3980, 1e-05
  %v3983 = vrsqrt.pop %v3981
  %v3984 = vrsqrt.pop %v3982
  %v3985 = vmul.f32 %v3969, %v3983
  %v3986 = vmul.f32 %v3970, %v3984
  %v3987 = vld [vmem:[%s9 + $0xd] sm:$0x1]
  %v3988 = vlaneseq
  %v3989 = vshrl.u32 %v3988, 7
  %v3990 = vsub.s32 0, %v3989
  %v3991 = vrot.slane %v3987, %v3990
  %v3992 = vmul.f32 %v3985, %v3991
  %v3993 = vmul.f32 %v3986, %v3991
  %v3994 = vld [vmem:[%s9 + $0xe] sm:$0x1]
  %v3995 = vlaneseq
  %v3996 = vshrl.u32 %v3995, 7
  %v3997 = vsub.s32 0, %v3996
  %v3998 = vrot.slane %v3994, %v3997
  %v3999 = vadd.f32 %v3992, %v3998
  %v4000 = vadd.f32 %v3993, %v3998
  %s4001 = scalar_lea.vmem %s6, 32
  %v4002 = vld [vmem:[%s4001] sm:$0xff]
  %v4003 = vld [vmem:[%s4001 + $0x8] sm:$0xff]
  %v4004 = vld [vmem:[%s4001 + $0x10] sm:$0xff]
  %v4005 = vld [vmem:[%s4001 + $0x18] sm:$0xff]
  %v4006 = vld [vmem:[%s10 + $0x1] sm:$0x1]
  %v4007 = vlaneseq
  %v4008 = vshrl.u32 %v4007, 7
  %v4009 = vsub.s32 0, %v4008
  %v4010 = vrot.slane %v4006, %v4009
  %v4012 = vsel %vm937, %v3999, 0
  %v4015 = vsel %vm937, %v4000, 0
  %4017 = vmatprep.subr.mxu0 0.0
  %4018 = vmatpush1.msra.mxu0 0.0
  %4019 = vmatprep.subr.mxu0 0.0
  %4020 = vmatpush1.msra.mxu0 0.0
  %4021 = vmatprep.subr.mxu0 0.0
  %4022 = vmatpush1.msra.mxu0 0.0
  %4023 = vmatprep.subr.mxu0 0.0
  %4024 = vmatpush1.msra.mxu0 0.0
  %4025 = vmatprep.subr.mxu0 0.0
  %4026 = vmatpush1.msra.mxu0 0.0
  %4027 = vmatprep.subr.mxu0 0.0
  %4028 = vmatpush1.msra.mxu0 0.0
  %4029 = vmatprep.subr.mxu0 0.0
  %4030 = vmatpush1.msra.mxu0 0.0
  %4031 = vmatprep.subr.mxu0 0.0
  %4032 = vmatpush1.msra.mxu0 0.0
  %4033 = vmatprep.subr.mxu0 0.0
  %4034 = vmatpush1.msra.mxu0 0.0
  %4035 = vmatprep.subr.mxu0 0.0
  %4036 = vmatpush1.msra.mxu0 0.0
  %4037 = vmatprep.subr.mxu0 0.0
  %4038 = vmatpush1.msra.mxu0 0.0
  %4039 = vmatprep.subr.mxu0 0.0
  %4040 = vmatpush1.msra.mxu0 0.0
  %4041 = vmatprep.subr.mxu0 0.0
  %4042 = vmatpush1.msra.mxu0 %v4005
  %4043 = vmatprep.subr.mxu0 0.0
  %4044 = vmatpush1.msra.mxu0 %v4004
  %4045 = vmatprep.subr.mxu0 0.0
  %4046 = vmatpush1.msra.mxu0 %v4003
  %4047 = vmatprep.subr.mxu0 0.0
  %4048 = vmatpush1.msra.mxu0 %v4002
  %4049 = vmatprep.subr.mxu0 0.0
  %4050 = vmatpush2.msra.mxu0 0.0
  %4051 = vmatprep.subr.mxu0 0.0
  %4052 = vmatpush2.msra.mxu0 0.0
  %4053 = vmatprep.subr.mxu0 0.0
  %4054 = vmatpush2.msra.mxu0 0.0
  %4055 = vmatprep.subr.mxu0 0.0
  %4056 = vmatpush2.msra.mxu0 0.0
  %4057 = vmatprep.subr.mxu0 0.0
  %4058 = vmatpush2.msra.mxu0 0.0
  %4059 = vmatprep.subr.mxu0 0.0
  %4060 = vmatpush2.msra.mxu0 0.0
  %4061 = vmatprep.subr.mxu0 0.0
  %4062 = vmatpush2.msra.mxu0 0.0
  %4063 = vmatprep.subr.mxu0 0.0
  %4064 = vmatpush2.msra.mxu0 0.0
  %4065 = vmatprep.subr.mxu0 0.0
  %4066 = vmatpush2.msra.mxu0 0.0
  %4067 = vmatprep.subr.mxu0 0.0
  %4068 = vmatpush2.msra.mxu0 0.0
  %4069 = vmatprep.subr.mxu0 0.0
  %4070 = vmatpush2.msra.mxu0 0.0
  %4071 = vmatprep.subr.mxu0 0.0
  %4072 = vmatpush2.msra.mxu0 0.0
  %4073 = vmatprep.subr.mxu0 0.0
  %4074 = vmatpush2.msra.mxu0 0.0
  %4075 = vmatprep.subr.mxu0 0.0
  %4076 = vmatpush2.msra.mxu0 0.0
  %4077 = vmatprep.subr.mxu0 0.0
  %4078 = vmatpush2.msra.mxu0 0.0
  %4079 = vmatprep.subr.mxu0 0.0
  %4080 = vmatpush2.msra.mxu0 0.0
  %4081 = vmatprep.mubr.f32.mxu0 0.0
  %4082 = vmatmul.mubr.f32.gmra.mxu0 %v4012
  %v4083 = vpop.f32.mrf.mxu0
  %v4084 = vadd.f32 %v4010, %v4083
  %v4085 = vpop.f32.mrf.mxu0
  %4086 = vmatprep.mubr.f32.mxu0 0.0
  %4087 = vmatmul.mubr.f32.gmra.mxu0 %v4015
  %v4088 = vpop.f32.mrf.mxu0
  %v4089 = vadd.f32 %v4010, %v4088
  %v4090 = vpop.f32.mrf.mxu0
  %4091 = vdwg.mxu0
  %v4092 = vmax.f32 %v4084, 0.0
  %v4093 = vmax.f32 %v4089, 0.0
  %s4094 = scalar_lea.vmem %s7, 128
  %v4095 = vld [vmem:[%s4094] sm:$0xff]
  %v4096 = vld [vmem:[%s4094 + $0x8] sm:$0xff]
  %v4097 = vld [vmem:[%s4094 + $0x10] sm:$0xff]
  %v4098 = vld [vmem:[%s4094 + $0x18] sm:$0xff]
  %v4099 = vld [vmem:[%s4094 + $0x20] sm:$0xff]
  %v4100 = vld [vmem:[%s4094 + $0x28] sm:$0xff]
  %v4101 = vld [vmem:[%s4094 + $0x30] sm:$0xff]
  %v4102 = vld [vmem:[%s4094 + $0x38] sm:$0xff]
  %v4103 = vld [vmem:[%s4094 + $0x40] sm:$0xff]
  %v4104 = vld [vmem:[%s4094 + $0x48] sm:$0xff]
  %v4105 = vld [vmem:[%s4094 + $0x50] sm:$0xff]
  %v4106 = vld [vmem:[%s4094 + $0x58] sm:$0xff]
  %v4107 = vld [vmem:[%s4094 + $0x60] sm:$0xff]
  %v4108 = vld [vmem:[%s4094 + $0x68] sm:$0xff]
  %v4109 = vld [vmem:[%s4094 + $0x70] sm:$0xff]
  %v4110 = vld [vmem:[%s4094 + $0x78] sm:$0xff]
  %v4111 = vld [vmem:[%s9 + $0x11] sm:$0x1]
  %v4112 = vlaneseq
  %v4113 = vshrl.u32 %v4112, 7
  %v4114 = vsub.s32 0, %v4113
  %v4115 = vrot.slane %v4111, %v4114
  %4116 = vmatprep.subr.mxu0 0.0
  %4117 = vmatpush1.msra.mxu0 %v4110
  %4118 = vmatprep.subr.mxu0 0.0
  %4119 = vmatpush1.msra.mxu0 %v4109
  %4120 = vmatprep.subr.mxu0 0.0
  %4121 = vmatpush1.msra.mxu0 %v4108
  %4122 = vmatprep.subr.mxu0 0.0
  %4123 = vmatpush1.msra.mxu0 %v4107
  %4124 = vmatprep.subr.mxu0 0.0
  %4125 = vmatpush1.msra.mxu0 %v4106
  %4126 = vmatprep.subr.mxu0 0.0
  %4127 = vmatpush1.msra.mxu0 %v4105
  %4128 = vmatprep.subr.mxu0 0.0
  %4129 = vmatpush1.msra.mxu0 %v4104
  %4130 = vmatprep.subr.mxu0 0.0
  %4131 = vmatpush1.msra.mxu0 %v4103
  %4132 = vmatprep.subr.mxu0 0.0
  %4133 = vmatpush1.msra.mxu0 %v4102
  %4134 = vmatprep.subr.mxu0 0.0
  %4135 = vmatpush1.msra.mxu0 %v4101
  %4136 = vmatprep.subr.mxu0 0.0
  %4137 = vmatpush1.msra.mxu0 %v4100
  %4138 = vmatprep.subr.mxu0 0.0
  %4139 = vmatpush1.msra.mxu0 %v4099
  %4140 = vmatprep.subr.mxu0 0.0
  %4141 = vmatpush1.msra.mxu0 %v4098
  %4142 = vmatprep.subr.mxu0 0.0
  %4143 = vmatpush1.msra.mxu0 %v4097
  %4144 = vmatprep.subr.mxu0 0.0
  %4145 = vmatpush1.msra.mxu0 %v4096
  %4146 = vmatprep.subr.mxu0 0.0
  %4147 = vmatpush1.msra.mxu0 %v4095
  %4148 = vmatprep.subr.mxu0 0.0
  %4149 = vmatpush2.msra.mxu0 0.0
  %4150 = vmatprep.subr.mxu0 0.0
  %4151 = vmatpush2.msra.mxu0 0.0
  %4152 = vmatprep.subr.mxu0 0.0
  %4153 = vmatpush2.msra.mxu0 0.0
  %4154 = vmatprep.subr.mxu0 0.0
  %4155 = vmatpush2.msra.mxu0 0.0
  %4156 = vmatprep.subr.mxu0 0.0
  %4157 = vmatpush2.msra.mxu0 0.0
  %4158 = vmatprep.subr.mxu0 0.0
  %4159 = vmatpush2.msra.mxu0 0.0
  %4160 = vmatprep.subr.mxu0 0.0
  %4161 = vmatpush2.msra.mxu0 0.0
  %4162 = vmatprep.subr.mxu0 0.0
  %4163 = vmatpush2.msra.mxu0 0.0
  %4164 = vmatprep.subr.mxu0 0.0
  %4165 = vmatpush2.msra.mxu0 0.0
  %4166 = vmatprep.subr.mxu0 0.0
  %4167 = vmatpush2.msra.mxu0 0.0
  %4168 = vmatprep.subr.mxu0 0.0
  %4169 = vmatpush2.msra.mxu0 0.0
  %4170 = vmatprep.subr.mxu0 0.0
  %4171 = vmatpush2.msra.mxu0 0.0
  %4172 = vmatprep.subr.mxu0 0.0
  %4173 = vmatpush2.msra.mxu0 0.0
  %4174 = vmatprep.subr.mxu0 0.0
  %4175 = vmatpush2.msra.mxu0 0.0
  %4176 = vmatprep.subr.mxu0 0.0
  %4177 = vmatpush2.msra.mxu0 0.0
  %4178 = vmatprep.subr.mxu0 0.0
  %4179 = vmatpush2.msra.mxu0 0.0
  %4180 = vmatprep.mubr.f32.mxu0 0.0
  %4181 = vmatmul.mubr.f32.gmra.mxu0 %v4092
  %v4182 = vpop.f32.mrf.mxu0
  %v4183 = vadd.f32 %v4115, %v4182
  %v4184 = vpop.f32.mrf.mxu0
  %4185 = vmatprep.mubr.f32.mxu0 0.0
  %4186 = vmatmul.mubr.f32.gmra.mxu0 %v4093
  %v4187 = vpop.f32.mrf.mxu0
  %v4188 = vadd.f32 %v4115, %v4187
  %v4189 = vpop.f32.mrf.mxu0
  %4190 = vdwg.mxu0
  %v4191 = vadd.f32 %v4183, %v3999
  %v4192 = vadd.f32 %v4188, %v4000
  %v4193 = vsel %vm937, %v4191, 0.0
  %4194 = vadd.xlane.f32.xlu0 %v4193
  %v4195 = vpop.xlane.xlu0 %4194
  %v4196 = vsel %vm937, %v4192, 0.0
  %4197 = vadd.xlane.f32.xlu0 %v4196
  %v4198 = vpop.xlane.xlu0 %4197
  %v4199 = vmul.f32 %v4195, %v944
  %v4200 = vmul.f32 %v4198, %v944
  %v4201 = vsub.f32 %v4191, %v4199
  %v4202 = vsub.f32 %v4192, %v4200
  %v4203 = vmul.f32 %v4201, %v4201
  %v4204 = vmul.f32 %v4202, %v4202
  %v4205 = vsel %vm937, %v4203, 0.0
  %4206 = vadd.xlane.f32.xlu0 %v4205
  %v4207 = vpop.xlane.xlu0 %4206
  %v4208 = vsel %vm937, %v4204, 0.0
  %4209 = vadd.xlane.f32.xlu0 %v4208
  %v4210 = vpop.xlane.xlu0 %4209
  %v4211 = vmul.f32 %v4207, %v944
  %v4212 = vmul.f32 %v4210, %v944
  %v4213 = vadd.f32 %v4211, 1e-05
  %v4214 = vadd.f32 %v4212, 1e-05
  %v4215 = vrsqrt.pop %v4213
  %v4216 = vrsqrt.pop %v4214
  %v4217 = vmul.f32 %v4201, %v4215
  %v4218 = vmul.f32 %v4202, %v4216
  %v4219 = vld [vmem:[%s9 + $0xf] sm:$0x1]
  %v4220 = vlaneseq
  %v4221 = vshrl.u32 %v4220, 7
  %v4222 = vsub.s32 0, %v4221
  %v4223 = vrot.slane %v4219, %v4222
  %v4224 = vmul.f32 %v4217, %v4223
  %v4225 = vmul.f32 %v4218, %v4223
  %v4226 = vld [vmem:[%s9 + $0x10] sm:$0x1]
  %v4227 = vlaneseq
  %v4228 = vshrl.u32 %v4227, 7
  %v4229 = vsub.s32 0, %v4228
  %v4230 = vrot.slane %v4226, %v4229
  %v4231 = vadd.f32 %v4224, %v4230
  %v4232 = vadd.f32 %v4225, %v4230
  %v4233 = vld [vmem:[%s8] sm:$0xff]
  %v4234 = vld [vmem:[%s8 + $0x8] sm:$0xff]
  %v4235 = vld [vmem:[%s8 + $0x10] sm:$0xff]
  %v4236 = vld [vmem:[%s8 + $0x18] sm:$0xff]
  %v4237 = vld [vmem:[%s10 + $0x2] sm:$0x1]
  %v4238 = vlaneseq
  %v4239 = vshrl.u32 %v4238, 7
  %v4240 = vsub.s32 0, %v4239
  %v4241 = vrot.slane %v4237, %v4240
  %v4243 = vsel %vm937, %v4231, 0
  %v4246 = vsel %vm937, %v4232, 0
  %4248 = vmatprep.subr.mxu0 0.0
  %4249 = vmatpush1.msra.mxu0 0.0
  %4250 = vmatprep.subr.mxu0 0.0
  %4251 = vmatpush1.msra.mxu0 0.0
  %4252 = vmatprep.subr.mxu0 0.0
  %4253 = vmatpush1.msra.mxu0 0.0
  %4254 = vmatprep.subr.mxu0 0.0
  %4255 = vmatpush1.msra.mxu0 0.0
  %4256 = vmatprep.subr.mxu0 0.0
  %4257 = vmatpush1.msra.mxu0 0.0
  %4258 = vmatprep.subr.mxu0 0.0
  %4259 = vmatpush1.msra.mxu0 0.0
  %4260 = vmatprep.subr.mxu0 0.0
  %4261 = vmatpush1.msra.mxu0 0.0
  %4262 = vmatprep.subr.mxu0 0.0
  %4263 = vmatpush1.msra.mxu0 0.0
  %4264 = vmatprep.subr.mxu0 0.0
  %4265 = vmatpush1.msra.mxu0 0.0
  %4266 = vmatprep.subr.mxu0 0.0
  %4267 = vmatpush1.msra.mxu0 0.0
  %4268 = vmatprep.subr.mxu0 0.0
  %4269 = vmatpush1.msra.mxu0 0.0
  %4270 = vmatprep.subr.mxu0 0.0
  %4271 = vmatpush1.msra.mxu0 0.0
  %4272 = vmatprep.subr.mxu0 0.0
  %4273 = vmatpush1.msra.mxu0 %v4236
  %4274 = vmatprep.subr.mxu0 0.0
  %4275 = vmatpush1.msra.mxu0 %v4235
  %4276 = vmatprep.subr.mxu0 0.0
  %4277 = vmatpush1.msra.mxu0 %v4234
  %4278 = vmatprep.subr.mxu0 0.0
  %4279 = vmatpush1.msra.mxu0 %v4233
  %4280 = vmatprep.subr.mxu0 0.0
  %4281 = vmatpush2.msra.mxu0 0.0
  %4282 = vmatprep.subr.mxu0 0.0
  %4283 = vmatpush2.msra.mxu0 0.0
  %4284 = vmatprep.subr.mxu0 0.0
  %4285 = vmatpush2.msra.mxu0 0.0
  %4286 = vmatprep.subr.mxu0 0.0
  %4287 = vmatpush2.msra.mxu0 0.0
  %4288 = vmatprep.subr.mxu0 0.0
  %4289 = vmatpush2.msra.mxu0 0.0
  %4290 = vmatprep.subr.mxu0 0.0
  %4291 = vmatpush2.msra.mxu0 0.0
  %4292 = vmatprep.subr.mxu0 0.0
  %4293 = vmatpush2.msra.mxu0 0.0
  %4294 = vmatprep.subr.mxu0 0.0
  %4295 = vmatpush2.msra.mxu0 0.0
  %4296 = vmatprep.subr.mxu0 0.0
  %4297 = vmatpush2.msra.mxu0 0.0
  %4298 = vmatprep.subr.mxu0 0.0
  %4299 = vmatpush2.msra.mxu0 0.0
  %4300 = vmatprep.subr.mxu0 0.0
  %4301 = vmatpush2.msra.mxu0 0.0
  %4302 = vmatprep.subr.mxu0 0.0
  %4303 = vmatpush2.msra.mxu0 0.0
  %4304 = vmatprep.subr.mxu0 0.0
  %4305 = vmatpush2.msra.mxu0 0.0
  %4306 = vmatprep.subr.mxu0 0.0
  %4307 = vmatpush2.msra.mxu0 0.0
  %4308 = vmatprep.subr.mxu0 0.0
  %4309 = vmatpush2.msra.mxu0 0.0
  %4310 = vmatprep.subr.mxu0 0.0
  %4311 = vmatpush2.msra.mxu0 0.0
  %4312 = vmatprep.mubr.f32.mxu0 0.0
  %4313 = vmatmul.mubr.f32.gmra.mxu0 %v4243
  %v4314 = vpop.f32.mrf.mxu0
  %v4315 = vadd.f32 %v4241, %v4314
  %v4316 = vpop.f32.mrf.mxu0
  %4317 = vmatprep.mubr.f32.mxu0 0.0
  %4318 = vmatmul.mubr.f32.gmra.mxu0 %v4246
  %v4319 = vpop.f32.mrf.mxu0
  %v4320 = vadd.f32 %v4241, %v4319
  %v4321 = vpop.f32.mrf.mxu0
  %4322 = vdwg.mxu0
  %4323 = vst [vmem:[%s11] sm:$0xff] %v4315
  %4324 = vst [vmem:[%s11 + $0x8] sm:$0xff] %v4320
  // Predicated region
  $region46: #{decoder_forward.1} parent=0 // pred_check
    _
  $region47: #{decoder_forward.1} parent=0 // pred_check_branch
    %4326 = sbr.rel (0) target = $region49
  $region48: #{decoder_forward.1} parent=0 // pred_region
    _
  $region49: #{decoder_forward.1} parent=0 // pred_fallthru
    _
  // Predicated region
  $region50: #{decoder_forward.1} parent=0 // pred_check
    _
  $region51: #{decoder_forward.1} parent=0 // pred_check_branch
    %4328 = sbr.rel (0) target = $region53
  $region52: #{decoder_forward.1} parent=0 // pred_region
    _
  $region53: #{decoder_forward.1} parent=0 // pred_fallthru
    _

</llo_original>
